<compile_context>
chip_gen: v6e
topology: v6e:2x2x1
jax: 0.10.0
libtpu: 0.0.40
codegen_flags: <defaults>
</compile_context>

<pallas_src>
import functools

import jax
import jax.numpy as jnp
from jax import lax
from jax.experimental import pallas as pl
from jax.experimental.pallas import tpu as pltpu


def _round_up(x, m):
    return ((x + m - 1) // m) * m


def _vmem_limit_bytes():
    """Generation-aware VMEM budget (v5e/v6e: 128 MiB physical, v7x: 64 MiB)."""
    cap = 64 * 1024 * 1024
    try:
        cap = int(pltpu.get_tpu_info().vmem_capacity_bytes)
    except Exception:
        pass
    cap = max(cap, 32 * 1024 * 1024)
    return min((cap * 3) // 4, 96 * 1024 * 1024)


def _pick_row_tile(H, halo, per_row_live_bytes, weight_bytes, vmem_limit, batch):
    """Largest row tile (multiple of `halo`) whose live footprint fits VMEM."""
    budget = max(vmem_limit - weight_bytes - (2 << 20), vmem_limit // 4)
    target_rows = max(halo, int(budget // max(1, per_row_live_bytes)))
    TH = min(_round_up(H, halo), max(halo, (target_rows // halo) * halo))
    nT = pl.cdiv(H, TH)
    # v7x megacore: keep at least 2 grid steps so both TensorCores get work.
    while batch * nT < 2 and TH > halo:
        TH = max(halo, ((TH // 2) // halo) * halo)
        nT = pl.cdiv(H, TH)
    return TH, nT


def _dwconv_kernel(xa_ref, xh_ref, *rest, kh_size, kw_size, fused):
    """One grid step = one (batch, row-tile).

    xa_ref : (1, TH,   Wp, Cin)  core rows of the spatially padded input
    xh_ref : (1, halo, Wp, Cin)  next `halo` padded rows (bottom halo)
    fused  : rest = (wc_ref (KH*KW, Cin, Cout), o_ref, acc_ref (TH*Wp, Cout) f32)
    !fused : rest = (wdw_ref (KH*KW, Cin) f32, wpw_ref (Cin, Cout), o_ref,
                     acc_ref (TH*Wp, Cin) f32)
    """
    if fused:
        wc_ref, o_ref, acc_ref = rest
        mxu_dtype = wc_ref.dtype
    else:
        wdw_ref, wpw_ref, o_ref, acc_ref = rest
        mxu_dtype = None

    TH = xa_ref.shape[1]
    Wp = xa_ref.shape[2]
    Cin = xa_ref.shape[3]
    halo = xh_ref.shape[1]
    W = o_ref.shape[2]
    Cout = o_ref.shape[3]
    Na, Nh = TH * Wp, halo * Wp

    # Flat 2-D views: (rows * padded-width) on sublanes, channels on lanes.
    # The wrapper guarantees Wp % 8 == 0, so these reshapes are layout no-ops.
    xa2 = xa_ref[0].reshape(Na, Cin)
    xh2 = xh_ref[0].reshape(Nh, Cin)

    for kw in range(kw_size):
        # Column shift via an XLU roll of the flat slab (no relayout copies).
        # Roll wrap-around only lands in columns >= W, which are discarded.
        if kw == 0:
            xa_k, xh_k = xa2, xh2
        else:
            xa_k = pltpu.roll(xa2, shift=Na - kw, axis=0)
            xh_k = pltpu.roll(xh2, shift=Nh - kw, axis=0)
        if fused:
            if xa_k.dtype != mxu_dtype:          # only when forcing bf16 MXU
                xa_k = xa_k.astype(mxu_dtype)
                xh_k = xh_k.astype(mxu_dtype)
        else:
            # f32 accumulation on the VPU; one cast per column shift, not per tap.
            xa_k = xa_k.astype(jnp.float32)
            xh_k = xh_k.astype(jnp.float32)

        for kh in range(kh_size):
            tap = kh * kw_size + kw
            n_core = TH - kh                     # output rows served by xa
            if fused:
                w = wc_ref[tap]                  # (Cin, Cout)
                if n_core > 0:
                    y = jnp.dot(xa_k[kh * Wp:(kh + n_core) * Wp], w,
                                preferred_element_type=jnp.float32)
                    if tap == 0:                 # first tap covers all rows
                        acc_ref[...] = y
                    else:
                        acc_ref[0:n_core * Wp] += y
                if kh > 0:                       # last kh rows read the halo
                    y = jnp.dot(xh_k[0:kh * Wp], w,
                                preferred_element_type=jnp.float32)
                    acc_ref[n_core * Wp:Na] += y
            else:
                w = wdw_ref[tap]                 # (Cin,)
                if n_core > 0:
                    y = xa_k[kh * Wp:(kh + n_core) * Wp] * w
                    if tap == 0:
                        acc_ref[...] = y
                    else:
                        acc_ref[0:n_core * Wp] += y
                if kh > 0:
                    acc_ref[n_core * Wp:Na] += xh_k[0:kh * Wp] * w

    if fused:
        res = acc_ref[...]                                    # (TH*Wp, Cout) f32
    else:
        # Pointwise 1x1 on the MXU: (TH*Wp, Cin) @ (Cin, Cout).
        res = jnp.dot(acc_ref[...].astype(wpw_ref.dtype), wpw_ref[...],
                      preferred_element_type=jnp.float32)
    out = res.reshape(TH, Wp, Cout)[:, :W, :]                 # aligned slice
    o_ref[0] = out.astype(o_ref.dtype)


def dwconv_pallas(x_nchw, w_dw, w_pw, *, padding=1, row_tile=None,
                  fuse_taps=None, use_bf16_mxu=False, interpret=False):
    """Depthwise (KxK, stride 1, groups=Cin) + pointwise (1x1) conv.

    x_nchw: (B, Cin, H, W); w_dw: (Cin, 1, KH, KW); w_pw: (Cout, Cin, 1, 1).
    Returns (B, Cout, H, W) NCHW, matching the PyTorch DWConv (bias=False).
    """
    B, Cin, H, W = (int(d) for d in x_nchw.shape)
    KH, KW = int(w_dw.shape[2]), int(w_dw.shape[3])
    Cout = int(w_pw.shape[0])

    # TODO(synk): stride != 1 and bias=True of the underlying nn.Conv2d are not
    # implemented (module defaults stride=1, bias=False are what this covers).
    assert padding >= 1 and KH == 2 * padding + 1 and KW == 2 * padding + 1, (
        "kernel assumes 'same'-style conv: kernel_size == 2*padding + 1")
    halo = 2 * padding

    if fuse_taps is None:
        # Folding the taps into the 1x1 costs KH*KW more MXU flops but removes
        # the VPU tap loop; it wins for small/moderate Cout.
        fuse_taps = Cout <= 128

    itemsize = x_nchw.dtype.itemsize
    mxu_dtype = (jnp.bfloat16
                 if (x_nchw.dtype == jnp.bfloat16 or use_bf16_mxu)
                 else jnp.float32)

    # Conv-padded width rounded up to a sublane multiple of 8 so in-kernel
    # (rows, Wp, C) <-> (rows*Wp, C) reshapes and row slices are layout no-ops.
    # (Channel padding to lane multiples is only worthwhile for large C and is
    # left to the caller.)
    Wp = _round_up(W + 2 * padding, 8)

    # Weights prepared once in the wrapper (grid-constant inside the kernel).
    wdw = jnp.transpose(w_dw[:, 0, :, :].reshape(Cin, KH * KW), (1, 0))  # (T,Cin)
    wpw = jnp.transpose(w_pw[:, :, 0, 0], (1, 0))                        # (Cin,Cout)
    if fuse_taps:
        w_comb = (wdw.astype(jnp.float32)[:, :, None]
                  * wpw.astype(jnp.float32)[None, :, :]).astype(mxu_dtype)
        weight_args = (w_comb,)
        weight_specs = [pl.BlockSpec((KH * KW, Cin, Cout), lambda b, t: (0, 0, 0))]
    else:
        weight_args = (wdw.astype(jnp.float32), wpw.astype(mxu_dtype))
        weight_specs = [pl.BlockSpec((KH * KW, Cin), lambda b, t: (0, 0)),
                        pl.BlockSpec((Cin, Cout), lambda b, t: (0, 0))]
    weight_bytes = sum(int(w.size) * w.dtype.itemsize for w in weight_args)

    # Generation-aware row tiling from the per-row live VMEM footprint:
    # double-buffered input + rolled copy + f32 accumulator/temps + 2x output.
    vmem_limit = _vmem_limit_bytes()
    acc_width = Cout if fuse_taps else Cin
    per_row_live = (3 * Wp * Cin * itemsize
                    + 2 * Wp * max(acc_width, Cout) * 4
                    + 2 * W * Cout * itemsize)
    per_row_live = per_row_live * 3 // 2                      # safety headroom
    if row_tile is None:
        TH, nT = _pick_row_tile(H, halo, per_row_live, weight_bytes,
                                vmem_limit, B)
    else:
        TH = int(row_tile)
        assert TH >= halo and TH % halo == 0, (
            "row_tile must be a positive multiple of 2*padding")
        nT = pl.cdiv(H, TH)
    H_work = nT * TH                     # rows actually computed (>= H)
    Hp_work = H_work + 2 * padding

    # NCHW -> NHWC + spatial zero pad (rows padded up to the tile grid, width
    # padded up to Wp).  Glue ops; they fold away in a full NHWC pipeline.
    x_nhwc = jnp.transpose(x_nchw, (0, 2, 3, 1))
    x_pad = jnp.pad(
        x_nhwc,
        ((0, 0),
         (padding, Hp_work - H - padding),
         (padding, Wp - W - padding),
         (0, 0)))

    kernel = functools.partial(_dwconv_kernel, kh_size=KH, kw_size=KW,
                               fused=fuse_taps)

    if fuse_taps:
        flops = 2 * B * H_work * W * Cin * Cout * KH * KW
    else:
        flops = 2 * B * H_work * W * Cin * (KH * KW + Cout)
    bytes_accessed = (int(x_pad.size) * itemsize + weight_bytes
                      + B * H_work * W * Cout * itemsize)

    blocks_per_tile = TH // halo         # halo BlockSpec blocks per row tile

    out_nhwc = pl.pallas_call(
        kernel,
        out_shape=jax.ShapeDtypeStruct((B, H_work, W, Cout), x_nchw.dtype),
        grid_spec=pltpu.PrefetchScalarGridSpec(
            num_scalar_prefetch=0,
            grid=(B, nT),
            in_specs=[
                # Core rows [t*TH, t*TH + TH) of the padded input.
                pl.BlockSpec((1, TH, Wp, Cin), lambda b, t: (b, t, 0, 0)),
                # Bottom halo rows [t*TH + TH, t*TH + TH + halo).
                pl.BlockSpec((1, halo, Wp, Cin),
                             lambda b, t: (b, (t + 1) * blocks_per_tile, 0, 0)),
                *weight_specs,
            ],
            out_specs=pl.BlockSpec((1, TH, W, Cout), lambda b, t: (b, t, 0, 0)),
            scratch_shapes=[pltpu.VMEM((TH * Wp, acc_width), jnp.float32)],
        ),
        compiler_params=pltpu.CompilerParams(
            dimension_semantics=("parallel", "parallel"),
            vmem_limit_bytes=vmem_limit),
        cost_estimate=pl.CostEstimate(flops=flops, transcendentals=0,
                                      bytes_accessed=bytes_accessed),
        interpret=interpret,
    )(x_pad, x_pad, *weight_args)

    # Drop the tile-rounding rows and go back to NCHW.
    return jnp.transpose(out_nhwc[:, :H], (0, 3, 1, 2))


def dwconv_reference(x_nchw, w_dw, w_pw, *, padding=1):
    """Pure-JAX reference via lax.conv_general_dilated (matches nn.Conv2d)."""
    Cin = x_nchw.shape[1]
    dw = lax.conv_general_dilated(
        x_nchw, w_dw,
        window_strides=(1, 1),
        padding=((padding, padding), (padding, padding)),
        dimension_numbers=("NCHW", "OIHW", "NCHW"),
        feature_group_count=Cin)
    pw = lax.conv_general_dilated(
        dw, w_pw,
        window_strides=(1, 1),
        padding=((0, 0), (0, 0)),
        dimension_numbers=("NCHW", "OIHW", "NCHW"))
    return pw


if __name__ == "__main__":
    B, Cin, H, W = 2, 4, 16, 16
    Cout, K, pad = 8, 3, 1

    key = jax.random.PRNGKey(0)
    kx, kdw, kpw = jax.random.split(key, 3)

    x = jax.random.normal(kx, (B, Cin, H, W), dtype=jnp.float32)
    # Deterministic synthetic parameters with PyTorch Conv2d weight shapes.
    w_dw = jax.random.normal(kdw, (Cin, 1, K, K), dtype=jnp.float32) * 0.1
    w_pw = jax.random.normal(kpw, (Cout, Cin, 1, 1), dtype=jnp.float32) * 0.1

    ref = jax.block_until_ready(dwconv_reference(x, w_dw, w_pw, padding=pad))

    # Default: fused-MXU path, auto row tile (single row tile, halo = bottom pad).
    out = jax.block_until_ready(dwconv_pallas(x, w_dw, w_pw, padding=pad))
    assert out.shape == (B, Cout, H, W)
    assert jnp.allclose(out, ref, atol=1e-4, rtol=1e-3), "fused path mismatch"

    # Unfused VPU-depthwise path with row_tile=8: exercises the multi-tile grid
    # and the split core/halo accumulation.
    out2 = jax.block_until_ready(
        dwconv_pallas(x, w_dw, w_pw, padding=pad, row_tile=8, fuse_taps=False))
    assert jnp.allclose(out2, ref, atol=1e-4, rtol=1e-3), "vpu path mismatch"

    print("KERNEL_OK")
</pallas_src>

<mosaic_0001>
module attributes {stable_mosaic.version = 11 : i64} {
  func.func @_dwconv_kernel(%arg0: i32, %arg1: i32, %arg2: memref<1x16x24x4xf32, #tpu.memory_space<vmem>>, %arg3: memref<1x2x24x4xf32, #tpu.memory_space<vmem>>, %arg4: memref<9x4x8xf32, #tpu.memory_space<vmem>>, %arg5: memref<1x16x16x8xf32, #tpu.memory_space<vmem>>, %arg6: memref<384x8xf32, #tpu.memory_space<vmem>>) attributes {dimension_semantics = [#tpu.dimension_semantics<parallel>, #tpu.dimension_semantics<parallel>], iteration_bounds = array<i64: 2, 1>, scalar_prefetch = 0 : i64, scratch_operands = 1 : i64, tpu.core_type = #tpu.core_type<tc>, window_params = [{transform_indices = @transform_0, window_bounds = array<i64: 1, 16, 24, 4>}, {transform_indices = @transform_1, window_bounds = array<i64: 1, 2, 24, 4>}, {pipeline_mode = #tpu.pipeline_mode<synchronous>, transform_indices = @transform_2, window_bounds = array<i64: 9, 4, 8>}, {transform_indices = @transform_3, window_bounds = array<i64: 1, 16, 16, 8>}]} {
    %c0 = arith.constant 0 : index
    %c0_0 = arith.constant 0 : index
    %c0_1 = arith.constant 0 : index
    %c0_2 = arith.constant 0 : index
    %0 = vector.load %arg2[%c0, %c0_0, %c0_1, %c0_2] : memref<1x16x24x4xf32, #tpu.memory_space<vmem>>, vector<1x16x24x4xf32>
    %1 = vector.shape_cast %0 : vector<1x16x24x4xf32> to vector<16x24x4xf32>
    %2 = vector.shape_cast %1 : vector<16x24x4xf32> to vector<384x4xf32>
    %c0_3 = arith.constant 0 : index
    %c0_4 = arith.constant 0 : index
    %c0_5 = arith.constant 0 : index
    %c0_6 = arith.constant 0 : index
    %3 = vector.load %arg3[%c0_3, %c0_4, %c0_5, %c0_6] : memref<1x2x24x4xf32, #tpu.memory_space<vmem>>, vector<1x2x24x4xf32>
    %4 = vector.shape_cast %3 : vector<1x2x24x4xf32> to vector<2x24x4xf32>
    %5 = vector.shape_cast %4 : vector<2x24x4xf32> to vector<48x4xf32>
    %c0_7 = arith.constant 0 : index
    %c0_8 = arith.constant 0 : index
    %c0_9 = arith.constant 0 : index
    %6 = vector.load %arg4[%c0_7, %c0_8, %c0_9] : memref<9x4x8xf32, #tpu.memory_space<vmem>>, vector<1x4x8xf32>
    %7 = vector.shape_cast %6 : vector<1x4x8xf32> to vector<4x8xf32>
    %cst = arith.constant dense<0.000000e+00> : vector<384x8xf32>
    %8 = tpu.matmul %2, %7, %cst {dimension_numbers = #tpu.dot_dimension_numbers<[1], [0], [0], [1], [0, 0, 1, 1], [], []>} : vector<384x4xf32>, vector<4x8xf32>, vector<384x8xf32> -> vector<384x8xf32>
    %c0_10 = arith.constant 0 : index
    %c0_11 = arith.constant 0 : index
    %9 = vector.load %arg6[%c0_10, %c0_11] : memref<384x8xf32, #tpu.memory_space<vmem>>, vector<384x8xf32>
    tpu.vector_store %arg6[%c0_10, %c0_11], %8 {strides = array<i32>} : memref<384x8xf32, #tpu.memory_space<vmem>>, vector<384x8xf32>,
    %c3 = arith.constant 3 : index
    %c0_12 = arith.constant 0 : index
    %c0_13 = arith.constant 0 : index
    %10 = vector.load %arg4[%c3, %c0_12, %c0_13] : memref<9x4x8xf32, #tpu.memory_space<vmem>>, vector<1x4x8xf32>
    %11 = vector.shape_cast %10 : vector<1x4x8xf32> to vector<4x8xf32>
    %12 = vector.extract_strided_slice %2 {offsets = [24, 0], sizes = [360, 4], strides = [1, 1]} : vector<384x4xf32> to vector<360x4xf32>
    %cst_14 = arith.constant dense<0.000000e+00> : vector<360x8xf32>
    %13 = tpu.matmul %12, %11, %cst_14 {dimension_numbers = #tpu.dot_dimension_numbers<[1], [0], [0], [1], [0, 0, 1, 1], [], []>} : vector<360x4xf32>, vector<4x8xf32>, vector<360x8xf32> -> vector<360x8xf32>
    %c0_15 = arith.constant 0 : index
    %c0_16 = arith.constant 0 : index
    %14 = vector.load %arg6[%c0_15, %c0_16] : memref<384x8xf32, #tpu.memory_space<vmem>>, vector<360x8xf32>
    %15 = arith.addf %14, %13 : vector<360x8xf32>
    %c0_17 = arith.constant 0 : index
    %c0_18 = arith.constant 0 : index
    %16 = vector.load %arg6[%c0_17, %c0_18] : memref<384x8xf32, #tpu.memory_space<vmem>>, vector<360x8xf32>
    tpu.vector_store %arg6[%c0_17, %c0_18], %15 {strides = array<i32>} : memref<384x8xf32, #tpu.memory_space<vmem>>, vector<360x8xf32>,
    %17 = vector.extract_strided_slice %5 {offsets = [0, 0], sizes = [24, 4], strides = [1, 1]} : vector<48x4xf32> to vector<24x4xf32>
    %cst_19 = arith.constant dense<0.000000e+00> : vector<24x8xf32>
    %18 = tpu.matmul %17, %11, %cst_19 {dimension_numbers = #tpu.dot_dimension_numbers<[1], [0], [0], [1], [0, 0, 1, 1], [], []>} : vector<24x4xf32>, vector<4x8xf32>, vector<24x8xf32> -> vector<24x8xf32>
    %c360 = arith.constant 360 : index
    %c0_20 = arith.constant 0 : index
    %19 = vector.load %arg6[%c360, %c0_20] : memref<384x8xf32, #tpu.memory_space<vmem>>, vector<24x8xf32>
    %20 = arith.addf %19, %18 : vector<24x8xf32>
    %c360_21 = arith.constant 360 : index
    %c0_22 = arith.constant 0 : index
    %21 = vector.load %arg6[%c360_21, %c0_22] : memref<384x8xf32, #tpu.memory_space<vmem>>, vector<24x8xf32>
    tpu.vector_store %arg6[%c360_21, %c0_22], %20 {strides = array<i32>} : memref<384x8xf32, #tpu.memory_space<vmem>>, vector<24x8xf32>,
    %c6 = arith.constant 6 : index
    %c0_23 = arith.constant 0 : index
    %c0_24 = arith.constant 0 : index
    %22 = vector.load %arg4[%c6, %c0_23, %c0_24] : memref<9x4x8xf32, #tpu.memory_space<vmem>>, vector<1x4x8xf32>
    %23 = vector.shape_cast %22 : vector<1x4x8xf32> to vector<4x8xf32>
    %24 = vector.extract_strided_slice %2 {offsets = [48, 0], sizes = [336, 4], strides = [1, 1]} : vector<384x4xf32> to vector<336x4xf32>
    %cst_25 = arith.constant dense<0.000000e+00> : vector<336x8xf32>
    %25 = tpu.matmul %24, %23, %cst_25 {dimension_numbers = #tpu.dot_dimension_numbers<[1], [0], [0], [1], [0, 0, 1, 1], [], []>} : vector<336x4xf32>, vector<4x8xf32>, vector<336x8xf32> -> vector<336x8xf32>
    %c0_26 = arith.constant 0 : index
    %c0_27 = arith.constant 0 : index
    %26 = vector.load %arg6[%c0_26, %c0_27] : memref<384x8xf32, #tpu.memory_space<vmem>>, vector<336x8xf32>
    %27 = arith.addf %26, %25 : vector<336x8xf32>
    %c0_28 = arith.constant 0 : index
    %c0_29 = arith.constant 0 : index
    %28 = vector.load %arg6[%c0_28, %c0_29] : memref<384x8xf32, #tpu.memory_space<vmem>>, vector<336x8xf32>
    tpu.vector_store %arg6[%c0_28, %c0_29], %27 {strides = array<i32>} : memref<384x8xf32, #tpu.memory_space<vmem>>, vector<336x8xf32>,
    %cst_30 = arith.constant dense<0.000000e+00> : vector<48x8xf32>
    %29 = tpu.matmul %5, %23, %cst_30 {dimension_numbers = #tpu.dot_dimension_numbers<[1], [0], [0], [1], [0, 0, 1, 1], [], []>} : vector<48x4xf32>, vector<4x8xf32>, vector<48x8xf32> -> vector<48x8xf32>
    %c336 = arith.constant 336 : index
    %c0_31 = arith.constant 0 : index
    %30 = vector.load %arg6[%c336, %c0_31] : memref<384x8xf32, #tpu.memory_space<vmem>>, vector<48x8xf32>
    %31 = arith.addf %30, %29 : vector<48x8xf32>
    %c336_32 = arith.constant 336 : index
    %c0_33 = arith.constant 0 : index
    %32 = vector.load %arg6[%c336_32, %c0_33] : memref<384x8xf32, #tpu.memory_space<vmem>>, vector<48x8xf32>
    tpu.vector_store %arg6[%c336_32, %c0_33], %31 {strides = array<i32>} : memref<384x8xf32, #tpu.memory_space<vmem>>, vector<48x8xf32>,
    %c383_i32 = arith.constant 383 : i32
    %33 = tpu.dynamic_rotate %2 by %c383_i32 dim 0 : vector<384x4xf32>, i32 -> vector<384x4xf32>
    %c47_i32 = arith.constant 47 : i32
    %34 = tpu.dynamic_rotate %5 by %c47_i32 dim 0 : vector<48x4xf32>, i32 -> vector<48x4xf32>
    %c1 = arith.constant 1 : index
    %c0_34 = arith.constant 0 : index
    %c0_35 = arith.constant 0 : index
    %35 = vector.load %arg4[%c1, %c0_34, %c0_35] : memref<9x4x8xf32, #tpu.memory_space<vmem>>, vector<1x4x8xf32>
    %36 = vector.shape_cast %35 : vector<1x4x8xf32> to vector<4x8xf32>
    %cst_36 = arith.constant dense<0.000000e+00> : vector<384x8xf32>
    %37 = tpu.matmul %33, %36, %cst_36 {dimension_numbers = #tpu.dot_dimension_numbers<[1], [0], [0], [1], [0, 0, 1, 1], [], []>} : vector<384x4xf32>, vector<4x8xf32>, vector<384x8xf32> -> vector<384x8xf32>
    %c0_37 = arith.constant 0 : index
    %c0_38 = arith.constant 0 : index
    %38 = vector.load %arg6[%c0_37, %c0_38] : memref<384x8xf32, #tpu.memory_space<vmem>>, vector<384x8xf32>
    %39 = arith.addf %38, %37 : vector<384x8xf32>
    %c0_39 = arith.constant 0 : index
    %c0_40 = arith.constant 0 : index
    %40 = vector.load %arg6[%c0_39, %c0_40] : memref<384x8xf32, #tpu.memory_space<vmem>>, vector<384x8xf32>
    tpu.vector_store %arg6[%c0_39, %c0_40], %39 {strides = array<i32>} : memref<384x8xf32, #tpu.memory_space<vmem>>, vector<384x8xf32>,
    %c4 = arith.constant 4 : index
    %c0_41 = arith.constant 0 : index
    %c0_42 = arith.constant 0 : index
    %41 = vector.load %arg4[%c4, %c0_41, %c0_42] : memref<9x4x8xf32, #tpu.memory_space<vmem>>, vector<1x4x8xf32>
    %42 = vector.shape_cast %41 : vector<1x4x8xf32> to vector<4x8xf32>
    %43 = vector.extract_strided_slice %33 {offsets = [24, 0], sizes = [360, 4], strides = [1, 1]} : vector<384x4xf32> to vector<360x4xf32>
    %cst_43 = arith.constant dense<0.000000e+00> : vector<360x8xf32>
    %44 = tpu.matmul %43, %42, %cst_43 {dimension_numbers = #tpu.dot_dimension_numbers<[1], [0], [0], [1], [0, 0, 1, 1], [], []>} : vector<360x4xf32>, vector<4x8xf32>, vector<360x8xf32> -> vector<360x8xf32>
    %c0_44 = arith.constant 0 : index
    %c0_45 = arith.constant 0 : index
    %45 = vector.load %arg6[%c0_44, %c0_45] : memref<384x8xf32, #tpu.memory_space<vmem>>, vector<360x8xf32>
    %46 = arith.addf %45, %44 : vector<360x8xf32>
    %c0_46 = arith.constant 0 : index
    %c0_47 = arith.constant 0 : index
    %47 = vector.load %arg6[%c0_46, %c0_47] : memref<384x8xf32, #tpu.memory_space<vmem>>, vector<360x8xf32>
    tpu.vector_store %arg6[%c0_46, %c0_47], %46 {strides = array<i32>} : memref<384x8xf32, #tpu.memory_space<vmem>>, vector<360x8xf32>,
    %48 = vector.extract_strided_slice %34 {offsets = [0, 0], sizes = [24, 4], strides = [1, 1]} : vector<48x4xf32> to vector<24x4xf32>
    %cst_48 = arith.constant dense<0.000000e+00> : vector<24x8xf32>
    %49 = tpu.matmul %48, %42, %cst_48 {dimension_numbers = #tpu.dot_dimension_numbers<[1], [0], [0], [1], [0, 0, 1, 1], [], []>} : vector<24x4xf32>, vector<4x8xf32>, vector<24x8xf32> -> vector<24x8xf32>
    %c360_49 = arith.constant 360 : index
    %c0_50 = arith.constant 0 : index
    %50 = vector.load %arg6[%c360_49, %c0_50] : memref<384x8xf32, #tpu.memory_space<vmem>>, vector<24x8xf32>
    %51 = arith.addf %50, %49 : vector<24x8xf32>
    %c360_51 = arith.constant 360 : index
    %c0_52 = arith.constant 0 : index
    %52 = vector.load %arg6[%c360_51, %c0_52] : memref<384x8xf32, #tpu.memory_space<vmem>>, vector<24x8xf32>
    tpu.vector_store %arg6[%c360_51, %c0_52], %51 {strides = array<i32>} : memref<384x8xf32, #tpu.memory_space<vmem>>, vector<24x8xf32>,
    %c7 = arith.constant 7 : index
    %c0_53 = arith.constant 0 : index
    %c0_54 = arith.constant 0 : index
    %53 = vector.load %arg4[%c7, %c0_53, %c0_54] : memref<9x4x8xf32, #tpu.memory_space<vmem>>, vector<1x4x8xf32>
    %54 = vector.shape_cast %53 : vector<1x4x8xf32> to vector<4x8xf32>
    %55 = vector.extract_strided_slice %33 {offsets = [48, 0], sizes = [336, 4], strides = [1, 1]} : vector<384x4xf32> to vector<336x4xf32>
    %cst_55 = arith.constant dense<0.000000e+00> : vector<336x8xf32>
    %56 = tpu.matmul %55, %54, %cst_55 {dimension_numbers = #tpu.dot_dimension_numbers<[1], [0], [0], [1], [0, 0, 1, 1], [], []>} : vector<336x4xf32>, vector<4x8xf32>, vector<336x8xf32> -> vector<336x8xf32>
    %c0_56 = arith.constant 0 : index
    %c0_57 = arith.constant 0 : index
    %57 = vector.load %arg6[%c0_56, %c0_57] : memref<384x8xf32, #tpu.memory_space<vmem>>, vector<336x8xf32>
    %58 = arith.addf %57, %56 : vector<336x8xf32>
    %c0_58 = arith.constant 0 : index
    %c0_59 = arith.constant 0 : index
    %59 = vector.load %arg6[%c0_58, %c0_59] : memref<384x8xf32, #tpu.memory_space<vmem>>, vector<336x8xf32>
    tpu.vector_store %arg6[%c0_58, %c0_59], %58 {strides = array<i32>} : memref<384x8xf32, #tpu.memory_space<vmem>>, vector<336x8xf32>,
    %cst_60 = arith.constant dense<0.000000e+00> : vector<48x8xf32>
    %60 = tpu.matmul %34, %54, %cst_60 {dimension_numbers = #tpu.dot_dimension_numbers<[1], [0], [0], [1], [0, 0, 1, 1], [], []>} : vector<48x4xf32>, vector<4x8xf32>, vector<48x8xf32> -> vector<48x8xf32>
    %c336_61 = arith.constant 336 : index
    %c0_62 = arith.constant 0 : index
    %61 = vector.load %arg6[%c336_61, %c0_62] : memref<384x8xf32, #tpu.memory_space<vmem>>, vector<48x8xf32>
    %62 = arith.addf %61, %60 : vector<48x8xf32>
    %c336_63 = arith.constant 336 : index
    %c0_64 = arith.constant 0 : index
    %63 = vector.load %arg6[%c336_63, %c0_64] : memref<384x8xf32, #tpu.memory_space<vmem>>, vector<48x8xf32>
    tpu.vector_store %arg6[%c336_63, %c0_64], %62 {strides = array<i32>} : memref<384x8xf32, #tpu.memory_space<vmem>>, vector<48x8xf32>,
    %c382_i32 = arith.constant 382 : i32
    %64 = tpu.dynamic_rotate %2 by %c382_i32 dim 0 : vector<384x4xf32>, i32 -> vector<384x4xf32>
    %c46_i32 = arith.constant 46 : i32
    %65 = tpu.dynamic_rotate %5 by %c46_i32 dim 0 : vector<48x4xf32>, i32 -> vector<48x4xf32>
    %c2 = arith.constant 2 : index
    %c0_65 = arith.constant 0 : index
    %c0_66 = arith.constant 0 : index
    %66 = vector.load %arg4[%c2, %c0_65, %c0_66] : memref<9x4x8xf32, #tpu.memory_space<vmem>>, vector<1x4x8xf32>
    %67 = vector.shape_cast %66 : vector<1x4x8xf32> to vector<4x8xf32>
    %cst_67 = arith.constant dense<0.000000e+00> : vector<384x8xf32>
    %68 = tpu.matmul %64, %67, %cst_67 {dimension_numbers = #tpu.dot_dimension_numbers<[1], [0], [0], [1], [0, 0, 1, 1], [], []>} : vector<384x4xf32>, vector<4x8xf32>, vector<384x8xf32> -> vector<384x8xf32>
    %c0_68 = arith.constant 0 : index
    %c0_69 = arith.constant 0 : index
    %69 = vector.load %arg6[%c0_68, %c0_69] : memref<384x8xf32, #tpu.memory_space<vmem>>, vector<384x8xf32>
    %70 = arith.addf %69, %68 : vector<384x8xf32>
    %c0_70 = arith.constant 0 : index
    %c0_71 = arith.constant 0 : index
    %71 = vector.load %arg6[%c0_70, %c0_71] : memref<384x8xf32, #tpu.memory_space<vmem>>, vector<384x8xf32>
    tpu.vector_store %arg6[%c0_70, %c0_71], %70 {strides = array<i32>} : memref<384x8xf32, #tpu.memory_space<vmem>>, vector<384x8xf32>,
    %c5 = arith.constant 5 : index
    %c0_72 = arith.constant 0 : index
    %c0_73 = arith.constant 0 : index
    %72 = vector.load %arg4[%c5, %c0_72, %c0_73] : memref<9x4x8xf32, #tpu.memory_space<vmem>>, vector<1x4x8xf32>
    %73 = vector.shape_cast %72 : vector<1x4x8xf32> to vector<4x8xf32>
    %74 = vector.extract_strided_slice %64 {offsets = [24, 0], sizes = [360, 4], strides = [1, 1]} : vector<384x4xf32> to vector<360x4xf32>
    %cst_74 = arith.constant dense<0.000000e+00> : vector<360x8xf32>
    %75 = tpu.matmul %74, %73, %cst_74 {dimension_numbers = #tpu.dot_dimension_numbers<[1], [0], [0], [1], [0, 0, 1, 1], [], []>} : vector<360x4xf32>, vector<4x8xf32>, vector<360x8xf32> -> vector<360x8xf32>
    %c0_75 = arith.constant 0 : index
    %c0_76 = arith.constant 0 : index
    %76 = vector.load %arg6[%c0_75, %c0_76] : memref<384x8xf32, #tpu.memory_space<vmem>>, vector<360x8xf32>
    %77 = arith.addf %76, %75 : vector<360x8xf32>
    %c0_77 = arith.constant 0 : index
    %c0_78 = arith.constant 0 : index
    %78 = vector.load %arg6[%c0_77, %c0_78] : memref<384x8xf32, #tpu.memory_space<vmem>>, vector<360x8xf32>
    tpu.vector_store %arg6[%c0_77, %c0_78], %77 {strides = array<i32>} : memref<384x8xf32, #tpu.memory_space<vmem>>, vector<360x8xf32>,
    %79 = vector.extract_strided_slice %65 {offsets = [0, 0], sizes = [24, 4], strides = [1, 1]} : vector<48x4xf32> to vector<24x4xf32>
    %cst_79 = arith.constant dense<0.000000e+00> : vector<24x8xf32>
    %80 = tpu.matmul %79, %73, %cst_79 {dimension_numbers = #tpu.dot_dimension_numbers<[1], [0], [0], [1], [0, 0, 1, 1], [], []>} : vector<24x4xf32>, vector<4x8xf32>, vector<24x8xf32> -> vector<24x8xf32>
    %c360_80 = arith.constant 360 : index
    %c0_81 = arith.constant 0 : index
    %81 = vector.load %arg6[%c360_80, %c0_81] : memref<384x8xf32, #tpu.memory_space<vmem>>, vector<24x8xf32>
    %82 = arith.addf %81, %80 : vector<24x8xf32>
    %c360_82 = arith.constant 360 : index
    %c0_83 = arith.constant 0 : index
    %83 = vector.load %arg6[%c360_82, %c0_83] : memref<384x8xf32, #tpu.memory_space<vmem>>, vector<24x8xf32>
    tpu.vector_store %arg6[%c360_82, %c0_83], %82 {strides = array<i32>} : memref<384x8xf32, #tpu.memory_space<vmem>>, vector<24x8xf32>,
    %c8 = arith.constant 8 : index
    %c0_84 = arith.constant 0 : index
    %c0_85 = arith.constant 0 : index
    %84 = vector.load %arg4[%c8, %c0_84, %c0_85] : memref<9x4x8xf32, #tpu.memory_space<vmem>>, vector<1x4x8xf32>
    %85 = vector.shape_cast %84 : vector<1x4x8xf32> to vector<4x8xf32>
    %86 = vector.extract_strided_slice %64 {offsets = [48, 0], sizes = [336, 4], strides = [1, 1]} : vector<384x4xf32> to vector<336x4xf32>
    %cst_86 = arith.constant dense<0.000000e+00> : vector<336x8xf32>
    %87 = tpu.matmul %86, %85, %cst_86 {dimension_numbers = #tpu.dot_dimension_numbers<[1], [0], [0], [1], [0, 0, 1, 1], [], []>} : vector<336x4xf32>, vector<4x8xf32>, vector<336x8xf32> -> vector<336x8xf32>
    %c0_87 = arith.constant 0 : index
    %c0_88 = arith.constant 0 : index
    %88 = vector.load %arg6[%c0_87, %c0_88] : memref<384x8xf32, #tpu.memory_space<vmem>>, vector<336x8xf32>
    %89 = arith.addf %88, %87 : vector<336x8xf32>
    %c0_89 = arith.constant 0 : index
    %c0_90 = arith.constant 0 : index
    %90 = vector.load %arg6[%c0_89, %c0_90] : memref<384x8xf32, #tpu.memory_space<vmem>>, vector<336x8xf32>
    tpu.vector_store %arg6[%c0_89, %c0_90], %89 {strides = array<i32>} : memref<384x8xf32, #tpu.memory_space<vmem>>, vector<336x8xf32>,
    %cst_91 = arith.constant dense<0.000000e+00> : vector<48x8xf32>
    %91 = tpu.matmul %65, %85, %cst_91 {dimension_numbers = #tpu.dot_dimension_numbers<[1], [0], [0], [1], [0, 0, 1, 1], [], []>} : vector<48x4xf32>, vector<4x8xf32>, vector<48x8xf32> -> vector<48x8xf32>
    %c336_92 = arith.constant 336 : index
    %c0_93 = arith.constant 0 : index
    %92 = vector.load %arg6[%c336_92, %c0_93] : memref<384x8xf32, #tpu.memory_space<vmem>>, vector<48x8xf32>
    %93 = arith.addf %92, %91 : vector<48x8xf32>
    %c336_94 = arith.constant 336 : index
    %c0_95 = arith.constant 0 : index
    %94 = vector.load %arg6[%c336_94, %c0_95] : memref<384x8xf32, #tpu.memory_space<vmem>>, vector<48x8xf32>
    tpu.vector_store %arg6[%c336_94, %c0_95], %93 {strides = array<i32>} : memref<384x8xf32, #tpu.memory_space<vmem>>, vector<48x8xf32>,
    %c0_96 = arith.constant 0 : index
    %c0_97 = arith.constant 0 : index
    %95 = vector.load %arg6[%c0_96, %c0_97] : memref<384x8xf32, #tpu.memory_space<vmem>>, vector<384x8xf32>
    %96 = vector.shape_cast %95 : vector<384x8xf32> to vector<16x24x8xf32>
    %97 = vector.extract_strided_slice %96 {offsets = [0, 0, 0], sizes = [16, 16, 8], strides = [1, 1, 1]} : vector<16x24x8xf32> to vector<16x16x8xf32>
    %c0_98 = arith.constant 0 : index
    %c0_99 = arith.constant 0 : index
    %c0_100 = arith.constant 0 : index
    %c0_101 = arith.constant 0 : index
    %98 = vector.load %arg5[%c0_98, %c0_99, %c0_100, %c0_101] : memref<1x16x16x8xf32, #tpu.memory_space<vmem>>, vector<1x16x16x8xf32>
    %99 = vector.shape_cast %98 : vector<1x16x16x8xf32> to vector<16x16x8xf32>
    %100 = vector.shape_cast %97 : vector<16x16x8xf32> to vector<1x16x16x8xf32>
    tpu.vector_store %arg5[%c0_98, %c0_99, %c0_100, %c0_101], %100 {strides = array<i32>} : memref<1x16x16x8xf32, #tpu.memory_space<vmem>>, vector<1x16x16x8xf32>,
    return
  }
  func.func @transform_0(%arg0: i32, %arg1: i32) -> (i32, i32, i32, i32) {
    %c0_i32 = arith.constant 0 : i32
    %c0_i32_0 = arith.constant 0 : i32
    %c0_i32_1 = arith.constant 0 : i32
    return %arg0, %arg1, %c0_i32, %c0_i32_0 : i32, i32, i32, i32
  }
  func.func @transform_1(%arg0: i32, %arg1: i32) -> (i32, i32, i32, i32) {
    %c1_i32 = arith.constant 1 : i32
    %0 = arith.addi %arg1, %c1_i32 : i32
    %c8_i32 = arith.constant 8 : i32
    %1 = arith.muli %0, %c8_i32 : i32
    %c0_i32 = arith.constant 0 : i32
    %c0_i32_0 = arith.constant 0 : i32
    %c0_i32_1 = arith.constant 0 : i32
    return %arg0, %1, %c0_i32, %c0_i32_0 : i32, i32, i32, i32
  }
  func.func @transform_2(%arg0: i32, %arg1: i32) -> (i32, i32, i32) {
    %c0_i32 = arith.constant 0 : i32
    %c0_i32_0 = arith.constant 0 : i32
    %c0_i32_1 = arith.constant 0 : i32
    %c0_i32_2 = arith.constant 0 : i32
    return %c0_i32, %c0_i32_0, %c0_i32_1 : i32, i32, i32
  }
  func.func @transform_3(%arg0: i32, %arg1: i32) -> (i32, i32, i32, i32) {
    %c0_i32 = arith.constant 0 : i32
    %c0_i32_0 = arith.constant 0 : i32
    %c0_i32_1 = arith.constant 0 : i32
    return %arg0, %arg1, %c0_i32, %c0_i32_0 : i32, i32, i32, i32
  }
}

</mosaic_0001>

<llo_original>
// kernel: tpu_custom_call.1
$region0: #{tpu_custom_call.1}
  #allocation0 [shape = 'u32[]', space=smem, size = 0x4, offset = 0x4, fixed_abs, tag = 'smem constant byte address 0x4 - core index']
  #allocation1 [shape = 'u32[144,128]{1,0:T(1,128)}', space=vmem, size = 0x12000, scoped, tag = 'internal scratch']
  #allocation2 [shape = 'f32[384,8]{1,0:T(8,128)}', space=vmem, size = 0x30000, scoped, tag = 'scratch operand']
  %s0 = inlined_call_operand.vmem [shape: f32[2,18,24,4], index: 0, kind: input, shape index: {}]
  %s1 = inlined_call_operand.vmem [shape: f32[2,18,24,4], index: 1, kind: input, shape index: {}]
  %s2 = inlined_call_operand.vmem [shape: f32[9,4,8], index: 2, kind: input, shape index: {}]
  %s3 = inlined_call_operand.vmem [shape: f32[2,16,16,8], index: 3, kind: output, shape index: {}]
  %s4 = sld [smem:[#allocation0]]
  $region45: #{tpu_custom_call.1} parent=0
    _
  %s6 = ssub.s32 1, %s4
  %s7 = scalar_select 0, %s6, %s4
  loop: start=0, step=1, limit=4
  $region2: #{tpu_custom_call.1} parent=0 // loop_pre_header
    _
  $region3: #{tpu_custom_call.1} parent=0 // loop_header
    %s9 = sphi 0, %s13
    %p10 = scmp.ge.s32.totalorder %s9, 4
    %s16 = sphi 0, %s28
    %s17 = sphi 0, %s24
    %s18 = sphi 0, %s16
    %s19 = sphi 0, %s17
    %s20 = sphi 0, %s18
    %s21 = sphi 0, %s19
    %s33 = sphi 0, %s35
    %s36 = sphi 0, %s33
    %s37 = sphi 0, %s36
    %s53 = sphi 0, %s37
    %s65 = sphi 0, %s67
    %s68 = sphi 0, %s65
    %s69 = sphi 0, %s68
    %s85 = sphi 0, %s69
    %s89 = sphi 0, %s89
    %s91 = sphi 0, %s89
    %s92 = sphi 0, %s91
    %s106 = sphi 0, %s92
    %s114 = sphi 0, %s116
    %s117 = sphi 0, %s114
    %s118 = sphi 0, %s117
    %s134 = sphi 0, %s118
  $region4: #{tpu_custom_call.1} parent=0 // loop_header_branch
    %12 = sbr.rel (%p10) target = $region8
  $region5: #{tpu_custom_call.1} parent=0 // loop_body
    %s14 = ssub.s32 %s9, 1
    %s15 = ssub.s32 %s9, 2
    %s22 = sadd.s32 1, %s17
    %p23 = scmp.ge.s32.totalorder %s22, 1
    %s24 = scalar_select %p23, 0, %s22
    %s25 = sadd.s32 1, %s16
    %s26 = scalar_select %p23, %s25, %s16
    %p27 = scmp.ge.s32.totalorder %s26, 2
    %s28 = scalar_select %p27, 0, %s26
    %s29 = ssub.s32 %s16, %s28
    %s30 = ssub.s32 %s17, %s24
    %s31 = sor.u32 %s29, %s30
    %p32 = scmp.eq.s32.totalorder %s31, 0
    %s34 = sadd.s32 %s33, 1
    %s35 = scalar_select %p32, %s33, %s34
    %p38 = pneg %p32
    %p39 = scmp.eq.s32.totalorder %s9, 1
    %p40 = por %p38, %p39
    %p41 = scmp.ne.s32.totalorder %s33, %s36
    %p42 = scmp.eq.s32.totalorder %s9, 0
    %p43 = por %p41, %p42
    %p44 = scmp.ne.s32.totalorder %s33, %s36
    %p45 = scmp.eq.s32.totalorder %s14, 1
    %p46 = por %p44, %p45
    %p47 = scmp.ne.s32.totalorder %s36, %s37
    %p48 = scmp.eq.s32.totalorder %s14, 0
    %p49 = por %p47, %p48
    %p50 = scmp.ne.s32.totalorder %s36, %s37
    %p51 = scmp.eq.s32.totalorder %s15, 1
    %p52 = por %p50, %p51
    %p54 = scmp.ne.s32.totalorder %s37, %s53
    %p55 = scmp.eq.s32.totalorder %s15, 0
    %p56 = por %p54, %p55
    %s57 = sadd.s32 %s17, 1
    %s58 = smul.u32 %s57, 8
    %s59 = sadd.s32 %s24, 1
    %s60 = smul.u32 %s59, 8
    %s61 = ssub.s32 %s16, %s28
    %s62 = ssub.s32 %s58, %s60
    %s63 = sor.u32 %s61, %s62
    %p64 = scmp.eq.s32.totalorder %s63, 0
    %s66 = sadd.s32 %s65, 1
    %s67 = scalar_select %p64, %s65, %s66
    %p70 = pneg %p64
    %p71 = scmp.eq.s32.totalorder %s9, 1
    %p72 = por %p70, %p71
    %p73 = scmp.ne.s32.totalorder %s65, %s68
    %p74 = scmp.eq.s32.totalorder %s9, 0
    %p75 = por %p73, %p74
    %p76 = scmp.ne.s32.totalorder %s65, %s68
    %p77 = scmp.eq.s32.totalorder %s14, 1
    %p78 = por %p76, %p77
    %p79 = scmp.ne.s32.totalorder %s68, %s69
    %p80 = scmp.eq.s32.totalorder %s14, 0
    %p81 = por %p79, %p80
    %p82 = scmp.ne.s32.totalorder %s68, %s69
    %p83 = scmp.eq.s32.totalorder %s15, 1
    %p84 = por %p82, %p83
    %p86 = scmp.ne.s32.totalorder %s69, %s85
    %p87 = scmp.eq.s32.totalorder %s15, 0
    %p88 = por %p86, %p87
    %s90 = sadd.s32 %s89, 1
    %p93 = scmp.eq.s32.totalorder %s9, 1
    %p94 = scmp.ne.s32.totalorder %s89, %s91
    %p95 = scmp.eq.s32.totalorder %s9, 0
    %p96 = por %p94, %p95
    %p97 = scmp.ne.s32.totalorder %s89, %s91
    %p98 = scmp.eq.s32.totalorder %s14, 1
    %p99 = por %p97, %p98
    %p100 = scmp.ne.s32.totalorder %s91, %s92
    %p101 = scmp.eq.s32.totalorder %s14, 0
    %p102 = por %p100, %p101
    %p103 = scmp.ne.s32.totalorder %s91, %s92
    %p104 = scmp.eq.s32.totalorder %s15, 1
    %p105 = por %p103, %p104
    %p107 = scmp.ne.s32.totalorder %s92, %s106
    %p108 = scmp.eq.s32.totalorder %s15, 0
    %p109 = por %p107, %p108
    %s110 = ssub.s32 %s16, %s28
    %s111 = ssub.s32 %s17, %s24
    %s112 = sor.u32 %s110, %s111
    %p113 = scmp.eq.s32.totalorder %s112, 0
    %s115 = sadd.s32 %s114, 1
    %s116 = scalar_select %p113, %s114, %s115
    %p119 = pneg %p113
    %p120 = scmp.eq.s32.totalorder %s9, 1
    %p121 = por %p119, %p120
    %p122 = scmp.ne.s32.totalorder %s114, %s117
    %p123 = scmp.eq.s32.totalorder %s9, 0
    %p124 = por %p122, %p123
    %p125 = scmp.ne.s32.totalorder %s114, %s117
    %p126 = scmp.eq.s32.totalorder %s14, 1
    %p127 = por %p125, %p126
    %p128 = scmp.ne.s32.totalorder %s117, %s118
    %p129 = scmp.eq.s32.totalorder %s14, 0
    %p130 = por %p128, %p129
    %p131 = scmp.ne.s32.totalorder %s117, %s118
    %p132 = scmp.eq.s32.totalorder %s15, 1
    %p133 = por %p131, %p132
    %p135 = scmp.ne.s32.totalorder %s118, %s134
    %p136 = scmp.eq.s32.totalorder %s15, 0
    %p137 = por %p135, %p136
    %p138 = scmp.le.s32.totalorder 1, %s9
    %p139 = scmp.lt.s32.totalorder %s9, 3
    %p140 = pnand %p138, %p139
    %p141 = pneg %p140
    // Predicated region
    $region9: #{tpu_custom_call.1} parent=5 // pred_check
      _
    $region10: #{tpu_custom_call.1} parent=5 // pred_check_branch
      %143 = sbr.rel (%p140) target = $region12
    $region11: #{tpu_custom_call.1} parent=5 // pred_region
      %s144 = ssub.s32 %s9, 1
      // Predicated region
      $region13: #{tpu_custom_call.1} parent=11 // pred_check
        %p145 = pneg %p102
      $region14: #{tpu_custom_call.1} parent=11 // pred_check_branch
        %147 = sbr.rel (%p145) target = $region16
      $region15: #{tpu_custom_call.1} parent=11 // pred_region
        _
      $region16: #{tpu_custom_call.1} parent=11 // pred_fallthru
        _
    $region12: #{tpu_custom_call.1} parent=5 // pred_fallthru
      _
    %p148 = scmp.lt.s32.totalorder %s9, 2
    // Predicated region
    $region17: #{tpu_custom_call.1} parent=5 // pred_check
      %p149 = pneg %p148
    $region18: #{tpu_custom_call.1} parent=5 // pred_check_branch
      %151 = sbr.rel (%p149) target = $region20
    $region19: #{tpu_custom_call.1} parent=5 // pred_region
      // Predicated region
      $region21: #{tpu_custom_call.1} parent=19 // pred_check
        %p152 = pneg %p43
      $region22: #{tpu_custom_call.1} parent=19 // pred_check_branch
        %154 = sbr.rel (%p152) target = $region24
      $region23: #{tpu_custom_call.1} parent=19 // pred_region
        %s155 = smul.u32 16, %s17
        %s156 = ssub.s32 18, %s155
        %p157 = scmp.lt.s32.totalorder %s156, 16
        %s158 = scalar_select %p157, %s156, 16
        %s159 = smul.u32 128, %s158
        %s160 = smul.u32 %s159, 3
        %p161 = scmp.lt.s32.totalorder %s16, 1
        %s162 = scalar_select %p161, %s16, 1
        %p163 = scmp.lt.s32.totalorder %s155, 17
        %s164 = scalar_select %p163, %s155, 17
        %s165 = smul.addr %s164, 3
        %s166 = smul.addr %s162, 54
        %s167 = sadd.s32 %s165, %s166
        %s168 = smul.addr %s167, 8
        %s169 = scalar_lea.vmem %s0, %s168
        %s170 = smul.u32 16, %s17
        %s171 = ssub.s32 18, %s170
        %p172 = scmp.lt.s32.totalorder %s171, 16
        %s173 = scalar_select %p172, %s171, 16
        %s174 = smul.u32 128, %s173
        %s175 = smul.u32 %s174, 3
      $region24: #{tpu_custom_call.1} parent=19 // pred_fallthru
        _
      // Predicated region
      $region25: #{tpu_custom_call.1} parent=19 // pred_check
        %p176 = pneg %p75
      $region26: #{tpu_custom_call.1} parent=19 // pred_check_branch
        %178 = sbr.rel (%p176) target = $region28
      $region27: #{tpu_custom_call.1} parent=19 // pred_region
        %s179 = sadd.s32 %s17, 1
        %s180 = smul.u32 %s179, 8
        %s181 = smul.u32 2, %s180
        %p182 = scmp.lt.s32.totalorder %s16, 1
        %s183 = scalar_select %p182, %s16, 1
        %p184 = scmp.lt.s32.totalorder %s181, 17
        %s185 = scalar_select %p184, %s181, 17
        %s186 = smul.addr %s185, 3
        %s187 = smul.addr %s183, 54
        %s188 = sadd.s32 %s186, %s187
        %s189 = smul.addr %s188, 8
        %s190 = scalar_lea.vmem %s1, %s189
        %s191 = sadd.s32 %s17, 1
        %s192 = smul.u32 %s191, 8
        %s193 = smul.u32 2, %s192
      $region28: #{tpu_custom_call.1} parent=19 // pred_fallthru
        _
    $region20: #{tpu_custom_call.1} parent=5 // pred_fallthru
      _
    %p194 = scmp.le.s32.totalorder 1, %s9
    %p195 = scmp.lt.s32.totalorder %s9, 3
    %p196 = pnand %p194, %p195
    %p197 = pneg %p196
    // Predicated region
    $region29: #{tpu_custom_call.1} parent=5 // pred_check
      _
    $region30: #{tpu_custom_call.1} parent=5 // pred_check_branch
      %199 = sbr.rel (%p196) target = $region32
    $region31: #{tpu_custom_call.1} parent=5 // pred_region
      %s200 = ssub.s32 %s9, 1
      %s201 = smul.u32 16, %s19
      %s202 = ssub.s32 18, %s201
      %p203 = scmp.lt.s32.totalorder %s202, 16
      %s204 = scalar_select %p203, %s202, 16
      %s205 = smul.u32 128, %s204
      %s206 = smul.u32 %s205, 3
      %p207 = scmp.lt.s32.totalorder %s18, 1
      %s208 = scalar_select %p207, %s18, 1
      %p209 = scmp.lt.s32.totalorder %s201, 17
      %s210 = scalar_select %p209, %s201, 17
      %s211 = smul.addr %s210, 3
      %s212 = smul.addr %s208, 54
      %s213 = sadd.s32 %s211, %s212
      %s214 = smul.addr %s213, 8
      %s215 = scalar_lea.vmem %s0, %s214
      %p216 = pneg %p49
      %p217 = pneg %p46
      %s218 = sadd.s32 %s19, 1
      %s219 = smul.u32 %s218, 8
      %s220 = smul.u32 2, %s219
      %p221 = scmp.lt.s32.totalorder %s18, 1
      %s222 = scalar_select %p221, %s18, 1
      %p223 = scmp.lt.s32.totalorder %s220, 17
      %s224 = scalar_select %p223, %s220, 17
      %s225 = smul.addr %s224, 3
      %s226 = smul.addr %s222, 54
      %s227 = sadd.s32 %s225, %s226
      %s228 = smul.addr %s227, 8
      %s229 = scalar_lea.vmem %s1, %s228
      %p230 = pneg %p81
      %p231 = pneg %p78
      %p232 = pneg %p102
      %p233 = pneg %p99
      %p234 = pneg %p130
      %p235 = pneg %p127
      %s236 = smul.u32 16, %s19
      %p237 = scmp.lt.s32.totalorder %s18, 1
      %s238 = scalar_select %p237, %s18, 1
      %p239 = scmp.lt.s32.totalorder %s236, 15
      %s240 = scalar_select %p239, %s236, 15
      %s241 = smul.addr %s240, 2
      %s242 = smul.addr %s238, 32
      %s243 = sadd.s32 %s241, %s242
      %s244 = smul.addr %s243, 8
      %s245 = scalar_lea.vmem %s3, %s244
      %s246 = smul.u32 16, %s19
      %s247 = ssub.s32 18, %s246
      %p248 = scmp.lt.s32.totalorder %s247, 16
      %s249 = scalar_select %p248, %s247, 16
      %s250 = smul.u32 128, %s249
      %s251 = smul.u32 %s250, 3
      %p252 = scmp.lt.s32.totalorder %s18, 1
      %s253 = scalar_select %p252, %s18, 1
      %p254 = scmp.lt.s32.totalorder %s246, 17
      %s255 = scalar_select %p254, %s246, 17
      %s256 = smul.addr %s255, 3
      %s257 = smul.addr %s253, 54
      %s258 = sadd.s32 %s256, %s257
      %s259 = smul.addr %s258, 8
      %s260 = scalar_lea.vmem %s0, %s259
      %s261 = smul.u32 16, %s19
      %s262 = ssub.s32 18, %s261
      %p263 = scmp.lt.s32.totalorder %s262, 16
      %s264 = scalar_select %p263, %s262, 16
      %s265 = smul.u32 128, %s264
      %s266 = smul.u32 %s265, 3
      %s267 = sadd.s32 %s19, 1
      %s268 = smul.u32 %s267, 8
      %s269 = smul.u32 2, %s268
      %p270 = scmp.lt.s32.totalorder %s18, 1
      %s271 = scalar_select %p270, %s18, 1
      %p272 = scmp.lt.s32.totalorder %s269, 17
      %s273 = scalar_select %p272, %s269, 17
      %s274 = smul.addr %s273, 3
      %s275 = smul.addr %s271, 54
      %s276 = sadd.s32 %s274, %s275
      %s277 = smul.addr %s276, 8
      %s278 = scalar_lea.vmem %s1, %s277
      %s279 = sadd.s32 %s19, 1
      %s280 = smul.u32 %s279, 8
      %s281 = smul.u32 2, %s280
      %s282 = smul.u32 16, %s19
      %p283 = scmp.lt.s32.totalorder %s18, 1
      %s284 = scalar_select %p283, %s18, 1
      %p285 = scmp.lt.s32.totalorder %s282, 15
      %s286 = scalar_select %p285, %s282, 15
      %s287 = smul.addr %s286, 2
      %s288 = smul.addr %s284, 32
      %s289 = sadd.s32 %s287, %s288
      %s290 = smul.addr %s289, 8
      %s291 = scalar_lea.vmem %s3, %s290
      %s292 = smul.u32 16, %s19
      %v293 = vld [vmem:[%s260] sm:$0xff]
      %v294 = vld [vmem:[%s260 + $0x8] sm:$0xff]
      %v295 = vld [vmem:[%s260 + $0x10] sm:$0xff]
      %v296 = vld [vmem:[%s260 + $0x18] sm:$0xff]
      %v297 = vld [vmem:[%s260 + $0x20] sm:$0xff]
      %v298 = vld [vmem:[%s260 + $0x28] sm:$0xff]
      %v299 = vld [vmem:[%s260 + $0x30] sm:$0xff]
      %v300 = vld [vmem:[%s260 + $0x38] sm:$0xff]
      %v301 = vld [vmem:[%s260 + $0x40] sm:$0xff]
      %v302 = vld [vmem:[%s260 + $0x48] sm:$0xff]
      %v303 = vld [vmem:[%s260 + $0x50] sm:$0xff]
      %v304 = vld [vmem:[%s260 + $0x58] sm:$0xff]
      %v305 = vld [vmem:[%s260 + $0x60] sm:$0xff]
      %v306 = vld [vmem:[%s260 + $0x68] sm:$0xff]
      %v307 = vld [vmem:[%s260 + $0x70] sm:$0xff]
      %v308 = vld [vmem:[%s260 + $0x78] sm:$0xff]
      %v309 = vld [vmem:[%s260 + $0x80] sm:$0xff]
      %v310 = vld [vmem:[%s260 + $0x88] sm:$0xff]
      %v311 = vld [vmem:[%s260 + $0x90] sm:$0xff]
      %v312 = vld [vmem:[%s260 + $0x98] sm:$0xff]
      %v313 = vld [vmem:[%s260 + $0xa0] sm:$0xff]
      %v314 = vld [vmem:[%s260 + $0xa8] sm:$0xff]
      %v315 = vld [vmem:[%s260 + $0xb0] sm:$0xff]
      %v316 = vld [vmem:[%s260 + $0xb8] sm:$0xff]
      %v317 = vld [vmem:[%s260 + $0xc0] sm:$0xff]
      %v318 = vld [vmem:[%s260 + $0xc8] sm:$0xff]
      %v319 = vld [vmem:[%s260 + $0xd0] sm:$0xff]
      %v320 = vld [vmem:[%s260 + $0xd8] sm:$0xff]
      %v321 = vld [vmem:[%s260 + $0xe0] sm:$0xff]
      %v322 = vld [vmem:[%s260 + $0xe8] sm:$0xff]
      %v323 = vld [vmem:[%s260 + $0xf0] sm:$0xff]
      %v324 = vld [vmem:[%s260 + $0xf8] sm:$0xff]
      %v325 = vld [vmem:[%s260 + $0x100] sm:$0xff]
      %v326 = vld [vmem:[%s260 + $0x108] sm:$0xff]
      %v327 = vld [vmem:[%s260 + $0x110] sm:$0xff]
      %v328 = vld [vmem:[%s260 + $0x118] sm:$0xff]
      %v329 = vld [vmem:[%s260 + $0x120] sm:$0xff]
      %v330 = vld [vmem:[%s260 + $0x128] sm:$0xff]
      %v331 = vld [vmem:[%s260 + $0x130] sm:$0xff]
      %v332 = vld [vmem:[%s260 + $0x138] sm:$0xff]
      %v333 = vld [vmem:[%s260 + $0x140] sm:$0xff]
      %v334 = vld [vmem:[%s260 + $0x148] sm:$0xff]
      %v335 = vld [vmem:[%s260 + $0x150] sm:$0xff]
      %v336 = vld [vmem:[%s260 + $0x158] sm:$0xff]
      %v337 = vld [vmem:[%s260 + $0x160] sm:$0xff]
      %v338 = vld [vmem:[%s260 + $0x168] sm:$0xff]
      %v339 = vld [vmem:[%s260 + $0x170] sm:$0xff]
      %v340 = vld [vmem:[%s260 + $0x178] sm:$0xff]
      %v341 = vld [vmem:[%s278] sm:$0xff]
      %v342 = vld [vmem:[%s278 + $0x8] sm:$0xff]
      %v343 = vld [vmem:[%s278 + $0x10] sm:$0xff]
      %v344 = vld [vmem:[%s278 + $0x18] sm:$0xff]
      %v345 = vld [vmem:[%s278 + $0x20] sm:$0xff]
      %v346 = vld [vmem:[%s278 + $0x28] sm:$0xff]
      %v347 = vld [vmem:[%s2] sm:$0xf]
      %vm348 = vcmask 31744
      %v350 = vsel %vm348, %v293, 0
      %v353 = vsel %vm348, %v294, 0
      %v356 = vsel %vm348, %v295, 0
      %v359 = vsel %vm348, %v296, 0
      %v362 = vsel %vm348, %v297, 0
      %v365 = vsel %vm348, %v298, 0
      %v368 = vsel %vm348, %v299, 0
      %v371 = vsel %vm348, %v300, 0
      %v374 = vsel %vm348, %v301, 0
      %v377 = vsel %vm348, %v302, 0
      %v380 = vsel %vm348, %v303, 0
      %v383 = vsel %vm348, %v304, 0
      %v386 = vsel %vm348, %v305, 0
      %v389 = vsel %vm348, %v306, 0
      %v392 = vsel %vm348, %v307, 0
      %v395 = vsel %vm348, %v308, 0
      %v398 = vsel %vm348, %v309, 0
      %v401 = vsel %vm348, %v310, 0
      %v404 = vsel %vm348, %v311, 0
      %v407 = vsel %vm348, %v312, 0
      %v410 = vsel %vm348, %v313, 0
      %v413 = vsel %vm348, %v314, 0
      %v416 = vsel %vm348, %v315, 0
      %v419 = vsel %vm348, %v316, 0
      %v422 = vsel %vm348, %v317, 0
      %v425 = vsel %vm348, %v318, 0
      %v428 = vsel %vm348, %v319, 0
      %v431 = vsel %vm348, %v320, 0
      %v434 = vsel %vm348, %v321, 0
      %v437 = vsel %vm348, %v322, 0
      %v440 = vsel %vm348, %v323, 0
      %v443 = vsel %vm348, %v324, 0
      %v446 = vsel %vm348, %v325, 0
      %v449 = vsel %vm348, %v326, 0
      %v452 = vsel %vm348, %v327, 0
      %v455 = vsel %vm348, %v328, 0
      %v458 = vsel %vm348, %v329, 0
      %v461 = vsel %vm348, %v330, 0
      %v464 = vsel %vm348, %v331, 0
      %v467 = vsel %vm348, %v332, 0
      %v470 = vsel %vm348, %v333, 0
      %v473 = vsel %vm348, %v334, 0
      %v476 = vsel %vm348, %v335, 0
      %v479 = vsel %vm348, %v336, 0
      %v482 = vsel %vm348, %v337, 0
      %v485 = vsel %vm348, %v338, 0
      %v488 = vsel %vm348, %v339, 0
      %v491 = vsel %vm348, %v340, 0
      %vm493 = vcmask 1043456
      %v495 = vsel %vm493, %v347, 0
      %497 = vmatprep.subr.mxu0 0.0
      %498 = vmatpush1.msra.mxu0 0.0
      %499 = vmatprep.subr.mxu0 0.0
      %500 = vmatpush1.msra.mxu0 0.0
      %501 = vmatprep.subr.mxu0 0.0
      %502 = vmatpush1.msra.mxu0 0.0
      %503 = vmatprep.subr.mxu0 0.0
      %504 = vmatpush1.msra.mxu0 0.0
      %505 = vmatprep.subr.mxu0 0.0
      %506 = vmatpush1.msra.mxu0 0.0
      %507 = vmatprep.subr.mxu0 0.0
      %508 = vmatpush1.msra.mxu0 0.0
      %509 = vmatprep.subr.mxu0 0.0
      %510 = vmatpush1.msra.mxu0 0.0
      %511 = vmatprep.subr.mxu0 0.0
      %512 = vmatpush1.msra.mxu0 0.0
      %513 = vmatprep.subr.mxu0 0.0
      %514 = vmatpush1.msra.mxu0 0.0
      %515 = vmatprep.subr.mxu0 0.0
      %516 = vmatpush1.msra.mxu0 0.0
      %517 = vmatprep.subr.mxu0 0.0
      %518 = vmatpush1.msra.mxu0 0.0
      %519 = vmatprep.subr.mxu0 0.0
      %520 = vmatpush1.msra.mxu0 0.0
      %521 = vmatprep.subr.mxu0 0.0
      %522 = vmatpush1.msra.mxu0 0.0
      %523 = vmatprep.subr.mxu0 0.0
      %524 = vmatpush1.msra.mxu0 0.0
      %525 = vmatprep.subr.mxu0 0.0
      %526 = vmatpush1.msra.mxu0 0.0
      %527 = vmatprep.subr.mxu0 0.0
      %528 = vmatpush1.msra.mxu0 %v495
      %529 = vmatprep.subr.mxu0 0.0
      %530 = vmatpush2.msra.mxu0 0.0
      %531 = vmatprep.subr.mxu0 0.0
      %532 = vmatpush2.msra.mxu0 0.0
      %533 = vmatprep.subr.mxu0 0.0
      %534 = vmatpush2.msra.mxu0 0.0
      %535 = vmatprep.subr.mxu0 0.0
      %536 = vmatpush2.msra.mxu0 0.0
      %537 = vmatprep.subr.mxu0 0.0
      %538 = vmatpush2.msra.mxu0 0.0
      %539 = vmatprep.subr.mxu0 0.0
      %540 = vmatpush2.msra.mxu0 0.0
      %541 = vmatprep.subr.mxu0 0.0
      %542 = vmatpush2.msra.mxu0 0.0
      %543 = vmatprep.subr.mxu0 0.0
      %544 = vmatpush2.msra.mxu0 0.0
      %545 = vmatprep.subr.mxu0 0.0
      %546 = vmatpush2.msra.mxu0 0.0
      %547 = vmatprep.subr.mxu0 0.0
      %548 = vmatpush2.msra.mxu0 0.0
      %549 = vmatprep.subr.mxu0 0.0
      %550 = vmatpush2.msra.mxu0 0.0
      %551 = vmatprep.subr.mxu0 0.0
      %552 = vmatpush2.msra.mxu0 0.0
      %553 = vmatprep.subr.mxu0 0.0
      %554 = vmatpush2.msra.mxu0 0.0
      %555 = vmatprep.subr.mxu0 0.0
      %556 = vmatpush2.msra.mxu0 0.0
      %557 = vmatprep.subr.mxu0 0.0
      %558 = vmatpush2.msra.mxu0 0.0
      %559 = vmatprep.subr.mxu0 0.0
      %560 = vmatpush2.msra.mxu0 0.0
      %561 = vmatprep.mubr.f32.mxu0 0.0
      %562 = vmatmul.mubr.f32.gmra.mxu0 %v350
      %v563 = vpop.f32.mrf.mxu0
      %v564 = vadd.f32 0.0, %v563
      %v565 = vpop.f32.mrf.mxu0
      %566 = vmatprep.mubr.f32.mxu0 0.0
      %567 = vmatmul.mubr.f32.gmra.mxu0 %v353
      %v568 = vpop.f32.mrf.mxu0
      %v569 = vadd.f32 0.0, %v568
      %v570 = vpop.f32.mrf.mxu0
      %571 = vmatprep.mubr.f32.mxu0 0.0
      %572 = vmatmul.mubr.f32.gmra.mxu0 %v356
      %v573 = vpop.f32.mrf.mxu0
      %v574 = vadd.f32 0.0, %v573
      %v575 = vpop.f32.mrf.mxu0
      %576 = vmatprep.mubr.f32.mxu0 0.0
      %577 = vmatmul.mubr.f32.gmra.mxu0 %v359
      %v578 = vpop.f32.mrf.mxu0
      %v579 = vadd.f32 0.0, %v578
      %v580 = vpop.f32.mrf.mxu0
      %581 = vmatprep.mubr.f32.mxu0 0.0
      %582 = vmatmul.mubr.f32.gmra.mxu0 %v362
      %v583 = vpop.f32.mrf.mxu0
      %v584 = vadd.f32 0.0, %v583
      %v585 = vpop.f32.mrf.mxu0
      %586 = vmatprep.mubr.f32.mxu0 0.0
      %587 = vmatmul.mubr.f32.gmra.mxu0 %v365
      %v588 = vpop.f32.mrf.mxu0
      %v589 = vadd.f32 0.0, %v588
      %v590 = vpop.f32.mrf.mxu0
      %591 = vmatprep.mubr.f32.mxu0 0.0
      %592 = vmatmul.mubr.f32.gmra.mxu0 %v368
      %v593 = vpop.f32.mrf.mxu0
      %v594 = vadd.f32 0.0, %v593
      %v595 = vpop.f32.mrf.mxu0
      %596 = vmatprep.mubr.f32.mxu0 0.0
      %597 = vmatmul.mubr.f32.gmra.mxu0 %v371
      %v598 = vpop.f32.mrf.mxu0
      %v599 = vadd.f32 0.0, %v598
      %v600 = vpop.f32.mrf.mxu0
      %601 = vmatprep.mubr.f32.mxu0 0.0
      %602 = vmatmul.mubr.f32.gmra.mxu0 %v374
      %v603 = vpop.f32.mrf.mxu0
      %v604 = vadd.f32 0.0, %v603
      %v605 = vpop.f32.mrf.mxu0
      %606 = vmatprep.mubr.f32.mxu0 0.0
      %607 = vmatmul.mubr.f32.gmra.mxu0 %v377
      %v608 = vpop.f32.mrf.mxu0
      %v609 = vadd.f32 0.0, %v608
      %v610 = vpop.f32.mrf.mxu0
      %611 = vmatprep.mubr.f32.mxu0 0.0
      %612 = vmatmul.mubr.f32.gmra.mxu0 %v380
      %v613 = vpop.f32.mrf.mxu0
      %v614 = vadd.f32 0.0, %v613
      %v615 = vpop.f32.mrf.mxu0
      %616 = vmatprep.mubr.f32.mxu0 0.0
      %617 = vmatmul.mubr.f32.gmra.mxu0 %v383
      %v618 = vpop.f32.mrf.mxu0
      %v619 = vadd.f32 0.0, %v618
      %v620 = vpop.f32.mrf.mxu0
      %621 = vmatprep.mubr.f32.mxu0 0.0
      %622 = vmatmul.mubr.f32.gmra.mxu0 %v386
      %v623 = vpop.f32.mrf.mxu0
      %v624 = vadd.f32 0.0, %v623
      %v625 = vpop.f32.mrf.mxu0
      %626 = vmatprep.mubr.f32.mxu0 0.0
      %627 = vmatmul.mubr.f32.gmra.mxu0 %v389
      %v628 = vpop.f32.mrf.mxu0
      %v629 = vadd.f32 0.0, %v628
      %v630 = vpop.f32.mrf.mxu0
      %631 = vmatprep.mubr.f32.mxu0 0.0
      %632 = vmatmul.mubr.f32.gmra.mxu0 %v392
      %v633 = vpop.f32.mrf.mxu0
      %v634 = vadd.f32 0.0, %v633
      %v635 = vpop.f32.mrf.mxu0
      %636 = vmatprep.mubr.f32.mxu0 0.0
      %637 = vmatmul.mubr.f32.gmra.mxu0 %v395
      %v638 = vpop.f32.mrf.mxu0
      %v639 = vadd.f32 0.0, %v638
      %v640 = vpop.f32.mrf.mxu0
      %641 = vmatprep.mubr.f32.mxu0 0.0
      %642 = vmatmul.mubr.f32.gmra.mxu0 %v398
      %v643 = vpop.f32.mrf.mxu0
      %v644 = vadd.f32 0.0, %v643
      %v645 = vpop.f32.mrf.mxu0
      %646 = vmatprep.mubr.f32.mxu0 0.0
      %647 = vmatmul.mubr.f32.gmra.mxu0 %v401
      %v648 = vpop.f32.mrf.mxu0
      %v649 = vadd.f32 0.0, %v648
      %v650 = vpop.f32.mrf.mxu0
      %651 = vmatprep.mubr.f32.mxu0 0.0
      %652 = vmatmul.mubr.f32.gmra.mxu0 %v404
      %v653 = vpop.f32.mrf.mxu0
      %v654 = vadd.f32 0.0, %v653
      %v655 = vpop.f32.mrf.mxu0
      %656 = vmatprep.mubr.f32.mxu0 0.0
      %657 = vmatmul.mubr.f32.gmra.mxu0 %v407
      %v658 = vpop.f32.mrf.mxu0
      %v659 = vadd.f32 0.0, %v658
      %v660 = vpop.f32.mrf.mxu0
      %661 = vmatprep.mubr.f32.mxu0 0.0
      %662 = vmatmul.mubr.f32.gmra.mxu0 %v410
      %v663 = vpop.f32.mrf.mxu0
      %v664 = vadd.f32 0.0, %v663
      %v665 = vpop.f32.mrf.mxu0
      %666 = vmatprep.mubr.f32.mxu0 0.0
      %667 = vmatmul.mubr.f32.gmra.mxu0 %v413
      %v668 = vpop.f32.mrf.mxu0
      %v669 = vadd.f32 0.0, %v668
      %v670 = vpop.f32.mrf.mxu0
      %671 = vmatprep.mubr.f32.mxu0 0.0
      %672 = vmatmul.mubr.f32.gmra.mxu0 %v416
      %v673 = vpop.f32.mrf.mxu0
      %v674 = vadd.f32 0.0, %v673
      %v675 = vpop.f32.mrf.mxu0
      %676 = vmatprep.mubr.f32.mxu0 0.0
      %677 = vmatmul.mubr.f32.gmra.mxu0 %v419
      %v678 = vpop.f32.mrf.mxu0
      %v679 = vadd.f32 0.0, %v678
      %v680 = vpop.f32.mrf.mxu0
      %681 = vmatprep.mubr.f32.mxu0 0.0
      %682 = vmatmul.mubr.f32.gmra.mxu0 %v422
      %v683 = vpop.f32.mrf.mxu0
      %v684 = vadd.f32 0.0, %v683
      %v685 = vpop.f32.mrf.mxu0
      %686 = vmatprep.mubr.f32.mxu0 0.0
      %687 = vmatmul.mubr.f32.gmra.mxu0 %v425
      %v688 = vpop.f32.mrf.mxu0
      %v689 = vadd.f32 0.0, %v688
      %v690 = vpop.f32.mrf.mxu0
      %691 = vmatprep.mubr.f32.mxu0 0.0
      %692 = vmatmul.mubr.f32.gmra.mxu0 %v428
      %v693 = vpop.f32.mrf.mxu0
      %v694 = vadd.f32 0.0, %v693
      %v695 = vpop.f32.mrf.mxu0
      %696 = vmatprep.mubr.f32.mxu0 0.0
      %697 = vmatmul.mubr.f32.gmra.mxu0 %v431
      %v698 = vpop.f32.mrf.mxu0
      %v699 = vadd.f32 0.0, %v698
      %v700 = vpop.f32.mrf.mxu0
      %701 = vmatprep.mubr.f32.mxu0 0.0
      %702 = vmatmul.mubr.f32.gmra.mxu0 %v434
      %v703 = vpop.f32.mrf.mxu0
      %v704 = vadd.f32 0.0, %v703
      %v705 = vpop.f32.mrf.mxu0
      %706 = vmatprep.mubr.f32.mxu0 0.0
      %707 = vmatmul.mubr.f32.gmra.mxu0 %v437
      %v708 = vpop.f32.mrf.mxu0
      %v709 = vadd.f32 0.0, %v708
      %v710 = vpop.f32.mrf.mxu0
      %711 = vmatprep.mubr.f32.mxu0 0.0
      %712 = vmatmul.mubr.f32.gmra.mxu0 %v440
      %v713 = vpop.f32.mrf.mxu0
      %v714 = vadd.f32 0.0, %v713
      %v715 = vpop.f32.mrf.mxu0
      %716 = vmatprep.mubr.f32.mxu0 0.0
      %717 = vmatmul.mubr.f32.gmra.mxu0 %v443
      %v718 = vpop.f32.mrf.mxu0
      %v719 = vadd.f32 0.0, %v718
      %v720 = vpop.f32.mrf.mxu0
      %721 = vmatprep.mubr.f32.mxu0 0.0
      %722 = vmatmul.mubr.f32.gmra.mxu0 %v446
      %v723 = vpop.f32.mrf.mxu0
      %v724 = vadd.f32 0.0, %v723
      %v725 = vpop.f32.mrf.mxu0
      %726 = vmatprep.mubr.f32.mxu0 0.0
      %727 = vmatmul.mubr.f32.gmra.mxu0 %v449
      %v728 = vpop.f32.mrf.mxu0
      %v729 = vadd.f32 0.0, %v728
      %v730 = vpop.f32.mrf.mxu0
      %731 = vmatprep.mubr.f32.mxu0 0.0
      %732 = vmatmul.mubr.f32.gmra.mxu0 %v452
      %v733 = vpop.f32.mrf.mxu0
      %v734 = vadd.f32 0.0, %v733
      %v735 = vpop.f32.mrf.mxu0
      %736 = vmatprep.mubr.f32.mxu0 0.0
      %737 = vmatmul.mubr.f32.gmra.mxu0 %v455
      %v738 = vpop.f32.mrf.mxu0
      %v739 = vadd.f32 0.0, %v738
      %v740 = vpop.f32.mrf.mxu0
      %741 = vmatprep.mubr.f32.mxu0 0.0
      %742 = vmatmul.mubr.f32.gmra.mxu0 %v458
      %v743 = vpop.f32.mrf.mxu0
      %v744 = vadd.f32 0.0, %v743
      %v745 = vpop.f32.mrf.mxu0
      %746 = vmatprep.mubr.f32.mxu0 0.0
      %747 = vmatmul.mubr.f32.gmra.mxu0 %v461
      %v748 = vpop.f32.mrf.mxu0
      %v749 = vadd.f32 0.0, %v748
      %v750 = vpop.f32.mrf.mxu0
      %751 = vmatprep.mubr.f32.mxu0 0.0
      %752 = vmatmul.mubr.f32.gmra.mxu0 %v464
      %v753 = vpop.f32.mrf.mxu0
      %v754 = vadd.f32 0.0, %v753
      %v755 = vpop.f32.mrf.mxu0
      %756 = vmatprep.mubr.f32.mxu0 0.0
      %757 = vmatmul.mubr.f32.gmra.mxu0 %v467
      %v758 = vpop.f32.mrf.mxu0
      %v759 = vadd.f32 0.0, %v758
      %v760 = vpop.f32.mrf.mxu0
      %761 = vmatprep.mubr.f32.mxu0 0.0
      %762 = vmatmul.mubr.f32.gmra.mxu0 %v470
      %v763 = vpop.f32.mrf.mxu0
      %v764 = vadd.f32 0.0, %v763
      %v765 = vpop.f32.mrf.mxu0
      %766 = vmatprep.mubr.f32.mxu0 0.0
      %767 = vmatmul.mubr.f32.gmra.mxu0 %v473
      %v768 = vpop.f32.mrf.mxu0
      %v769 = vadd.f32 0.0, %v768
      %v770 = vpop.f32.mrf.mxu0
      %771 = vmatprep.mubr.f32.mxu0 0.0
      %772 = vmatmul.mubr.f32.gmra.mxu0 %v476
      %v773 = vpop.f32.mrf.mxu0
      %v774 = vadd.f32 0.0, %v773
      %v775 = vpop.f32.mrf.mxu0
      %776 = vmatprep.mubr.f32.mxu0 0.0
      %777 = vmatmul.mubr.f32.gmra.mxu0 %v479
      %v778 = vpop.f32.mrf.mxu0
      %v779 = vadd.f32 0.0, %v778
      %v780 = vpop.f32.mrf.mxu0
      %781 = vmatprep.mubr.f32.mxu0 0.0
      %782 = vmatmul.mubr.f32.gmra.mxu0 %v482
      %v783 = vpop.f32.mrf.mxu0
      %v784 = vadd.f32 0.0, %v783
      %v785 = vpop.f32.mrf.mxu0
      %786 = vmatprep.mubr.f32.mxu0 0.0
      %787 = vmatmul.mubr.f32.gmra.mxu0 %v485
      %v788 = vpop.f32.mrf.mxu0
      %v789 = vadd.f32 0.0, %v788
      %v790 = vpop.f32.mrf.mxu0
      %791 = vmatprep.mubr.f32.mxu0 0.0
      %792 = vmatmul.mubr.f32.gmra.mxu0 %v488
      %v793 = vpop.f32.mrf.mxu0
      %v794 = vadd.f32 0.0, %v793
      %v795 = vpop.f32.mrf.mxu0
      %796 = vmatprep.mubr.f32.mxu0 0.0
      %797 = vmatmul.mubr.f32.gmra.mxu0 %v491
      %v798 = vpop.f32.mrf.mxu0
      %v799 = vadd.f32 0.0, %v798
      %v800 = vpop.f32.mrf.mxu0
      %801 = vdwg.mxu0
      %vm802 = vcmask 64512
      %803 = vst.msk [vmem:[#allocation2] sm:$0xff] %vm802, %v564
      %804 = vst.msk [vmem:[#allocation2 + $0x8] sm:$0xff] %vm802, %v569
      %805 = vst.msk [vmem:[#allocation2 + $0x10] sm:$0xff] %vm802, %v574
      %806 = vst.msk [vmem:[#allocation2 + $0x18] sm:$0xff] %vm802, %v579
      %807 = vst.msk [vmem:[#allocation2 + $0x20] sm:$0xff] %vm802, %v584
      %808 = vst.msk [vmem:[#allocation2 + $0x28] sm:$0xff] %vm802, %v589
      %809 = vst.msk [vmem:[#allocation2 + $0x30] sm:$0xff] %vm802, %v594
      %810 = vst.msk [vmem:[#allocation2 + $0x38] sm:$0xff] %vm802, %v599
      %811 = vst.msk [vmem:[#allocation2 + $0x40] sm:$0xff] %vm802, %v604
      %812 = vst.msk [vmem:[#allocation2 + $0x48] sm:$0xff] %vm802, %v609
      %813 = vst.msk [vmem:[#allocation2 + $0x50] sm:$0xff] %vm802, %v614
      %814 = vst.msk [vmem:[#allocation2 + $0x58] sm:$0xff] %vm802, %v619
      %815 = vst.msk [vmem:[#allocation2 + $0x60] sm:$0xff] %vm802, %v624
      %816 = vst.msk [vmem:[#allocation2 + $0x68] sm:$0xff] %vm802, %v629
      %817 = vst.msk [vmem:[#allocation2 + $0x70] sm:$0xff] %vm802, %v634
      %818 = vst.msk [vmem:[#allocation2 + $0x78] sm:$0xff] %vm802, %v639
      %819 = vst.msk [vmem:[#allocation2 + $0x80] sm:$0xff] %vm802, %v644
      %820 = vst.msk [vmem:[#allocation2 + $0x88] sm:$0xff] %vm802, %v649
      %821 = vst.msk [vmem:[#allocation2 + $0x90] sm:$0xff] %vm802, %v654
      %822 = vst.msk [vmem:[#allocation2 + $0x98] sm:$0xff] %vm802, %v659
      %823 = vst.msk [vmem:[#allocation2 + $0xa0] sm:$0xff] %vm802, %v664
      %824 = vst.msk [vmem:[#allocation2 + $0xa8] sm:$0xff] %vm802, %v669
      %825 = vst.msk [vmem:[#allocation2 + $0xb0] sm:$0xff] %vm802, %v674
      %826 = vst.msk [vmem:[#allocation2 + $0xb8] sm:$0xff] %vm802, %v679
      %827 = vst.msk [vmem:[#allocation2 + $0xc0] sm:$0xff] %vm802, %v684
      %828 = vst.msk [vmem:[#allocation2 + $0xc8] sm:$0xff] %vm802, %v689
      %829 = vst.msk [vmem:[#allocation2 + $0xd0] sm:$0xff] %vm802, %v694
      %830 = vst.msk [vmem:[#allocation2 + $0xd8] sm:$0xff] %vm802, %v699
      %831 = vst.msk [vmem:[#allocation2 + $0xe0] sm:$0xff] %vm802, %v704
      %832 = vst.msk [vmem:[#allocation2 + $0xe8] sm:$0xff] %vm802, %v709
      %833 = vst.msk [vmem:[#allocation2 + $0xf0] sm:$0xff] %vm802, %v714
      %834 = vst.msk [vmem:[#allocation2 + $0xf8] sm:$0xff] %vm802, %v719
      %835 = vst.msk [vmem:[#allocation2 + $0x100] sm:$0xff] %vm802, %v724
      %836 = vst.msk [vmem:[#allocation2 + $0x108] sm:$0xff] %vm802, %v729
      %837 = vst.msk [vmem:[#allocation2 + $0x110] sm:$0xff] %vm802, %v734
      %838 = vst.msk [vmem:[#allocation2 + $0x118] sm:$0xff] %vm802, %v739
      %839 = vst.msk [vmem:[#allocation2 + $0x120] sm:$0xff] %vm802, %v744
      %840 = vst.msk [vmem:[#allocation2 + $0x128] sm:$0xff] %vm802, %v749
      %841 = vst.msk [vmem:[#allocation2 + $0x130] sm:$0xff] %vm802, %v754
      %842 = vst.msk [vmem:[#allocation2 + $0x138] sm:$0xff] %vm802, %v759
      %843 = vst.msk [vmem:[#allocation2 + $0x140] sm:$0xff] %vm802, %v764
      %844 = vst.msk [vmem:[#allocation2 + $0x148] sm:$0xff] %vm802, %v769
      %845 = vst.msk [vmem:[#allocation2 + $0x150] sm:$0xff] %vm802, %v774
      %846 = vst.msk [vmem:[#allocation2 + $0x158] sm:$0xff] %vm802, %v779
      %847 = vst.msk [vmem:[#allocation2 + $0x160] sm:$0xff] %vm802, %v784
      %848 = vst.msk [vmem:[#allocation2 + $0x168] sm:$0xff] %vm802, %v789
      %849 = vst.msk [vmem:[#allocation2 + $0x170] sm:$0xff] %vm802, %v794
      %850 = vst.msk [vmem:[#allocation2 + $0x178] sm:$0xff] %vm802, %v799
      %s851 = scalar_lea.vmem %s2, 12
      %v852 = vld [vmem:[%s851] sm:$0xf]
      %v854 = vsel %vm493, %v852, 0
      %856 = vmatprep.subr.mxu0 0.0
      %857 = vmatpush1.msra.mxu0 0.0
      %858 = vmatprep.subr.mxu0 0.0
      %859 = vmatpush1.msra.mxu0 0.0
      %860 = vmatprep.subr.mxu0 0.0
      %861 = vmatpush1.msra.mxu0 0.0
      %862 = vmatprep.subr.mxu0 0.0
      %863 = vmatpush1.msra.mxu0 0.0
      %864 = vmatprep.subr.mxu0 0.0
      %865 = vmatpush1.msra.mxu0 0.0
      %866 = vmatprep.subr.mxu0 0.0
      %867 = vmatpush1.msra.mxu0 0.0
      %868 = vmatprep.subr.mxu0 0.0
      %869 = vmatpush1.msra.mxu0 0.0
      %870 = vmatprep.subr.mxu0 0.0
      %871 = vmatpush1.msra.mxu0 0.0
      %872 = vmatprep.subr.mxu0 0.0
      %873 = vmatpush1.msra.mxu0 0.0
      %874 = vmatprep.subr.mxu0 0.0
      %875 = vmatpush1.msra.mxu0 0.0
      %876 = vmatprep.subr.mxu0 0.0
      %877 = vmatpush1.msra.mxu0 0.0
      %878 = vmatprep.subr.mxu0 0.0
      %879 = vmatpush1.msra.mxu0 0.0
      %880 = vmatprep.subr.mxu0 0.0
      %881 = vmatpush1.msra.mxu0 0.0
      %882 = vmatprep.subr.mxu0 0.0
      %883 = vmatpush1.msra.mxu0 0.0
      %884 = vmatprep.subr.mxu0 0.0
      %885 = vmatpush1.msra.mxu0 0.0
      %886 = vmatprep.subr.mxu0 0.0
      %887 = vmatpush1.msra.mxu0 %v854
      %888 = vmatprep.subr.mxu0 0.0
      %889 = vmatpush2.msra.mxu0 0.0
      %890 = vmatprep.subr.mxu0 0.0
      %891 = vmatpush2.msra.mxu0 0.0
      %892 = vmatprep.subr.mxu0 0.0
      %893 = vmatpush2.msra.mxu0 0.0
      %894 = vmatprep.subr.mxu0 0.0
      %895 = vmatpush2.msra.mxu0 0.0
      %896 = vmatprep.subr.mxu0 0.0
      %897 = vmatpush2.msra.mxu0 0.0
      %898 = vmatprep.subr.mxu0 0.0
      %899 = vmatpush2.msra.mxu0 0.0
      %900 = vmatprep.subr.mxu0 0.0
      %901 = vmatpush2.msra.mxu0 0.0
      %902 = vmatprep.subr.mxu0 0.0
      %903 = vmatpush2.msra.mxu0 0.0
      %904 = vmatprep.subr.mxu0 0.0
      %905 = vmatpush2.msra.mxu0 0.0
      %906 = vmatprep.subr.mxu0 0.0
      %907 = vmatpush2.msra.mxu0 0.0
      %908 = vmatprep.subr.mxu0 0.0
      %909 = vmatpush2.msra.mxu0 0.0
      %910 = vmatprep.subr.mxu0 0.0
      %911 = vmatpush2.msra.mxu0 0.0
      %912 = vmatprep.subr.mxu0 0.0
      %913 = vmatpush2.msra.mxu0 0.0
      %914 = vmatprep.subr.mxu0 0.0
      %915 = vmatpush2.msra.mxu0 0.0
      %916 = vmatprep.subr.mxu0 0.0
      %917 = vmatpush2.msra.mxu0 0.0
      %918 = vmatprep.subr.mxu0 0.0
      %919 = vmatpush2.msra.mxu0 0.0
      %920 = vmatprep.mubr.f32.mxu0 0.0
      %921 = vmatmul.mubr.f32.gmra.mxu0 %v359
      %v922 = vpop.f32.mrf.mxu0
      %v923 = vadd.f32 0.0, %v922
      %v924 = vpop.f32.mrf.mxu0
      %925 = vmatprep.mubr.f32.mxu0 0.0
      %926 = vmatmul.mubr.f32.gmra.mxu0 %v362
      %v927 = vpop.f32.mrf.mxu0
      %v928 = vadd.f32 0.0, %v927
      %v929 = vpop.f32.mrf.mxu0
      %930 = vmatprep.mubr.f32.mxu0 0.0
      %931 = vmatmul.mubr.f32.gmra.mxu0 %v365
      %v932 = vpop.f32.mrf.mxu0
      %v933 = vadd.f32 0.0, %v932
      %v934 = vpop.f32.mrf.mxu0
      %935 = vmatprep.mubr.f32.mxu0 0.0
      %936 = vmatmul.mubr.f32.gmra.mxu0 %v368
      %v937 = vpop.f32.mrf.mxu0
      %v938 = vadd.f32 0.0, %v937
      %v939 = vpop.f32.mrf.mxu0
      %940 = vmatprep.mubr.f32.mxu0 0.0
      %941 = vmatmul.mubr.f32.gmra.mxu0 %v371
      %v942 = vpop.f32.mrf.mxu0
      %v943 = vadd.f32 0.0, %v942
      %v944 = vpop.f32.mrf.mxu0
      %945 = vmatprep.mubr.f32.mxu0 0.0
      %946 = vmatmul.mubr.f32.gmra.mxu0 %v374
      %v947 = vpop.f32.mrf.mxu0
      %v948 = vadd.f32 0.0, %v947
      %v949 = vpop.f32.mrf.mxu0
      %950 = vmatprep.mubr.f32.mxu0 0.0
      %951 = vmatmul.mubr.f32.gmra.mxu0 %v377
      %v952 = vpop.f32.mrf.mxu0
      %v953 = vadd.f32 0.0, %v952
      %v954 = vpop.f32.mrf.mxu0
      %955 = vmatprep.mubr.f32.mxu0 0.0
      %956 = vmatmul.mubr.f32.gmra.mxu0 %v380
      %v957 = vpop.f32.mrf.mxu0
      %v958 = vadd.f32 0.0, %v957
      %v959 = vpop.f32.mrf.mxu0
      %960 = vmatprep.mubr.f32.mxu0 0.0
      %961 = vmatmul.mubr.f32.gmra.mxu0 %v383
      %v962 = vpop.f32.mrf.mxu0
      %v963 = vadd.f32 0.0, %v962
      %v964 = vpop.f32.mrf.mxu0
      %965 = vmatprep.mubr.f32.mxu0 0.0
      %966 = vmatmul.mubr.f32.gmra.mxu0 %v386
      %v967 = vpop.f32.mrf.mxu0
      %v968 = vadd.f32 0.0, %v967
      %v969 = vpop.f32.mrf.mxu0
      %970 = vmatprep.mubr.f32.mxu0 0.0
      %971 = vmatmul.mubr.f32.gmra.mxu0 %v389
      %v972 = vpop.f32.mrf.mxu0
      %v973 = vadd.f32 0.0, %v972
      %v974 = vpop.f32.mrf.mxu0
      %975 = vmatprep.mubr.f32.mxu0 0.0
      %976 = vmatmul.mubr.f32.gmra.mxu0 %v392
      %v977 = vpop.f32.mrf.mxu0
      %v978 = vadd.f32 0.0, %v977
      %v979 = vpop.f32.mrf.mxu0
      %980 = vmatprep.mubr.f32.mxu0 0.0
      %981 = vmatmul.mubr.f32.gmra.mxu0 %v395
      %v982 = vpop.f32.mrf.mxu0
      %v983 = vadd.f32 0.0, %v982
      %v984 = vpop.f32.mrf.mxu0
      %985 = vmatprep.mubr.f32.mxu0 0.0
      %986 = vmatmul.mubr.f32.gmra.mxu0 %v398
      %v987 = vpop.f32.mrf.mxu0
      %v988 = vadd.f32 0.0, %v987
      %v989 = vpop.f32.mrf.mxu0
      %990 = vmatprep.mubr.f32.mxu0 0.0
      %991 = vmatmul.mubr.f32.gmra.mxu0 %v401
      %v992 = vpop.f32.mrf.mxu0
      %v993 = vadd.f32 0.0, %v992
      %v994 = vpop.f32.mrf.mxu0
      %995 = vmatprep.mubr.f32.mxu0 0.0
      %996 = vmatmul.mubr.f32.gmra.mxu0 %v404
      %v997 = vpop.f32.mrf.mxu0
      %v998 = vadd.f32 0.0, %v997
      %v999 = vpop.f32.mrf.mxu0
      %1000 = vmatprep.mubr.f32.mxu0 0.0
      %1001 = vmatmul.mubr.f32.gmra.mxu0 %v407
      %v1002 = vpop.f32.mrf.mxu0
      %v1003 = vadd.f32 0.0, %v1002
      %v1004 = vpop.f32.mrf.mxu0
      %1005 = vmatprep.mubr.f32.mxu0 0.0
      %1006 = vmatmul.mubr.f32.gmra.mxu0 %v410
      %v1007 = vpop.f32.mrf.mxu0
      %v1008 = vadd.f32 0.0, %v1007
      %v1009 = vpop.f32.mrf.mxu0
      %1010 = vmatprep.mubr.f32.mxu0 0.0
      %1011 = vmatmul.mubr.f32.gmra.mxu0 %v413
      %v1012 = vpop.f32.mrf.mxu0
      %v1013 = vadd.f32 0.0, %v1012
      %v1014 = vpop.f32.mrf.mxu0
      %1015 = vmatprep.mubr.f32.mxu0 0.0
      %1016 = vmatmul.mubr.f32.gmra.mxu0 %v416
      %v1017 = vpop.f32.mrf.mxu0
      %v1018 = vadd.f32 0.0, %v1017
      %v1019 = vpop.f32.mrf.mxu0
      %1020 = vmatprep.mubr.f32.mxu0 0.0
      %1021 = vmatmul.mubr.f32.gmra.mxu0 %v419
      %v1022 = vpop.f32.mrf.mxu0
      %v1023 = vadd.f32 0.0, %v1022
      %v1024 = vpop.f32.mrf.mxu0
      %1025 = vmatprep.mubr.f32.mxu0 0.0
      %1026 = vmatmul.mubr.f32.gmra.mxu0 %v422
      %v1027 = vpop.f32.mrf.mxu0
      %v1028 = vadd.f32 0.0, %v1027
      %v1029 = vpop.f32.mrf.mxu0
      %1030 = vmatprep.mubr.f32.mxu0 0.0
      %1031 = vmatmul.mubr.f32.gmra.mxu0 %v425
      %v1032 = vpop.f32.mrf.mxu0
      %v1033 = vadd.f32 0.0, %v1032
      %v1034 = vpop.f32.mrf.mxu0
      %1035 = vmatprep.mubr.f32.mxu0 0.0
      %1036 = vmatmul.mubr.f32.gmra.mxu0 %v428
      %v1037 = vpop.f32.mrf.mxu0
      %v1038 = vadd.f32 0.0, %v1037
      %v1039 = vpop.f32.mrf.mxu0
      %1040 = vmatprep.mubr.f32.mxu0 0.0
      %1041 = vmatmul.mubr.f32.gmra.mxu0 %v431
      %v1042 = vpop.f32.mrf.mxu0
      %v1043 = vadd.f32 0.0, %v1042
      %v1044 = vpop.f32.mrf.mxu0
      %1045 = vmatprep.mubr.f32.mxu0 0.0
      %1046 = vmatmul.mubr.f32.gmra.mxu0 %v434
      %v1047 = vpop.f32.mrf.mxu0
      %v1048 = vadd.f32 0.0, %v1047
      %v1049 = vpop.f32.mrf.mxu0
      %1050 = vmatprep.mubr.f32.mxu0 0.0
      %1051 = vmatmul.mubr.f32.gmra.mxu0 %v437
      %v1052 = vpop.f32.mrf.mxu0
      %v1053 = vadd.f32 0.0, %v1052
      %v1054 = vpop.f32.mrf.mxu0
      %1055 = vmatprep.mubr.f32.mxu0 0.0
      %1056 = vmatmul.mubr.f32.gmra.mxu0 %v440
      %v1057 = vpop.f32.mrf.mxu0
      %v1058 = vadd.f32 0.0, %v1057
      %v1059 = vpop.f32.mrf.mxu0
      %1060 = vmatprep.mubr.f32.mxu0 0.0
      %1061 = vmatmul.mubr.f32.gmra.mxu0 %v443
      %v1062 = vpop.f32.mrf.mxu0
      %v1063 = vadd.f32 0.0, %v1062
      %v1064 = vpop.f32.mrf.mxu0
      %1065 = vmatprep.mubr.f32.mxu0 0.0
      %1066 = vmatmul.mubr.f32.gmra.mxu0 %v446
      %v1067 = vpop.f32.mrf.mxu0
      %v1068 = vadd.f32 0.0, %v1067
      %v1069 = vpop.f32.mrf.mxu0
      %1070 = vmatprep.mubr.f32.mxu0 0.0
      %1071 = vmatmul.mubr.f32.gmra.mxu0 %v449
      %v1072 = vpop.f32.mrf.mxu0
      %v1073 = vadd.f32 0.0, %v1072
      %v1074 = vpop.f32.mrf.mxu0
      %1075 = vmatprep.mubr.f32.mxu0 0.0
      %1076 = vmatmul.mubr.f32.gmra.mxu0 %v452
      %v1077 = vpop.f32.mrf.mxu0
      %v1078 = vadd.f32 0.0, %v1077
      %v1079 = vpop.f32.mrf.mxu0
      %1080 = vmatprep.mubr.f32.mxu0 0.0
      %1081 = vmatmul.mubr.f32.gmra.mxu0 %v455
      %v1082 = vpop.f32.mrf.mxu0
      %v1083 = vadd.f32 0.0, %v1082
      %v1084 = vpop.f32.mrf.mxu0
      %1085 = vmatprep.mubr.f32.mxu0 0.0
      %1086 = vmatmul.mubr.f32.gmra.mxu0 %v458
      %v1087 = vpop.f32.mrf.mxu0
      %v1088 = vadd.f32 0.0, %v1087
      %v1089 = vpop.f32.mrf.mxu0
      %1090 = vmatprep.mubr.f32.mxu0 0.0
      %1091 = vmatmul.mubr.f32.gmra.mxu0 %v461
      %v1092 = vpop.f32.mrf.mxu0
      %v1093 = vadd.f32 0.0, %v1092
      %v1094 = vpop.f32.mrf.mxu0
      %1095 = vmatprep.mubr.f32.mxu0 0.0
      %1096 = vmatmul.mubr.f32.gmra.mxu0 %v464
      %v1097 = vpop.f32.mrf.mxu0
      %v1098 = vadd.f32 0.0, %v1097
      %v1099 = vpop.f32.mrf.mxu0
      %1100 = vmatprep.mubr.f32.mxu0 0.0
      %1101 = vmatmul.mubr.f32.gmra.mxu0 %v467
      %v1102 = vpop.f32.mrf.mxu0
      %v1103 = vadd.f32 0.0, %v1102
      %v1104 = vpop.f32.mrf.mxu0
      %1105 = vmatprep.mubr.f32.mxu0 0.0
      %1106 = vmatmul.mubr.f32.gmra.mxu0 %v470
      %v1107 = vpop.f32.mrf.mxu0
      %v1108 = vadd.f32 0.0, %v1107
      %v1109 = vpop.f32.mrf.mxu0
      %1110 = vmatprep.mubr.f32.mxu0 0.0
      %1111 = vmatmul.mubr.f32.gmra.mxu0 %v473
      %v1112 = vpop.f32.mrf.mxu0
      %v1113 = vadd.f32 0.0, %v1112
      %v1114 = vpop.f32.mrf.mxu0
      %1115 = vmatprep.mubr.f32.mxu0 0.0
      %1116 = vmatmul.mubr.f32.gmra.mxu0 %v476
      %v1117 = vpop.f32.mrf.mxu0
      %v1118 = vadd.f32 0.0, %v1117
      %v1119 = vpop.f32.mrf.mxu0
      %1120 = vmatprep.mubr.f32.mxu0 0.0
      %1121 = vmatmul.mubr.f32.gmra.mxu0 %v479
      %v1122 = vpop.f32.mrf.mxu0
      %v1123 = vadd.f32 0.0, %v1122
      %v1124 = vpop.f32.mrf.mxu0
      %1125 = vmatprep.mubr.f32.mxu0 0.0
      %1126 = vmatmul.mubr.f32.gmra.mxu0 %v482
      %v1127 = vpop.f32.mrf.mxu0
      %v1128 = vadd.f32 0.0, %v1127
      %v1129 = vpop.f32.mrf.mxu0
      %1130 = vmatprep.mubr.f32.mxu0 0.0
      %1131 = vmatmul.mubr.f32.gmra.mxu0 %v485
      %v1132 = vpop.f32.mrf.mxu0
      %v1133 = vadd.f32 0.0, %v1132
      %v1134 = vpop.f32.mrf.mxu0
      %1135 = vmatprep.mubr.f32.mxu0 0.0
      %1136 = vmatmul.mubr.f32.gmra.mxu0 %v488
      %v1137 = vpop.f32.mrf.mxu0
      %v1138 = vadd.f32 0.0, %v1137
      %v1139 = vpop.f32.mrf.mxu0
      %1140 = vmatprep.mubr.f32.mxu0 0.0
      %1141 = vmatmul.mubr.f32.gmra.mxu0 %v491
      %v1142 = vpop.f32.mrf.mxu0
      %v1143 = vadd.f32 0.0, %v1142
      %v1144 = vpop.f32.mrf.mxu0
      %1145 = vdwg.mxu0
      %v1146 = vld [vmem:[#allocation2] sm:$0xff]
      %v1147 = vld [vmem:[#allocation2 + $0x8] sm:$0xff]
      %v1148 = vld [vmem:[#allocation2 + $0x10] sm:$0xff]
      %v1149 = vld [vmem:[#allocation2 + $0x18] sm:$0xff]
      %v1150 = vld [vmem:[#allocation2 + $0x20] sm:$0xff]
      %v1151 = vld [vmem:[#allocation2 + $0x28] sm:$0xff]
      %v1152 = vld [vmem:[#allocation2 + $0x30] sm:$0xff]
      %v1153 = vld [vmem:[#allocation2 + $0x38] sm:$0xff]
      %v1154 = vld [vmem:[#allocation2 + $0x40] sm:$0xff]
      %v1155 = vld [vmem:[#allocation2 + $0x48] sm:$0xff]
      %v1156 = vld [vmem:[#allocation2 + $0x50] sm:$0xff]
      %v1157 = vld [vmem:[#allocation2 + $0x58] sm:$0xff]
      %v1158 = vld [vmem:[#allocation2 + $0x60] sm:$0xff]
      %v1159 = vld [vmem:[#allocation2 + $0x68] sm:$0xff]
      %v1160 = vld [vmem:[#allocation2 + $0x70] sm:$0xff]
      %v1161 = vld [vmem:[#allocation2 + $0x78] sm:$0xff]
      %v1162 = vld [vmem:[#allocation2 + $0x80] sm:$0xff]
      %v1163 = vld [vmem:[#allocation2 + $0x88] sm:$0xff]
      %v1164 = vld [vmem:[#allocation2 + $0x90] sm:$0xff]
      %v1165 = vld [vmem:[#allocation2 + $0x98] sm:$0xff]
      %v1166 = vld [vmem:[#allocation2 + $0xa0] sm:$0xff]
      %v1167 = vld [vmem:[#allocation2 + $0xa8] sm:$0xff]
      %v1168 = vld [vmem:[#allocation2 + $0xb0] sm:$0xff]
      %v1169 = vld [vmem:[#allocation2 + $0xb8] sm:$0xff]
      %v1170 = vld [vmem:[#allocation2 + $0xc0] sm:$0xff]
      %v1171 = vld [vmem:[#allocation2 + $0xc8] sm:$0xff]
      %v1172 = vld [vmem:[#allocation2 + $0xd0] sm:$0xff]
      %v1173 = vld [vmem:[#allocation2 + $0xd8] sm:$0xff]
      %v1174 = vld [vmem:[#allocation2 + $0xe0] sm:$0xff]
      %v1175 = vld [vmem:[#allocation2 + $0xe8] sm:$0xff]
      %v1176 = vld [vmem:[#allocation2 + $0xf0] sm:$0xff]
      %v1177 = vld [vmem:[#allocation2 + $0xf8] sm:$0xff]
      %v1178 = vld [vmem:[#allocation2 + $0x100] sm:$0xff]
      %v1179 = vld [vmem:[#allocation2 + $0x108] sm:$0xff]
      %v1180 = vld [vmem:[#allocation2 + $0x110] sm:$0xff]
      %v1181 = vld [vmem:[#allocation2 + $0x118] sm:$0xff]
      %v1182 = vld [vmem:[#allocation2 + $0x120] sm:$0xff]
      %v1183 = vld [vmem:[#allocation2 + $0x128] sm:$0xff]
      %v1184 = vld [vmem:[#allocation2 + $0x130] sm:$0xff]
      %v1185 = vld [vmem:[#allocation2 + $0x138] sm:$0xff]
      %v1186 = vld [vmem:[#allocation2 + $0x140] sm:$0xff]
      %v1187 = vld [vmem:[#allocation2 + $0x148] sm:$0xff]
      %v1188 = vld [vmem:[#allocation2 + $0x150] sm:$0xff]
      %v1189 = vld [vmem:[#allocation2 + $0x158] sm:$0xff]
      %v1190 = vld [vmem:[#allocation2 + $0x160] sm:$0xff]
      %v1191 = vadd.f32 %v1146, %v923
      %v1192 = vadd.f32 %v1147, %v928
      %v1193 = vadd.f32 %v1148, %v933
      %v1194 = vadd.f32 %v1149, %v938
      %v1195 = vadd.f32 %v1150, %v943
      %v1196 = vadd.f32 %v1151, %v948
      %v1197 = vadd.f32 %v1152, %v953
      %v1198 = vadd.f32 %v1153, %v958
      %v1199 = vadd.f32 %v1154, %v963
      %v1200 = vadd.f32 %v1155, %v968
      %v1201 = vadd.f32 %v1156, %v973
      %v1202 = vadd.f32 %v1157, %v978
      %v1203 = vadd.f32 %v1158, %v983
      %v1204 = vadd.f32 %v1159, %v988
      %v1205 = vadd.f32 %v1160, %v993
      %v1206 = vadd.f32 %v1161, %v998
      %v1207 = vadd.f32 %v1162, %v1003
      %v1208 = vadd.f32 %v1163, %v1008
      %v1209 = vadd.f32 %v1164, %v1013
      %v1210 = vadd.f32 %v1165, %v1018
      %v1211 = vadd.f32 %v1166, %v1023
      %v1212 = vadd.f32 %v1167, %v1028
      %v1213 = vadd.f32 %v1168, %v1033
      %v1214 = vadd.f32 %v1169, %v1038
      %v1215 = vadd.f32 %v1170, %v1043
      %v1216 = vadd.f32 %v1171, %v1048
      %v1217 = vadd.f32 %v1172, %v1053
      %v1218 = vadd.f32 %v1173, %v1058
      %v1219 = vadd.f32 %v1174, %v1063
      %v1220 = vadd.f32 %v1175, %v1068
      %v1221 = vadd.f32 %v1176, %v1073
      %v1222 = vadd.f32 %v1177, %v1078
      %v1223 = vadd.f32 %v1178, %v1083
      %v1224 = vadd.f32 %v1179, %v1088
      %v1225 = vadd.f32 %v1180, %v1093
      %v1226 = vadd.f32 %v1181, %v1098
      %v1227 = vadd.f32 %v1182, %v1103
      %v1228 = vadd.f32 %v1183, %v1108
      %v1229 = vadd.f32 %v1184, %v1113
      %v1230 = vadd.f32 %v1185, %v1118
      %v1231 = vadd.f32 %v1186, %v1123
      %v1232 = vadd.f32 %v1187, %v1128
      %v1233 = vadd.f32 %v1188, %v1133
      %v1234 = vadd.f32 %v1189, %v1138
      %v1235 = vadd.f32 %v1190, %v1143
      %1236 = vst.msk [vmem:[#allocation2] sm:$0xff] %vm802, %v1191
      %1237 = vst.msk [vmem:[#allocation2 + $0x8] sm:$0xff] %vm802, %v1192
      %1238 = vst.msk [vmem:[#allocation2 + $0x10] sm:$0xff] %vm802, %v1193
      %1239 = vst.msk [vmem:[#allocation2 + $0x18] sm:$0xff] %vm802, %v1194
      %1240 = vst.msk [vmem:[#allocation2 + $0x20] sm:$0xff] %vm802, %v1195
      %1241 = vst.msk [vmem:[#allocation2 + $0x28] sm:$0xff] %vm802, %v1196
      %1242 = vst.msk [vmem:[#allocation2 + $0x30] sm:$0xff] %vm802, %v1197
      %1243 = vst.msk [vmem:[#allocation2 + $0x38] sm:$0xff] %vm802, %v1198
      %1244 = vst.msk [vmem:[#allocation2 + $0x40] sm:$0xff] %vm802, %v1199
      %1245 = vst.msk [vmem:[#allocation2 + $0x48] sm:$0xff] %vm802, %v1200
      %1246 = vst.msk [vmem:[#allocation2 + $0x50] sm:$0xff] %vm802, %v1201
      %1247 = vst.msk [vmem:[#allocation2 + $0x58] sm:$0xff] %vm802, %v1202
      %1248 = vst.msk [vmem:[#allocation2 + $0x60] sm:$0xff] %vm802, %v1203
      %1249 = vst.msk [vmem:[#allocation2 + $0x68] sm:$0xff] %vm802, %v1204
      %1250 = vst.msk [vmem:[#allocation2 + $0x70] sm:$0xff] %vm802, %v1205
      %1251 = vst.msk [vmem:[#allocation2 + $0x78] sm:$0xff] %vm802, %v1206
      %1252 = vst.msk [vmem:[#allocation2 + $0x80] sm:$0xff] %vm802, %v1207
      %1253 = vst.msk [vmem:[#allocation2 + $0x88] sm:$0xff] %vm802, %v1208
      %1254 = vst.msk [vmem:[#allocation2 + $0x90] sm:$0xff] %vm802, %v1209
      %1255 = vst.msk [vmem:[#allocation2 + $0x98] sm:$0xff] %vm802, %v1210
      %1256 = vst.msk [vmem:[#allocation2 + $0xa0] sm:$0xff] %vm802, %v1211
      %1257 = vst.msk [vmem:[#allocation2 + $0xa8] sm:$0xff] %vm802, %v1212
      %1258 = vst.msk [vmem:[#allocation2 + $0xb0] sm:$0xff] %vm802, %v1213
      %1259 = vst.msk [vmem:[#allocation2 + $0xb8] sm:$0xff] %vm802, %v1214
      %1260 = vst.msk [vmem:[#allocation2 + $0xc0] sm:$0xff] %vm802, %v1215
      %1261 = vst.msk [vmem:[#allocation2 + $0xc8] sm:$0xff] %vm802, %v1216
      %1262 = vst.msk [vmem:[#allocation2 + $0xd0] sm:$0xff] %vm802, %v1217
      %1263 = vst.msk [vmem:[#allocation2 + $0xd8] sm:$0xff] %vm802, %v1218
      %1264 = vst.msk [vmem:[#allocation2 + $0xe0] sm:$0xff] %vm802, %v1219
      %1265 = vst.msk [vmem:[#allocation2 + $0xe8] sm:$0xff] %vm802, %v1220
      %1266 = vst.msk [vmem:[#allocation2 + $0xf0] sm:$0xff] %vm802, %v1221
      %1267 = vst.msk [vmem:[#allocation2 + $0xf8] sm:$0xff] %vm802, %v1222
      %1268 = vst.msk [vmem:[#allocation2 + $0x100] sm:$0xff] %vm802, %v1223
      %1269 = vst.msk [vmem:[#allocation2 + $0x108] sm:$0xff] %vm802, %v1224
      %1270 = vst.msk [vmem:[#allocation2 + $0x110] sm:$0xff] %vm802, %v1225
      %1271 = vst.msk [vmem:[#allocation2 + $0x118] sm:$0xff] %vm802, %v1226
      %1272 = vst.msk [vmem:[#allocation2 + $0x120] sm:$0xff] %vm802, %v1227
      %1273 = vst.msk [vmem:[#allocation2 + $0x128] sm:$0xff] %vm802, %v1228
      %1274 = vst.msk [vmem:[#allocation2 + $0x130] sm:$0xff] %vm802, %v1229
      %1275 = vst.msk [vmem:[#allocation2 + $0x138] sm:$0xff] %vm802, %v1230
      %1276 = vst.msk [vmem:[#allocation2 + $0x140] sm:$0xff] %vm802, %v1231
      %1277 = vst.msk [vmem:[#allocation2 + $0x148] sm:$0xff] %vm802, %v1232
      %1278 = vst.msk [vmem:[#allocation2 + $0x150] sm:$0xff] %vm802, %v1233
      %1279 = vst.msk [vmem:[#allocation2 + $0x158] sm:$0xff] %vm802, %v1234
      %1280 = vst.msk [vmem:[#allocation2 + $0x160] sm:$0xff] %vm802, %v1235
      %v1282 = vsel %vm348, %v341, 0
      %v1285 = vsel %vm348, %v342, 0
      %v1288 = vsel %vm348, %v343, 0
      %1290 = vmatprep.subr.mxu0 0.0
      %1291 = vmatpush1.msra.mxu0 0.0
      %1292 = vmatprep.subr.mxu0 0.0
      %1293 = vmatpush1.msra.mxu0 0.0
      %1294 = vmatprep.subr.mxu0 0.0
      %1295 = vmatpush1.msra.mxu0 0.0
      %1296 = vmatprep.subr.mxu0 0.0
      %1297 = vmatpush1.msra.mxu0 0.0
      %1298 = vmatprep.subr.mxu0 0.0
      %1299 = vmatpush1.msra.mxu0 0.0
      %1300 = vmatprep.subr.mxu0 0.0
      %1301 = vmatpush1.msra.mxu0 0.0
      %1302 = vmatprep.subr.mxu0 0.0
      %1303 = vmatpush1.msra.mxu0 0.0
      %1304 = vmatprep.subr.mxu0 0.0
      %1305 = vmatpush1.msra.mxu0 0.0
      %1306 = vmatprep.subr.mxu0 0.0
      %1307 = vmatpush1.msra.mxu0 0.0
      %1308 = vmatprep.subr.mxu0 0.0
      %1309 = vmatpush1.msra.mxu0 0.0
      %1310 = vmatprep.subr.mxu0 0.0
      %1311 = vmatpush1.msra.mxu0 0.0
      %1312 = vmatprep.subr.mxu0 0.0
      %1313 = vmatpush1.msra.mxu0 0.0
      %1314 = vmatprep.subr.mxu0 0.0
      %1315 = vmatpush1.msra.mxu0 0.0
      %1316 = vmatprep.subr.mxu0 0.0
      %1317 = vmatpush1.msra.mxu0 0.0
      %1318 = vmatprep.subr.mxu0 0.0
      %1319 = vmatpush1.msra.mxu0 0.0
      %1320 = vmatprep.subr.mxu0 0.0
      %1321 = vmatpush1.msra.mxu0 %v854
      %1322 = vmatprep.subr.mxu0 0.0
      %1323 = vmatpush2.msra.mxu0 0.0
      %1324 = vmatprep.subr.mxu0 0.0
      %1325 = vmatpush2.msra.mxu0 0.0
      %1326 = vmatprep.subr.mxu0 0.0
      %1327 = vmatpush2.msra.mxu0 0.0
      %1328 = vmatprep.subr.mxu0 0.0
      %1329 = vmatpush2.msra.mxu0 0.0
      %1330 = vmatprep.subr.mxu0 0.0
      %1331 = vmatpush2.msra.mxu0 0.0
      %1332 = vmatprep.subr.mxu0 0.0
      %1333 = vmatpush2.msra.mxu0 0.0
      %1334 = vmatprep.subr.mxu0 0.0
      %1335 = vmatpush2.msra.mxu0 0.0
      %1336 = vmatprep.subr.mxu0 0.0
      %1337 = vmatpush2.msra.mxu0 0.0
      %1338 = vmatprep.subr.mxu0 0.0
      %1339 = vmatpush2.msra.mxu0 0.0
      %1340 = vmatprep.subr.mxu0 0.0
      %1341 = vmatpush2.msra.mxu0 0.0
      %1342 = vmatprep.subr.mxu0 0.0
      %1343 = vmatpush2.msra.mxu0 0.0
      %1344 = vmatprep.subr.mxu0 0.0
      %1345 = vmatpush2.msra.mxu0 0.0
      %1346 = vmatprep.subr.mxu0 0.0
      %1347 = vmatpush2.msra.mxu0 0.0
      %1348 = vmatprep.subr.mxu0 0.0
      %1349 = vmatpush2.msra.mxu0 0.0
      %1350 = vmatprep.subr.mxu0 0.0
      %1351 = vmatpush2.msra.mxu0 0.0
      %1352 = vmatprep.subr.mxu0 0.0
      %1353 = vmatpush2.msra.mxu0 0.0
      %1354 = vmatprep.mubr.f32.mxu0 0.0
      %1355 = vmatmul.mubr.f32.gmra.mxu0 %v1282
      %v1356 = vpop.f32.mrf.mxu0
      %v1357 = vadd.f32 0.0, %v1356
      %v1358 = vpop.f32.mrf.mxu0
      %1359 = vmatprep.mubr.f32.mxu0 0.0
      %1360 = vmatmul.mubr.f32.gmra.mxu0 %v1285
      %v1361 = vpop.f32.mrf.mxu0
      %v1362 = vadd.f32 0.0, %v1361
      %v1363 = vpop.f32.mrf.mxu0
      %1364 = vmatprep.mubr.f32.mxu0 0.0
      %1365 = vmatmul.mubr.f32.gmra.mxu0 %v1288
      %v1366 = vpop.f32.mrf.mxu0
      %v1367 = vadd.f32 0.0, %v1366
      %v1368 = vpop.f32.mrf.mxu0
      %1369 = vdwg.mxu0
      %v1370 = vld [vmem:[#allocation2 + $0x168] sm:$0xff]
      %v1371 = vld [vmem:[#allocation2 + $0x170] sm:$0xff]
      %v1372 = vld [vmem:[#allocation2 + $0x178] sm:$0xff]
      %v1373 = vadd.f32 %v1370, %v1357
      %v1374 = vadd.f32 %v1371, %v1362
      %v1375 = vadd.f32 %v1372, %v1367
      %1376 = vst.msk [vmem:[#allocation2 + $0x168] sm:$0xff] %vm802, %v1373
      %1377 = vst.msk [vmem:[#allocation2 + $0x170] sm:$0xff] %vm802, %v1374
      %1378 = vst.msk [vmem:[#allocation2 + $0x178] sm:$0xff] %vm802, %v1375
      %s1379 = scalar_lea.vmem %s2, 24
      %v1380 = vld [vmem:[%s1379] sm:$0xf]
      %v1382 = vsel %vm493, %v1380, 0
      %1384 = vmatprep.subr.mxu0 0.0
      %1385 = vmatpush1.msra.mxu0 0.0
      %1386 = vmatprep.subr.mxu0 0.0
      %1387 = vmatpush1.msra.mxu0 0.0
      %1388 = vmatprep.subr.mxu0 0.0
      %1389 = vmatpush1.msra.mxu0 0.0
      %1390 = vmatprep.subr.mxu0 0.0
      %1391 = vmatpush1.msra.mxu0 0.0
      %1392 = vmatprep.subr.mxu0 0.0
      %1393 = vmatpush1.msra.mxu0 0.0
      %1394 = vmatprep.subr.mxu0 0.0
      %1395 = vmatpush1.msra.mxu0 0.0
      %1396 = vmatprep.subr.mxu0 0.0
      %1397 = vmatpush1.msra.mxu0 0.0
      %1398 = vmatprep.subr.mxu0 0.0
      %1399 = vmatpush1.msra.mxu0 0.0
      %1400 = vmatprep.subr.mxu0 0.0
      %1401 = vmatpush1.msra.mxu0 0.0
      %1402 = vmatprep.subr.mxu0 0.0
      %1403 = vmatpush1.msra.mxu0 0.0
      %1404 = vmatprep.subr.mxu0 0.0
      %1405 = vmatpush1.msra.mxu0 0.0
      %1406 = vmatprep.subr.mxu0 0.0
      %1407 = vmatpush1.msra.mxu0 0.0
      %1408 = vmatprep.subr.mxu0 0.0
      %1409 = vmatpush1.msra.mxu0 0.0
      %1410 = vmatprep.subr.mxu0 0.0
      %1411 = vmatpush1.msra.mxu0 0.0
      %1412 = vmatprep.subr.mxu0 0.0
      %1413 = vmatpush1.msra.mxu0 0.0
      %1414 = vmatprep.subr.mxu0 0.0
      %1415 = vmatpush1.msra.mxu0 %v1382
      %1416 = vmatprep.subr.mxu0 0.0
      %1417 = vmatpush2.msra.mxu0 0.0
      %1418 = vmatprep.subr.mxu0 0.0
      %1419 = vmatpush2.msra.mxu0 0.0
      %1420 = vmatprep.subr.mxu0 0.0
      %1421 = vmatpush2.msra.mxu0 0.0
      %1422 = vmatprep.subr.mxu0 0.0
      %1423 = vmatpush2.msra.mxu0 0.0
      %1424 = vmatprep.subr.mxu0 0.0
      %1425 = vmatpush2.msra.mxu0 0.0
      %1426 = vmatprep.subr.mxu0 0.0
      %1427 = vmatpush2.msra.mxu0 0.0
      %1428 = vmatprep.subr.mxu0 0.0
      %1429 = vmatpush2.msra.mxu0 0.0
      %1430 = vmatprep.subr.mxu0 0.0
      %1431 = vmatpush2.msra.mxu0 0.0
      %1432 = vmatprep.subr.mxu0 0.0
      %1433 = vmatpush2.msra.mxu0 0.0
      %1434 = vmatprep.subr.mxu0 0.0
      %1435 = vmatpush2.msra.mxu0 0.0
      %1436 = vmatprep.subr.mxu0 0.0
      %1437 = vmatpush2.msra.mxu0 0.0
      %1438 = vmatprep.subr.mxu0 0.0
      %1439 = vmatpush2.msra.mxu0 0.0
      %1440 = vmatprep.subr.mxu0 0.0
      %1441 = vmatpush2.msra.mxu0 0.0
      %1442 = vmatprep.subr.mxu0 0.0
      %1443 = vmatpush2.msra.mxu0 0.0
      %1444 = vmatprep.subr.mxu0 0.0
      %1445 = vmatpush2.msra.mxu0 0.0
      %1446 = vmatprep.subr.mxu0 0.0
      %1447 = vmatpush2.msra.mxu0 0.0
      %1448 = vmatprep.mubr.f32.mxu0 0.0
      %1449 = vmatmul.mubr.f32.gmra.mxu0 %v368
      %v1450 = vpop.f32.mrf.mxu0
      %v1451 = vadd.f32 0.0, %v1450
      %v1452 = vpop.f32.mrf.mxu0
      %1453 = vmatprep.mubr.f32.mxu0 0.0
      %1454 = vmatmul.mubr.f32.gmra.mxu0 %v371
      %v1455 = vpop.f32.mrf.mxu0
      %v1456 = vadd.f32 0.0, %v1455
      %v1457 = vpop.f32.mrf.mxu0
      %1458 = vmatprep.mubr.f32.mxu0 0.0
      %1459 = vmatmul.mubr.f32.gmra.mxu0 %v374
      %v1460 = vpop.f32.mrf.mxu0
      %v1461 = vadd.f32 0.0, %v1460
      %v1462 = vpop.f32.mrf.mxu0
      %1463 = vmatprep.mubr.f32.mxu0 0.0
      %1464 = vmatmul.mubr.f32.gmra.mxu0 %v377
      %v1465 = vpop.f32.mrf.mxu0
      %v1466 = vadd.f32 0.0, %v1465
      %v1467 = vpop.f32.mrf.mxu0
      %1468 = vmatprep.mubr.f32.mxu0 0.0
      %1469 = vmatmul.mubr.f32.gmra.mxu0 %v380
      %v1470 = vpop.f32.mrf.mxu0
      %v1471 = vadd.f32 0.0, %v1470
      %v1472 = vpop.f32.mrf.mxu0
      %1473 = vmatprep.mubr.f32.mxu0 0.0
      %1474 = vmatmul.mubr.f32.gmra.mxu0 %v383
      %v1475 = vpop.f32.mrf.mxu0
      %v1476 = vadd.f32 0.0, %v1475
      %v1477 = vpop.f32.mrf.mxu0
      %1478 = vmatprep.mubr.f32.mxu0 0.0
      %1479 = vmatmul.mubr.f32.gmra.mxu0 %v386
      %v1480 = vpop.f32.mrf.mxu0
      %v1481 = vadd.f32 0.0, %v1480
      %v1482 = vpop.f32.mrf.mxu0
      %1483 = vmatprep.mubr.f32.mxu0 0.0
      %1484 = vmatmul.mubr.f32.gmra.mxu0 %v389
      %v1485 = vpop.f32.mrf.mxu0
      %v1486 = vadd.f32 0.0, %v1485
      %v1487 = vpop.f32.mrf.mxu0
      %1488 = vmatprep.mubr.f32.mxu0 0.0
      %1489 = vmatmul.mubr.f32.gmra.mxu0 %v392
      %v1490 = vpop.f32.mrf.mxu0
      %v1491 = vadd.f32 0.0, %v1490
      %v1492 = vpop.f32.mrf.mxu0
      %1493 = vmatprep.mubr.f32.mxu0 0.0
      %1494 = vmatmul.mubr.f32.gmra.mxu0 %v395
      %v1495 = vpop.f32.mrf.mxu0
      %v1496 = vadd.f32 0.0, %v1495
      %v1497 = vpop.f32.mrf.mxu0
      %1498 = vmatprep.mubr.f32.mxu0 0.0
      %1499 = vmatmul.mubr.f32.gmra.mxu0 %v398
      %v1500 = vpop.f32.mrf.mxu0
      %v1501 = vadd.f32 0.0, %v1500
      %v1502 = vpop.f32.mrf.mxu0
      %1503 = vmatprep.mubr.f32.mxu0 0.0
      %1504 = vmatmul.mubr.f32.gmra.mxu0 %v401
      %v1505 = vpop.f32.mrf.mxu0
      %v1506 = vadd.f32 0.0, %v1505
      %v1507 = vpop.f32.mrf.mxu0
      %1508 = vmatprep.mubr.f32.mxu0 0.0
      %1509 = vmatmul.mubr.f32.gmra.mxu0 %v404
      %v1510 = vpop.f32.mrf.mxu0
      %v1511 = vadd.f32 0.0, %v1510
      %v1512 = vpop.f32.mrf.mxu0
      %1513 = vmatprep.mubr.f32.mxu0 0.0
      %1514 = vmatmul.mubr.f32.gmra.mxu0 %v407
      %v1515 = vpop.f32.mrf.mxu0
      %v1516 = vadd.f32 0.0, %v1515
      %v1517 = vpop.f32.mrf.mxu0
      %1518 = vmatprep.mubr.f32.mxu0 0.0
      %1519 = vmatmul.mubr.f32.gmra.mxu0 %v410
      %v1520 = vpop.f32.mrf.mxu0
      %v1521 = vadd.f32 0.0, %v1520
      %v1522 = vpop.f32.mrf.mxu0
      %1523 = vmatprep.mubr.f32.mxu0 0.0
      %1524 = vmatmul.mubr.f32.gmra.mxu0 %v413
      %v1525 = vpop.f32.mrf.mxu0
      %v1526 = vadd.f32 0.0, %v1525
      %v1527 = vpop.f32.mrf.mxu0
      %1528 = vmatprep.mubr.f32.mxu0 0.0
      %1529 = vmatmul.mubr.f32.gmra.mxu0 %v416
      %v1530 = vpop.f32.mrf.mxu0
      %v1531 = vadd.f32 0.0, %v1530
      %v1532 = vpop.f32.mrf.mxu0
      %1533 = vmatprep.mubr.f32.mxu0 0.0
      %1534 = vmatmul.mubr.f32.gmra.mxu0 %v419
      %v1535 = vpop.f32.mrf.mxu0
      %v1536 = vadd.f32 0.0, %v1535
      %v1537 = vpop.f32.mrf.mxu0
      %1538 = vmatprep.mubr.f32.mxu0 0.0
      %1539 = vmatmul.mubr.f32.gmra.mxu0 %v422
      %v1540 = vpop.f32.mrf.mxu0
      %v1541 = vadd.f32 0.0, %v1540
      %v1542 = vpop.f32.mrf.mxu0
      %1543 = vmatprep.mubr.f32.mxu0 0.0
      %1544 = vmatmul.mubr.f32.gmra.mxu0 %v425
      %v1545 = vpop.f32.mrf.mxu0
      %v1546 = vadd.f32 0.0, %v1545
      %v1547 = vpop.f32.mrf.mxu0
      %1548 = vmatprep.mubr.f32.mxu0 0.0
      %1549 = vmatmul.mubr.f32.gmra.mxu0 %v428
      %v1550 = vpop.f32.mrf.mxu0
      %v1551 = vadd.f32 0.0, %v1550
      %v1552 = vpop.f32.mrf.mxu0
      %1553 = vmatprep.mubr.f32.mxu0 0.0
      %1554 = vmatmul.mubr.f32.gmra.mxu0 %v431
      %v1555 = vpop.f32.mrf.mxu0
      %v1556 = vadd.f32 0.0, %v1555
      %v1557 = vpop.f32.mrf.mxu0
      %1558 = vmatprep.mubr.f32.mxu0 0.0
      %1559 = vmatmul.mubr.f32.gmra.mxu0 %v434
      %v1560 = vpop.f32.mrf.mxu0
      %v1561 = vadd.f32 0.0, %v1560
      %v1562 = vpop.f32.mrf.mxu0
      %1563 = vmatprep.mubr.f32.mxu0 0.0
      %1564 = vmatmul.mubr.f32.gmra.mxu0 %v437
      %v1565 = vpop.f32.mrf.mxu0
      %v1566 = vadd.f32 0.0, %v1565
      %v1567 = vpop.f32.mrf.mxu0
      %1568 = vmatprep.mubr.f32.mxu0 0.0
      %1569 = vmatmul.mubr.f32.gmra.mxu0 %v440
      %v1570 = vpop.f32.mrf.mxu0
      %v1571 = vadd.f32 0.0, %v1570
      %v1572 = vpop.f32.mrf.mxu0
      %1573 = vmatprep.mubr.f32.mxu0 0.0
      %1574 = vmatmul.mubr.f32.gmra.mxu0 %v443
      %v1575 = vpop.f32.mrf.mxu0
      %v1576 = vadd.f32 0.0, %v1575
      %v1577 = vpop.f32.mrf.mxu0
      %1578 = vmatprep.mubr.f32.mxu0 0.0
      %1579 = vmatmul.mubr.f32.gmra.mxu0 %v446
      %v1580 = vpop.f32.mrf.mxu0
      %v1581 = vadd.f32 0.0, %v1580
      %v1582 = vpop.f32.mrf.mxu0
      %1583 = vmatprep.mubr.f32.mxu0 0.0
      %1584 = vmatmul.mubr.f32.gmra.mxu0 %v449
      %v1585 = vpop.f32.mrf.mxu0
      %v1586 = vadd.f32 0.0, %v1585
      %v1587 = vpop.f32.mrf.mxu0
      %1588 = vmatprep.mubr.f32.mxu0 0.0
      %1589 = vmatmul.mubr.f32.gmra.mxu0 %v452
      %v1590 = vpop.f32.mrf.mxu0
      %v1591 = vadd.f32 0.0, %v1590
      %v1592 = vpop.f32.mrf.mxu0
      %1593 = vmatprep.mubr.f32.mxu0 0.0
      %1594 = vmatmul.mubr.f32.gmra.mxu0 %v455
      %v1595 = vpop.f32.mrf.mxu0
      %v1596 = vadd.f32 0.0, %v1595
      %v1597 = vpop.f32.mrf.mxu0
      %1598 = vmatprep.mubr.f32.mxu0 0.0
      %1599 = vmatmul.mubr.f32.gmra.mxu0 %v458
      %v1600 = vpop.f32.mrf.mxu0
      %v1601 = vadd.f32 0.0, %v1600
      %v1602 = vpop.f32.mrf.mxu0
      %1603 = vmatprep.mubr.f32.mxu0 0.0
      %1604 = vmatmul.mubr.f32.gmra.mxu0 %v461
      %v1605 = vpop.f32.mrf.mxu0
      %v1606 = vadd.f32 0.0, %v1605
      %v1607 = vpop.f32.mrf.mxu0
      %1608 = vmatprep.mubr.f32.mxu0 0.0
      %1609 = vmatmul.mubr.f32.gmra.mxu0 %v464
      %v1610 = vpop.f32.mrf.mxu0
      %v1611 = vadd.f32 0.0, %v1610
      %v1612 = vpop.f32.mrf.mxu0
      %1613 = vmatprep.mubr.f32.mxu0 0.0
      %1614 = vmatmul.mubr.f32.gmra.mxu0 %v467
      %v1615 = vpop.f32.mrf.mxu0
      %v1616 = vadd.f32 0.0, %v1615
      %v1617 = vpop.f32.mrf.mxu0
      %1618 = vmatprep.mubr.f32.mxu0 0.0
      %1619 = vmatmul.mubr.f32.gmra.mxu0 %v470
      %v1620 = vpop.f32.mrf.mxu0
      %v1621 = vadd.f32 0.0, %v1620
      %v1622 = vpop.f32.mrf.mxu0
      %1623 = vmatprep.mubr.f32.mxu0 0.0
      %1624 = vmatmul.mubr.f32.gmra.mxu0 %v473
      %v1625 = vpop.f32.mrf.mxu0
      %v1626 = vadd.f32 0.0, %v1625
      %v1627 = vpop.f32.mrf.mxu0
      %1628 = vmatprep.mubr.f32.mxu0 0.0
      %1629 = vmatmul.mubr.f32.gmra.mxu0 %v476
      %v1630 = vpop.f32.mrf.mxu0
      %v1631 = vadd.f32 0.0, %v1630
      %v1632 = vpop.f32.mrf.mxu0
      %1633 = vmatprep.mubr.f32.mxu0 0.0
      %1634 = vmatmul.mubr.f32.gmra.mxu0 %v479
      %v1635 = vpop.f32.mrf.mxu0
      %v1636 = vadd.f32 0.0, %v1635
      %v1637 = vpop.f32.mrf.mxu0
      %1638 = vmatprep.mubr.f32.mxu0 0.0
      %1639 = vmatmul.mubr.f32.gmra.mxu0 %v482
      %v1640 = vpop.f32.mrf.mxu0
      %v1641 = vadd.f32 0.0, %v1640
      %v1642 = vpop.f32.mrf.mxu0
      %1643 = vmatprep.mubr.f32.mxu0 0.0
      %1644 = vmatmul.mubr.f32.gmra.mxu0 %v485
      %v1645 = vpop.f32.mrf.mxu0
      %v1646 = vadd.f32 0.0, %v1645
      %v1647 = vpop.f32.mrf.mxu0
      %1648 = vmatprep.mubr.f32.mxu0 0.0
      %1649 = vmatmul.mubr.f32.gmra.mxu0 %v488
      %v1650 = vpop.f32.mrf.mxu0
      %v1651 = vadd.f32 0.0, %v1650
      %v1652 = vpop.f32.mrf.mxu0
      %1653 = vmatprep.mubr.f32.mxu0 0.0
      %1654 = vmatmul.mubr.f32.gmra.mxu0 %v491
      %v1655 = vpop.f32.mrf.mxu0
      %v1656 = vadd.f32 0.0, %v1655
      %v1657 = vpop.f32.mrf.mxu0
      %1658 = vdwg.mxu0
      %v1659 = vld [vmem:[#allocation2] sm:$0xff]
      %v1660 = vld [vmem:[#allocation2 + $0x8] sm:$0xff]
      %v1661 = vld [vmem:[#allocation2 + $0x10] sm:$0xff]
      %v1662 = vld [vmem:[#allocation2 + $0x18] sm:$0xff]
      %v1663 = vld [vmem:[#allocation2 + $0x20] sm:$0xff]
      %v1664 = vld [vmem:[#allocation2 + $0x28] sm:$0xff]
      %v1665 = vld [vmem:[#allocation2 + $0x30] sm:$0xff]
      %v1666 = vld [vmem:[#allocation2 + $0x38] sm:$0xff]
      %v1667 = vld [vmem:[#allocation2 + $0x40] sm:$0xff]
      %v1668 = vld [vmem:[#allocation2 + $0x48] sm:$0xff]
      %v1669 = vld [vmem:[#allocation2 + $0x50] sm:$0xff]
      %v1670 = vld [vmem:[#allocation2 + $0x58] sm:$0xff]
      %v1671 = vld [vmem:[#allocation2 + $0x60] sm:$0xff]
      %v1672 = vld [vmem:[#allocation2 + $0x68] sm:$0xff]
      %v1673 = vld [vmem:[#allocation2 + $0x70] sm:$0xff]
      %v1674 = vld [vmem:[#allocation2 + $0x78] sm:$0xff]
      %v1675 = vld [vmem:[#allocation2 + $0x80] sm:$0xff]
      %v1676 = vld [vmem:[#allocation2 + $0x88] sm:$0xff]
      %v1677 = vld [vmem:[#allocation2 + $0x90] sm:$0xff]
      %v1678 = vld [vmem:[#allocation2 + $0x98] sm:$0xff]
      %v1679 = vld [vmem:[#allocation2 + $0xa0] sm:$0xff]
      %v1680 = vld [vmem:[#allocation2 + $0xa8] sm:$0xff]
      %v1681 = vld [vmem:[#allocation2 + $0xb0] sm:$0xff]
      %v1682 = vld [vmem:[#allocation2 + $0xb8] sm:$0xff]
      %v1683 = vld [vmem:[#allocation2 + $0xc0] sm:$0xff]
      %v1684 = vld [vmem:[#allocation2 + $0xc8] sm:$0xff]
      %v1685 = vld [vmem:[#allocation2 + $0xd0] sm:$0xff]
      %v1686 = vld [vmem:[#allocation2 + $0xd8] sm:$0xff]
      %v1687 = vld [vmem:[#allocation2 + $0xe0] sm:$0xff]
      %v1688 = vld [vmem:[#allocation2 + $0xe8] sm:$0xff]
      %v1689 = vld [vmem:[#allocation2 + $0xf0] sm:$0xff]
      %v1690 = vld [vmem:[#allocation2 + $0xf8] sm:$0xff]
      %v1691 = vld [vmem:[#allocation2 + $0x100] sm:$0xff]
      %v1692 = vld [vmem:[#allocation2 + $0x108] sm:$0xff]
      %v1693 = vld [vmem:[#allocation2 + $0x110] sm:$0xff]
      %v1694 = vld [vmem:[#allocation2 + $0x118] sm:$0xff]
      %v1695 = vld [vmem:[#allocation2 + $0x120] sm:$0xff]
      %v1696 = vld [vmem:[#allocation2 + $0x128] sm:$0xff]
      %v1697 = vld [vmem:[#allocation2 + $0x130] sm:$0xff]
      %v1698 = vld [vmem:[#allocation2 + $0x138] sm:$0xff]
      %v1699 = vld [vmem:[#allocation2 + $0x140] sm:$0xff]
      %v1700 = vld [vmem:[#allocation2 + $0x148] sm:$0xff]
      %v1701 = vadd.f32 %v1659, %v1451
      %v1702 = vadd.f32 %v1660, %v1456
      %v1703 = vadd.f32 %v1661, %v1461
      %v1704 = vadd.f32 %v1662, %v1466
      %v1705 = vadd.f32 %v1663, %v1471
      %v1706 = vadd.f32 %v1664, %v1476
      %v1707 = vadd.f32 %v1665, %v1481
      %v1708 = vadd.f32 %v1666, %v1486
      %v1709 = vadd.f32 %v1667, %v1491
      %v1710 = vadd.f32 %v1668, %v1496
      %v1711 = vadd.f32 %v1669, %v1501
      %v1712 = vadd.f32 %v1670, %v1506
      %v1713 = vadd.f32 %v1671, %v1511
      %v1714 = vadd.f32 %v1672, %v1516
      %v1715 = vadd.f32 %v1673, %v1521
      %v1716 = vadd.f32 %v1674, %v1526
      %v1717 = vadd.f32 %v1675, %v1531
      %v1718 = vadd.f32 %v1676, %v1536
      %v1719 = vadd.f32 %v1677, %v1541
      %v1720 = vadd.f32 %v1678, %v1546
      %v1721 = vadd.f32 %v1679, %v1551
      %v1722 = vadd.f32 %v1680, %v1556
      %v1723 = vadd.f32 %v1681, %v1561
      %v1724 = vadd.f32 %v1682, %v1566
      %v1725 = vadd.f32 %v1683, %v1571
      %v1726 = vadd.f32 %v1684, %v1576
      %v1727 = vadd.f32 %v1685, %v1581
      %v1728 = vadd.f32 %v1686, %v1586
      %v1729 = vadd.f32 %v1687, %v1591
      %v1730 = vadd.f32 %v1688, %v1596
      %v1731 = vadd.f32 %v1689, %v1601
      %v1732 = vadd.f32 %v1690, %v1606
      %v1733 = vadd.f32 %v1691, %v1611
      %v1734 = vadd.f32 %v1692, %v1616
      %v1735 = vadd.f32 %v1693, %v1621
      %v1736 = vadd.f32 %v1694, %v1626
      %v1737 = vadd.f32 %v1695, %v1631
      %v1738 = vadd.f32 %v1696, %v1636
      %v1739 = vadd.f32 %v1697, %v1641
      %v1740 = vadd.f32 %v1698, %v1646
      %v1741 = vadd.f32 %v1699, %v1651
      %v1742 = vadd.f32 %v1700, %v1656
      %1743 = vst.msk [vmem:[#allocation2] sm:$0xff] %vm802, %v1701
      %1744 = vst.msk [vmem:[#allocation2 + $0x8] sm:$0xff] %vm802, %v1702
      %1745 = vst.msk [vmem:[#allocation2 + $0x10] sm:$0xff] %vm802, %v1703
      %1746 = vst.msk [vmem:[#allocation2 + $0x18] sm:$0xff] %vm802, %v1704
      %1747 = vst.msk [vmem:[#allocation2 + $0x20] sm:$0xff] %vm802, %v1705
      %1748 = vst.msk [vmem:[#allocation2 + $0x28] sm:$0xff] %vm802, %v1706
      %1749 = vst.msk [vmem:[#allocation2 + $0x30] sm:$0xff] %vm802, %v1707
      %1750 = vst.msk [vmem:[#allocation2 + $0x38] sm:$0xff] %vm802, %v1708
      %1751 = vst.msk [vmem:[#allocation2 + $0x40] sm:$0xff] %vm802, %v1709
      %1752 = vst.msk [vmem:[#allocation2 + $0x48] sm:$0xff] %vm802, %v1710
      %1753 = vst.msk [vmem:[#allocation2 + $0x50] sm:$0xff] %vm802, %v1711
      %1754 = vst.msk [vmem:[#allocation2 + $0x58] sm:$0xff] %vm802, %v1712
      %1755 = vst.msk [vmem:[#allocation2 + $0x60] sm:$0xff] %vm802, %v1713
      %1756 = vst.msk [vmem:[#allocation2 + $0x68] sm:$0xff] %vm802, %v1714
      %1757 = vst.msk [vmem:[#allocation2 + $0x70] sm:$0xff] %vm802, %v1715
      %1758 = vst.msk [vmem:[#allocation2 + $0x78] sm:$0xff] %vm802, %v1716
      %1759 = vst.msk [vmem:[#allocation2 + $0x80] sm:$0xff] %vm802, %v1717
      %1760 = vst.msk [vmem:[#allocation2 + $0x88] sm:$0xff] %vm802, %v1718
      %1761 = vst.msk [vmem:[#allocation2 + $0x90] sm:$0xff] %vm802, %v1719
      %1762 = vst.msk [vmem:[#allocation2 + $0x98] sm:$0xff] %vm802, %v1720
      %1763 = vst.msk [vmem:[#allocation2 + $0xa0] sm:$0xff] %vm802, %v1721
      %1764 = vst.msk [vmem:[#allocation2 + $0xa8] sm:$0xff] %vm802, %v1722
      %1765 = vst.msk [vmem:[#allocation2 + $0xb0] sm:$0xff] %vm802, %v1723
      %1766 = vst.msk [vmem:[#allocation2 + $0xb8] sm:$0xff] %vm802, %v1724
      %1767 = vst.msk [vmem:[#allocation2 + $0xc0] sm:$0xff] %vm802, %v1725
      %1768 = vst.msk [vmem:[#allocation2 + $0xc8] sm:$0xff] %vm802, %v1726
      %1769 = vst.msk [vmem:[#allocation2 + $0xd0] sm:$0xff] %vm802, %v1727
      %1770 = vst.msk [vmem:[#allocation2 + $0xd8] sm:$0xff] %vm802, %v1728
      %1771 = vst.msk [vmem:[#allocation2 + $0xe0] sm:$0xff] %vm802, %v1729
      %1772 = vst.msk [vmem:[#allocation2 + $0xe8] sm:$0xff] %vm802, %v1730
      %1773 = vst.msk [vmem:[#allocation2 + $0xf0] sm:$0xff] %vm802, %v1731
      %1774 = vst.msk [vmem:[#allocation2 + $0xf8] sm:$0xff] %vm802, %v1732
      %1775 = vst.msk [vmem:[#allocation2 + $0x100] sm:$0xff] %vm802, %v1733
      %1776 = vst.msk [vmem:[#allocation2 + $0x108] sm:$0xff] %vm802, %v1734
      %1777 = vst.msk [vmem:[#allocation2 + $0x110] sm:$0xff] %vm802, %v1735
      %1778 = vst.msk [vmem:[#allocation2 + $0x118] sm:$0xff] %vm802, %v1736
      %1779 = vst.msk [vmem:[#allocation2 + $0x120] sm:$0xff] %vm802, %v1737
      %1780 = vst.msk [vmem:[#allocation2 + $0x128] sm:$0xff] %vm802, %v1738
      %1781 = vst.msk [vmem:[#allocation2 + $0x130] sm:$0xff] %vm802, %v1739
      %1782 = vst.msk [vmem:[#allocation2 + $0x138] sm:$0xff] %vm802, %v1740
      %1783 = vst.msk [vmem:[#allocation2 + $0x140] sm:$0xff] %vm802, %v1741
      %1784 = vst.msk [vmem:[#allocation2 + $0x148] sm:$0xff] %vm802, %v1742
      %v1786 = vsel %vm348, %v344, 0
      %v1789 = vsel %vm348, %v345, 0
      %v1792 = vsel %vm348, %v346, 0
      %1794 = vmatprep.subr.mxu0 0.0
      %1795 = vmatpush1.msra.mxu0 0.0
      %1796 = vmatprep.subr.mxu0 0.0
      %1797 = vmatpush1.msra.mxu0 0.0
      %1798 = vmatprep.subr.mxu0 0.0
      %1799 = vmatpush1.msra.mxu0 0.0
      %1800 = vmatprep.subr.mxu0 0.0
      %1801 = vmatpush1.msra.mxu0 0.0
      %1802 = vmatprep.subr.mxu0 0.0
      %1803 = vmatpush1.msra.mxu0 0.0
      %1804 = vmatprep.subr.mxu0 0.0
      %1805 = vmatpush1.msra.mxu0 0.0
      %1806 = vmatprep.subr.mxu0 0.0
      %1807 = vmatpush1.msra.mxu0 0.0
      %1808 = vmatprep.subr.mxu0 0.0
      %1809 = vmatpush1.msra.mxu0 0.0
      %1810 = vmatprep.subr.mxu0 0.0
      %1811 = vmatpush1.msra.mxu0 0.0
      %1812 = vmatprep.subr.mxu0 0.0
      %1813 = vmatpush1.msra.mxu0 0.0
      %1814 = vmatprep.subr.mxu0 0.0
      %1815 = vmatpush1.msra.mxu0 0.0
      %1816 = vmatprep.subr.mxu0 0.0
      %1817 = vmatpush1.msra.mxu0 0.0
      %1818 = vmatprep.subr.mxu0 0.0
      %1819 = vmatpush1.msra.mxu0 0.0
      %1820 = vmatprep.subr.mxu0 0.0
      %1821 = vmatpush1.msra.mxu0 0.0
      %1822 = vmatprep.subr.mxu0 0.0
      %1823 = vmatpush1.msra.mxu0 0.0
      %1824 = vmatprep.subr.mxu0 0.0
      %1825 = vmatpush1.msra.mxu0 %v1382
      %1826 = vmatprep.subr.mxu0 0.0
      %1827 = vmatpush2.msra.mxu0 0.0
      %1828 = vmatprep.subr.mxu0 0.0
      %1829 = vmatpush2.msra.mxu0 0.0
      %1830 = vmatprep.subr.mxu0 0.0
      %1831 = vmatpush2.msra.mxu0 0.0
      %1832 = vmatprep.subr.mxu0 0.0
      %1833 = vmatpush2.msra.mxu0 0.0
      %1834 = vmatprep.subr.mxu0 0.0
      %1835 = vmatpush2.msra.mxu0 0.0
      %1836 = vmatprep.subr.mxu0 0.0
      %1837 = vmatpush2.msra.mxu0 0.0
      %1838 = vmatprep.subr.mxu0 0.0
      %1839 = vmatpush2.msra.mxu0 0.0
      %1840 = vmatprep.subr.mxu0 0.0
      %1841 = vmatpush2.msra.mxu0 0.0
      %1842 = vmatprep.subr.mxu0 0.0
      %1843 = vmatpush2.msra.mxu0 0.0
      %1844 = vmatprep.subr.mxu0 0.0
      %1845 = vmatpush2.msra.mxu0 0.0
      %1846 = vmatprep.subr.mxu0 0.0
      %1847 = vmatpush2.msra.mxu0 0.0
      %1848 = vmatprep.subr.mxu0 0.0
      %1849 = vmatpush2.msra.mxu0 0.0
      %1850 = vmatprep.subr.mxu0 0.0
      %1851 = vmatpush2.msra.mxu0 0.0
      %1852 = vmatprep.subr.mxu0 0.0
      %1853 = vmatpush2.msra.mxu0 0.0
      %1854 = vmatprep.subr.mxu0 0.0
      %1855 = vmatpush2.msra.mxu0 0.0
      %1856 = vmatprep.subr.mxu0 0.0
      %1857 = vmatpush2.msra.mxu0 0.0
      %1858 = vmatprep.mubr.f32.mxu0 0.0
      %1859 = vmatmul.mubr.f32.gmra.mxu0 %v1282
      %v1860 = vpop.f32.mrf.mxu0
      %v1861 = vadd.f32 0.0, %v1860
      %v1862 = vpop.f32.mrf.mxu0
      %1863 = vmatprep.mubr.f32.mxu0 0.0
      %1864 = vmatmul.mubr.f32.gmra.mxu0 %v1285
      %v1865 = vpop.f32.mrf.mxu0
      %v1866 = vadd.f32 0.0, %v1865
      %v1867 = vpop.f32.mrf.mxu0
      %1868 = vmatprep.mubr.f32.mxu0 0.0
      %1869 = vmatmul.mubr.f32.gmra.mxu0 %v1288
      %v1870 = vpop.f32.mrf.mxu0
      %v1871 = vadd.f32 0.0, %v1870
      %v1872 = vpop.f32.mrf.mxu0
      %1873 = vmatprep.mubr.f32.mxu0 0.0
      %1874 = vmatmul.mubr.f32.gmra.mxu0 %v1786
      %v1875 = vpop.f32.mrf.mxu0
      %v1876 = vadd.f32 0.0, %v1875
      %v1877 = vpop.f32.mrf.mxu0
      %1878 = vmatprep.mubr.f32.mxu0 0.0
      %1879 = vmatmul.mubr.f32.gmra.mxu0 %v1789
      %v1880 = vpop.f32.mrf.mxu0
      %v1881 = vadd.f32 0.0, %v1880
      %v1882 = vpop.f32.mrf.mxu0
      %1883 = vmatprep.mubr.f32.mxu0 0.0
      %1884 = vmatmul.mubr.f32.gmra.mxu0 %v1792
      %v1885 = vpop.f32.mrf.mxu0
      %v1886 = vadd.f32 0.0, %v1885
      %v1887 = vpop.f32.mrf.mxu0
      %1888 = vdwg.mxu0
      %v1889 = vld [vmem:[#allocation2 + $0x150] sm:$0xff]
      %v1890 = vld [vmem:[#allocation2 + $0x158] sm:$0xff]
      %v1891 = vld [vmem:[#allocation2 + $0x160] sm:$0xff]
      %v1892 = vld [vmem:[#allocation2 + $0x168] sm:$0xff]
      %v1893 = vld [vmem:[#allocation2 + $0x170] sm:$0xff]
      %v1894 = vld [vmem:[#allocation2 + $0x178] sm:$0xff]
      %v1895 = vadd.f32 %v1889, %v1861
      %v1896 = vadd.f32 %v1890, %v1866
      %v1897 = vadd.f32 %v1891, %v1871
      %v1898 = vadd.f32 %v1892, %v1876
      %v1899 = vadd.f32 %v1893, %v1881
      %v1900 = vadd.f32 %v1894, %v1886
      %1901 = vst.msk [vmem:[#allocation2 + $0x150] sm:$0xff] %vm802, %v1895
      %1902 = vst.msk [vmem:[#allocation2 + $0x158] sm:$0xff] %vm802, %v1896
      %1903 = vst.msk [vmem:[#allocation2 + $0x160] sm:$0xff] %vm802, %v1897
      %1904 = vst.msk [vmem:[#allocation2 + $0x168] sm:$0xff] %vm802, %v1898
      %1905 = vst.msk [vmem:[#allocation2 + $0x170] sm:$0xff] %vm802, %v1899
      %1906 = vst.msk [vmem:[#allocation2 + $0x178] sm:$0xff] %vm802, %v1900
      %v1907 = vrot.slane %v293, 1
      %v1908 = vrot.slane %v294, 1
      %v1909 = vrot.slane %v295, 1
      %v1910 = vrot.slane %v296, 1
      %v1911 = vrot.slane %v297, 1
      %v1912 = vrot.slane %v298, 1
      %v1913 = vrot.slane %v299, 1
      %v1914 = vrot.slane %v300, 1
      %v1915 = vrot.slane %v301, 1
      %v1916 = vrot.slane %v302, 1
      %v1917 = vrot.slane %v303, 1
      %v1918 = vrot.slane %v304, 1
      %v1919 = vrot.slane %v305, 1
      %v1920 = vrot.slane %v306, 1
      %v1921 = vrot.slane %v307, 1
      %v1922 = vrot.slane %v308, 1
      %v1923 = vrot.slane %v309, 1
      %v1924 = vrot.slane %v310, 1
      %v1925 = vrot.slane %v311, 1
      %v1926 = vrot.slane %v312, 1
      %v1927 = vrot.slane %v313, 1
      %v1928 = vrot.slane %v314, 1
      %v1929 = vrot.slane %v315, 1
      %v1930 = vrot.slane %v316, 1
      %v1931 = vrot.slane %v317, 1
      %v1932 = vrot.slane %v318, 1
      %v1933 = vrot.slane %v319, 1
      %v1934 = vrot.slane %v320, 1
      %v1935 = vrot.slane %v321, 1
      %v1936 = vrot.slane %v322, 1
      %v1937 = vrot.slane %v323, 1
      %v1938 = vrot.slane %v324, 1
      %v1939 = vrot.slane %v325, 1
      %v1940 = vrot.slane %v326, 1
      %v1941 = vrot.slane %v327, 1
      %v1942 = vrot.slane %v328, 1
      %v1943 = vrot.slane %v329, 1
      %v1944 = vrot.slane %v330, 1
      %v1945 = vrot.slane %v331, 1
      %v1946 = vrot.slane %v332, 1
      %v1947 = vrot.slane %v333, 1
      %v1948 = vrot.slane %v334, 1
      %v1949 = vrot.slane %v335, 1
      %v1950 = vrot.slane %v336, 1
      %v1951 = vrot.slane %v337, 1
      %v1952 = vrot.slane %v338, 1
      %v1953 = vrot.slane %v339, 1
      %v1954 = vrot.slane %v340, 1
      %v1955 = vlaneseq
      %v1956 = vshrl.u32 %v1955, 7
      %vm1957 = vcmp.lt.s32.totalorder %v1956, 7
      %v1958 = vsel %vm1957, %v1953, %v1954
      %v1959 = vsel %vm1957, %v1952, %v1953
      %v1960 = vsel %vm1957, %v1951, %v1952
      %v1961 = vsel %vm1957, %v1950, %v1951
      %v1962 = vsel %vm1957, %v1949, %v1950
      %v1963 = vsel %vm1957, %v1948, %v1949
      %v1964 = vsel %vm1957, %v1947, %v1948
      %v1965 = vsel %vm1957, %v1946, %v1947
      %v1966 = vsel %vm1957, %v1945, %v1946
      %v1967 = vsel %vm1957, %v1944, %v1945
      %v1968 = vsel %vm1957, %v1943, %v1944
      %v1969 = vsel %vm1957, %v1942, %v1943
      %v1970 = vsel %vm1957, %v1941, %v1942
      %v1971 = vsel %vm1957, %v1940, %v1941
      %v1972 = vsel %vm1957, %v1939, %v1940
      %v1973 = vsel %vm1957, %v1938, %v1939
      %v1974 = vsel %vm1957, %v1937, %v1938
      %v1975 = vsel %vm1957, %v1936, %v1937
      %v1976 = vsel %vm1957, %v1935, %v1936
      %v1977 = vsel %vm1957, %v1934, %v1935
      %v1978 = vsel %vm1957, %v1933, %v1934
      %v1979 = vsel %vm1957, %v1932, %v1933
      %v1980 = vsel %vm1957, %v1931, %v1932
      %v1981 = vsel %vm1957, %v1930, %v1931
      %v1982 = vsel %vm1957, %v1929, %v1930
      %v1983 = vsel %vm1957, %v1928, %v1929
      %v1984 = vsel %vm1957, %v1927, %v1928
      %v1985 = vsel %vm1957, %v1926, %v1927
      %v1986 = vsel %vm1957, %v1925, %v1926
      %v1987 = vsel %vm1957, %v1924, %v1925
      %v1988 = vsel %vm1957, %v1923, %v1924
      %v1989 = vsel %vm1957, %v1922, %v1923
      %v1990 = vsel %vm1957, %v1921, %v1922
      %v1991 = vsel %vm1957, %v1920, %v1921
      %v1992 = vsel %vm1957, %v1919, %v1920
      %v1993 = vsel %vm1957, %v1918, %v1919
      %v1994 = vsel %vm1957, %v1917, %v1918
      %v1995 = vsel %vm1957, %v1916, %v1917
      %v1996 = vsel %vm1957, %v1915, %v1916
      %v1997 = vsel %vm1957, %v1914, %v1915
      %v1998 = vsel %vm1957, %v1913, %v1914
      %v1999 = vsel %vm1957, %v1912, %v1913
      %v2000 = vsel %vm1957, %v1911, %v1912
      %v2001 = vsel %vm1957, %v1910, %v1911
      %v2002 = vsel %vm1957, %v1909, %v1910
      %v2003 = vsel %vm1957, %v1908, %v1909
      %v2004 = vsel %vm1957, %v1907, %v1908
      %v2005 = vsel %vm1957, %v1954, %v1907
      %v2006 = vrot.slane %v341, 1
      %v2007 = vrot.slane %v342, 1
      %v2008 = vrot.slane %v343, 1
      %v2009 = vrot.slane %v344, 1
      %v2010 = vrot.slane %v345, 1
      %v2011 = vrot.slane %v346, 1
      %v2012 = vsel %vm1957, %v2010, %v2011
      %v2013 = vsel %vm1957, %v2009, %v2010
      %v2014 = vsel %vm1957, %v2008, %v2009
      %v2015 = vsel %vm1957, %v2007, %v2008
      %v2016 = vsel %vm1957, %v2006, %v2007
      %v2017 = vsel %vm1957, %v2011, %v2006
      %s2018 = scalar_lea.vmem %s2, 4
      %v2019 = vld [vmem:[%s2018] sm:$0xf]
      %v2021 = vsel %vm348, %v2004, 0
      %v2024 = vsel %vm348, %v2003, 0
      %v2027 = vsel %vm348, %v2002, 0
      %v2030 = vsel %vm348, %v2001, 0
      %v2033 = vsel %vm348, %v2000, 0
      %v2036 = vsel %vm348, %v1999, 0
      %v2039 = vsel %vm348, %v1998, 0
      %v2042 = vsel %vm348, %v1997, 0
      %v2045 = vsel %vm348, %v1996, 0
      %v2048 = vsel %vm348, %v1995, 0
      %v2051 = vsel %vm348, %v1994, 0
      %v2054 = vsel %vm348, %v1993, 0
      %v2057 = vsel %vm348, %v1992, 0
      %v2060 = vsel %vm348, %v1991, 0
      %v2063 = vsel %vm348, %v1990, 0
      %v2066 = vsel %vm348, %v1989, 0
      %v2069 = vsel %vm348, %v1988, 0
      %v2072 = vsel %vm348, %v1987, 0
      %v2075 = vsel %vm348, %v1986, 0
      %v2078 = vsel %vm348, %v1985, 0
      %v2081 = vsel %vm348, %v1984, 0
      %v2084 = vsel %vm348, %v1983, 0
      %v2087 = vsel %vm348, %v1982, 0
      %v2090 = vsel %vm348, %v1981, 0
      %v2093 = vsel %vm348, %v1980, 0
      %v2096 = vsel %vm348, %v1979, 0
      %v2099 = vsel %vm348, %v1978, 0
      %v2102 = vsel %vm348, %v1977, 0
      %v2105 = vsel %vm348, %v1976, 0
      %v2108 = vsel %vm348, %v1975, 0
      %v2111 = vsel %vm348, %v1974, 0
      %v2114 = vsel %vm348, %v1973, 0
      %v2117 = vsel %vm348, %v1972, 0
      %v2120 = vsel %vm348, %v1971, 0
      %v2123 = vsel %vm348, %v1970, 0
      %v2126 = vsel %vm348, %v1969, 0
      %v2129 = vsel %vm348, %v1968, 0
      %v2132 = vsel %vm348, %v1967, 0
      %v2135 = vsel %vm348, %v1966, 0
      %v2138 = vsel %vm348, %v1965, 0
      %v2141 = vsel %vm348, %v1964, 0
      %v2144 = vsel %vm348, %v1963, 0
      %v2147 = vsel %vm348, %v1962, 0
      %v2150 = vsel %vm348, %v1961, 0
      %v2153 = vsel %vm348, %v1960, 0
      %v2156 = vsel %vm348, %v1959, 0
      %v2159 = vsel %vm348, %v1958, 0
      %v2162 = vsel %vm348, %v2005, 0
      %v2165 = vsel %vm493, %v2019, 0
      %2167 = vmatprep.subr.mxu0 0.0
      %2168 = vmatpush1.msra.mxu0 0.0
      %2169 = vmatprep.subr.mxu0 0.0
      %2170 = vmatpush1.msra.mxu0 0.0
      %2171 = vmatprep.subr.mxu0 0.0
      %2172 = vmatpush1.msra.mxu0 0.0
      %2173 = vmatprep.subr.mxu0 0.0
      %2174 = vmatpush1.msra.mxu0 0.0
      %2175 = vmatprep.subr.mxu0 0.0
      %2176 = vmatpush1.msra.mxu0 0.0
      %2177 = vmatprep.subr.mxu0 0.0
      %2178 = vmatpush1.msra.mxu0 0.0
      %2179 = vmatprep.subr.mxu0 0.0
      %2180 = vmatpush1.msra.mxu0 0.0
      %2181 = vmatprep.subr.mxu0 0.0
      %2182 = vmatpush1.msra.mxu0 0.0
      %2183 = vmatprep.subr.mxu0 0.0
      %2184 = vmatpush1.msra.mxu0 0.0
      %2185 = vmatprep.subr.mxu0 0.0
      %2186 = vmatpush1.msra.mxu0 0.0
      %2187 = vmatprep.subr.mxu0 0.0
      %2188 = vmatpush1.msra.mxu0 0.0
      %2189 = vmatprep.subr.mxu0 0.0
      %2190 = vmatpush1.msra.mxu0 0.0
      %2191 = vmatprep.subr.mxu0 0.0
      %2192 = vmatpush1.msra.mxu0 0.0
      %2193 = vmatprep.subr.mxu0 0.0
      %2194 = vmatpush1.msra.mxu0 0.0
      %2195 = vmatprep.subr.mxu0 0.0
      %2196 = vmatpush1.msra.mxu0 0.0
      %2197 = vmatprep.subr.mxu0 0.0
      %2198 = vmatpush1.msra.mxu0 %v2165
      %2199 = vmatprep.subr.mxu0 0.0
      %2200 = vmatpush2.msra.mxu0 0.0
      %2201 = vmatprep.subr.mxu0 0.0
      %2202 = vmatpush2.msra.mxu0 0.0
      %2203 = vmatprep.subr.mxu0 0.0
      %2204 = vmatpush2.msra.mxu0 0.0
      %2205 = vmatprep.subr.mxu0 0.0
      %2206 = vmatpush2.msra.mxu0 0.0
      %2207 = vmatprep.subr.mxu0 0.0
      %2208 = vmatpush2.msra.mxu0 0.0
      %2209 = vmatprep.subr.mxu0 0.0
      %2210 = vmatpush2.msra.mxu0 0.0
      %2211 = vmatprep.subr.mxu0 0.0
      %2212 = vmatpush2.msra.mxu0 0.0
      %2213 = vmatprep.subr.mxu0 0.0
      %2214 = vmatpush2.msra.mxu0 0.0
      %2215 = vmatprep.subr.mxu0 0.0
      %2216 = vmatpush2.msra.mxu0 0.0
      %2217 = vmatprep.subr.mxu0 0.0
      %2218 = vmatpush2.msra.mxu0 0.0
      %2219 = vmatprep.subr.mxu0 0.0
      %2220 = vmatpush2.msra.mxu0 0.0
      %2221 = vmatprep.subr.mxu0 0.0
      %2222 = vmatpush2.msra.mxu0 0.0
      %2223 = vmatprep.subr.mxu0 0.0
      %2224 = vmatpush2.msra.mxu0 0.0
      %2225 = vmatprep.subr.mxu0 0.0
      %2226 = vmatpush2.msra.mxu0 0.0
      %2227 = vmatprep.subr.mxu0 0.0
      %2228 = vmatpush2.msra.mxu0 0.0
      %2229 = vmatprep.subr.mxu0 0.0
      %2230 = vmatpush2.msra.mxu0 0.0
      %2231 = vmatprep.mubr.f32.mxu0 0.0
      %2232 = vmatmul.mubr.f32.gmra.mxu0 %v2021
      %v2233 = vpop.f32.mrf.mxu0
      %v2234 = vadd.f32 0.0, %v2233
      %v2235 = vpop.f32.mrf.mxu0
      %2236 = vmatprep.mubr.f32.mxu0 0.0
      %2237 = vmatmul.mubr.f32.gmra.mxu0 %v2024
      %v2238 = vpop.f32.mrf.mxu0
      %v2239 = vadd.f32 0.0, %v2238
      %v2240 = vpop.f32.mrf.mxu0
      %2241 = vmatprep.mubr.f32.mxu0 0.0
      %2242 = vmatmul.mubr.f32.gmra.mxu0 %v2027
      %v2243 = vpop.f32.mrf.mxu0
      %v2244 = vadd.f32 0.0, %v2243
      %v2245 = vpop.f32.mrf.mxu0
      %2246 = vmatprep.mubr.f32.mxu0 0.0
      %2247 = vmatmul.mubr.f32.gmra.mxu0 %v2030
      %v2248 = vpop.f32.mrf.mxu0
      %v2249 = vadd.f32 0.0, %v2248
      %v2250 = vpop.f32.mrf.mxu0
      %2251 = vmatprep.mubr.f32.mxu0 0.0
      %2252 = vmatmul.mubr.f32.gmra.mxu0 %v2033
      %v2253 = vpop.f32.mrf.mxu0
      %v2254 = vadd.f32 0.0, %v2253
      %v2255 = vpop.f32.mrf.mxu0
      %2256 = vmatprep.mubr.f32.mxu0 0.0
      %2257 = vmatmul.mubr.f32.gmra.mxu0 %v2036
      %v2258 = vpop.f32.mrf.mxu0
      %v2259 = vadd.f32 0.0, %v2258
      %v2260 = vpop.f32.mrf.mxu0
      %2261 = vmatprep.mubr.f32.mxu0 0.0
      %2262 = vmatmul.mubr.f32.gmra.mxu0 %v2039
      %v2263 = vpop.f32.mrf.mxu0
      %v2264 = vadd.f32 0.0, %v2263
      %v2265 = vpop.f32.mrf.mxu0
      %2266 = vmatprep.mubr.f32.mxu0 0.0
      %2267 = vmatmul.mubr.f32.gmra.mxu0 %v2042
      %v2268 = vpop.f32.mrf.mxu0
      %v2269 = vadd.f32 0.0, %v2268
      %v2270 = vpop.f32.mrf.mxu0
      %2271 = vmatprep.mubr.f32.mxu0 0.0
      %2272 = vmatmul.mubr.f32.gmra.mxu0 %v2045
      %v2273 = vpop.f32.mrf.mxu0
      %v2274 = vadd.f32 0.0, %v2273
      %v2275 = vpop.f32.mrf.mxu0
      %2276 = vmatprep.mubr.f32.mxu0 0.0
      %2277 = vmatmul.mubr.f32.gmra.mxu0 %v2048
      %v2278 = vpop.f32.mrf.mxu0
      %v2279 = vadd.f32 0.0, %v2278
      %v2280 = vpop.f32.mrf.mxu0
      %2281 = vmatprep.mubr.f32.mxu0 0.0
      %2282 = vmatmul.mubr.f32.gmra.mxu0 %v2051
      %v2283 = vpop.f32.mrf.mxu0
      %v2284 = vadd.f32 0.0, %v2283
      %v2285 = vpop.f32.mrf.mxu0
      %2286 = vmatprep.mubr.f32.mxu0 0.0
      %2287 = vmatmul.mubr.f32.gmra.mxu0 %v2054
      %v2288 = vpop.f32.mrf.mxu0
      %v2289 = vadd.f32 0.0, %v2288
      %v2290 = vpop.f32.mrf.mxu0
      %2291 = vmatprep.mubr.f32.mxu0 0.0
      %2292 = vmatmul.mubr.f32.gmra.mxu0 %v2057
      %v2293 = vpop.f32.mrf.mxu0
      %v2294 = vadd.f32 0.0, %v2293
      %v2295 = vpop.f32.mrf.mxu0
      %2296 = vmatprep.mubr.f32.mxu0 0.0
      %2297 = vmatmul.mubr.f32.gmra.mxu0 %v2060
      %v2298 = vpop.f32.mrf.mxu0
      %v2299 = vadd.f32 0.0, %v2298
      %v2300 = vpop.f32.mrf.mxu0
      %2301 = vmatprep.mubr.f32.mxu0 0.0
      %2302 = vmatmul.mubr.f32.gmra.mxu0 %v2063
      %v2303 = vpop.f32.mrf.mxu0
      %v2304 = vadd.f32 0.0, %v2303
      %v2305 = vpop.f32.mrf.mxu0
      %2306 = vmatprep.mubr.f32.mxu0 0.0
      %2307 = vmatmul.mubr.f32.gmra.mxu0 %v2066
      %v2308 = vpop.f32.mrf.mxu0
      %v2309 = vadd.f32 0.0, %v2308
      %v2310 = vpop.f32.mrf.mxu0
      %2311 = vmatprep.mubr.f32.mxu0 0.0
      %2312 = vmatmul.mubr.f32.gmra.mxu0 %v2069
      %v2313 = vpop.f32.mrf.mxu0
      %v2314 = vadd.f32 0.0, %v2313
      %v2315 = vpop.f32.mrf.mxu0
      %2316 = vmatprep.mubr.f32.mxu0 0.0
      %2317 = vmatmul.mubr.f32.gmra.mxu0 %v2072
      %v2318 = vpop.f32.mrf.mxu0
      %v2319 = vadd.f32 0.0, %v2318
      %v2320 = vpop.f32.mrf.mxu0
      %2321 = vmatprep.mubr.f32.mxu0 0.0
      %2322 = vmatmul.mubr.f32.gmra.mxu0 %v2075
      %v2323 = vpop.f32.mrf.mxu0
      %v2324 = vadd.f32 0.0, %v2323
      %v2325 = vpop.f32.mrf.mxu0
      %2326 = vmatprep.mubr.f32.mxu0 0.0
      %2327 = vmatmul.mubr.f32.gmra.mxu0 %v2078
      %v2328 = vpop.f32.mrf.mxu0
      %v2329 = vadd.f32 0.0, %v2328
      %v2330 = vpop.f32.mrf.mxu0
      %2331 = vmatprep.mubr.f32.mxu0 0.0
      %2332 = vmatmul.mubr.f32.gmra.mxu0 %v2081
      %v2333 = vpop.f32.mrf.mxu0
      %v2334 = vadd.f32 0.0, %v2333
      %v2335 = vpop.f32.mrf.mxu0
      %2336 = vmatprep.mubr.f32.mxu0 0.0
      %2337 = vmatmul.mubr.f32.gmra.mxu0 %v2084
      %v2338 = vpop.f32.mrf.mxu0
      %v2339 = vadd.f32 0.0, %v2338
      %v2340 = vpop.f32.mrf.mxu0
      %2341 = vmatprep.mubr.f32.mxu0 0.0
      %2342 = vmatmul.mubr.f32.gmra.mxu0 %v2087
      %v2343 = vpop.f32.mrf.mxu0
      %v2344 = vadd.f32 0.0, %v2343
      %v2345 = vpop.f32.mrf.mxu0
      %2346 = vmatprep.mubr.f32.mxu0 0.0
      %2347 = vmatmul.mubr.f32.gmra.mxu0 %v2090
      %v2348 = vpop.f32.mrf.mxu0
      %v2349 = vadd.f32 0.0, %v2348
      %v2350 = vpop.f32.mrf.mxu0
      %2351 = vmatprep.mubr.f32.mxu0 0.0
      %2352 = vmatmul.mubr.f32.gmra.mxu0 %v2093
      %v2353 = vpop.f32.mrf.mxu0
      %v2354 = vadd.f32 0.0, %v2353
      %v2355 = vpop.f32.mrf.mxu0
      %2356 = vmatprep.mubr.f32.mxu0 0.0
      %2357 = vmatmul.mubr.f32.gmra.mxu0 %v2096
      %v2358 = vpop.f32.mrf.mxu0
      %v2359 = vadd.f32 0.0, %v2358
      %v2360 = vpop.f32.mrf.mxu0
      %2361 = vmatprep.mubr.f32.mxu0 0.0
      %2362 = vmatmul.mubr.f32.gmra.mxu0 %v2099
      %v2363 = vpop.f32.mrf.mxu0
      %v2364 = vadd.f32 0.0, %v2363
      %v2365 = vpop.f32.mrf.mxu0
      %2366 = vmatprep.mubr.f32.mxu0 0.0
      %2367 = vmatmul.mubr.f32.gmra.mxu0 %v2102
      %v2368 = vpop.f32.mrf.mxu0
      %v2369 = vadd.f32 0.0, %v2368
      %v2370 = vpop.f32.mrf.mxu0
      %2371 = vmatprep.mubr.f32.mxu0 0.0
      %2372 = vmatmul.mubr.f32.gmra.mxu0 %v2105
      %v2373 = vpop.f32.mrf.mxu0
      %v2374 = vadd.f32 0.0, %v2373
      %v2375 = vpop.f32.mrf.mxu0
      %2376 = vmatprep.mubr.f32.mxu0 0.0
      %2377 = vmatmul.mubr.f32.gmra.mxu0 %v2108
      %v2378 = vpop.f32.mrf.mxu0
      %v2379 = vadd.f32 0.0, %v2378
      %v2380 = vpop.f32.mrf.mxu0
      %2381 = vmatprep.mubr.f32.mxu0 0.0
      %2382 = vmatmul.mubr.f32.gmra.mxu0 %v2111
      %v2383 = vpop.f32.mrf.mxu0
      %v2384 = vadd.f32 0.0, %v2383
      %v2385 = vpop.f32.mrf.mxu0
      %2386 = vmatprep.mubr.f32.mxu0 0.0
      %2387 = vmatmul.mubr.f32.gmra.mxu0 %v2114
      %v2388 = vpop.f32.mrf.mxu0
      %v2389 = vadd.f32 0.0, %v2388
      %v2390 = vpop.f32.mrf.mxu0
      %2391 = vmatprep.mubr.f32.mxu0 0.0
      %2392 = vmatmul.mubr.f32.gmra.mxu0 %v2117
      %v2393 = vpop.f32.mrf.mxu0
      %v2394 = vadd.f32 0.0, %v2393
      %v2395 = vpop.f32.mrf.mxu0
      %2396 = vmatprep.mubr.f32.mxu0 0.0
      %2397 = vmatmul.mubr.f32.gmra.mxu0 %v2120
      %v2398 = vpop.f32.mrf.mxu0
      %v2399 = vadd.f32 0.0, %v2398
      %v2400 = vpop.f32.mrf.mxu0
      %2401 = vmatprep.mubr.f32.mxu0 0.0
      %2402 = vmatmul.mubr.f32.gmra.mxu0 %v2123
      %v2403 = vpop.f32.mrf.mxu0
      %v2404 = vadd.f32 0.0, %v2403
      %v2405 = vpop.f32.mrf.mxu0
      %2406 = vmatprep.mubr.f32.mxu0 0.0
      %2407 = vmatmul.mubr.f32.gmra.mxu0 %v2126
      %v2408 = vpop.f32.mrf.mxu0
      %v2409 = vadd.f32 0.0, %v2408
      %v2410 = vpop.f32.mrf.mxu0
      %2411 = vmatprep.mubr.f32.mxu0 0.0
      %2412 = vmatmul.mubr.f32.gmra.mxu0 %v2129
      %v2413 = vpop.f32.mrf.mxu0
      %v2414 = vadd.f32 0.0, %v2413
      %v2415 = vpop.f32.mrf.mxu0
      %2416 = vmatprep.mubr.f32.mxu0 0.0
      %2417 = vmatmul.mubr.f32.gmra.mxu0 %v2132
      %v2418 = vpop.f32.mrf.mxu0
      %v2419 = vadd.f32 0.0, %v2418
      %v2420 = vpop.f32.mrf.mxu0
      %2421 = vmatprep.mubr.f32.mxu0 0.0
      %2422 = vmatmul.mubr.f32.gmra.mxu0 %v2135
      %v2423 = vpop.f32.mrf.mxu0
      %v2424 = vadd.f32 0.0, %v2423
      %v2425 = vpop.f32.mrf.mxu0
      %2426 = vmatprep.mubr.f32.mxu0 0.0
      %2427 = vmatmul.mubr.f32.gmra.mxu0 %v2138
      %v2428 = vpop.f32.mrf.mxu0
      %v2429 = vadd.f32 0.0, %v2428
      %v2430 = vpop.f32.mrf.mxu0
      %2431 = vmatprep.mubr.f32.mxu0 0.0
      %2432 = vmatmul.mubr.f32.gmra.mxu0 %v2141
      %v2433 = vpop.f32.mrf.mxu0
      %v2434 = vadd.f32 0.0, %v2433
      %v2435 = vpop.f32.mrf.mxu0
      %2436 = vmatprep.mubr.f32.mxu0 0.0
      %2437 = vmatmul.mubr.f32.gmra.mxu0 %v2144
      %v2438 = vpop.f32.mrf.mxu0
      %v2439 = vadd.f32 0.0, %v2438
      %v2440 = vpop.f32.mrf.mxu0
      %2441 = vmatprep.mubr.f32.mxu0 0.0
      %2442 = vmatmul.mubr.f32.gmra.mxu0 %v2147
      %v2443 = vpop.f32.mrf.mxu0
      %v2444 = vadd.f32 0.0, %v2443
      %v2445 = vpop.f32.mrf.mxu0
      %2446 = vmatprep.mubr.f32.mxu0 0.0
      %2447 = vmatmul.mubr.f32.gmra.mxu0 %v2150
      %v2448 = vpop.f32.mrf.mxu0
      %v2449 = vadd.f32 0.0, %v2448
      %v2450 = vpop.f32.mrf.mxu0
      %2451 = vmatprep.mubr.f32.mxu0 0.0
      %2452 = vmatmul.mubr.f32.gmra.mxu0 %v2153
      %v2453 = vpop.f32.mrf.mxu0
      %v2454 = vadd.f32 0.0, %v2453
      %v2455 = vpop.f32.mrf.mxu0
      %2456 = vmatprep.mubr.f32.mxu0 0.0
      %2457 = vmatmul.mubr.f32.gmra.mxu0 %v2156
      %v2458 = vpop.f32.mrf.mxu0
      %v2459 = vadd.f32 0.0, %v2458
      %v2460 = vpop.f32.mrf.mxu0
      %2461 = vmatprep.mubr.f32.mxu0 0.0
      %2462 = vmatmul.mubr.f32.gmra.mxu0 %v2159
      %v2463 = vpop.f32.mrf.mxu0
      %v2464 = vadd.f32 0.0, %v2463
      %v2465 = vpop.f32.mrf.mxu0
      %2466 = vmatprep.mubr.f32.mxu0 0.0
      %2467 = vmatmul.mubr.f32.gmra.mxu0 %v2162
      %v2468 = vpop.f32.mrf.mxu0
      %v2469 = vadd.f32 0.0, %v2468
      %v2470 = vpop.f32.mrf.mxu0
      %2471 = vdwg.mxu0
      %v2472 = vld [vmem:[#allocation2] sm:$0xff]
      %v2473 = vld [vmem:[#allocation2 + $0x8] sm:$0xff]
      %v2474 = vld [vmem:[#allocation2 + $0x10] sm:$0xff]
      %v2475 = vld [vmem:[#allocation2 + $0x18] sm:$0xff]
      %v2476 = vld [vmem:[#allocation2 + $0x20] sm:$0xff]
      %v2477 = vld [vmem:[#allocation2 + $0x28] sm:$0xff]
      %v2478 = vld [vmem:[#allocation2 + $0x30] sm:$0xff]
      %v2479 = vld [vmem:[#allocation2 + $0x38] sm:$0xff]
      %v2480 = vld [vmem:[#allocation2 + $0x40] sm:$0xff]
      %v2481 = vld [vmem:[#allocation2 + $0x48] sm:$0xff]
      %v2482 = vld [vmem:[#allocation2 + $0x50] sm:$0xff]
      %v2483 = vld [vmem:[#allocation2 + $0x58] sm:$0xff]
      %v2484 = vld [vmem:[#allocation2 + $0x60] sm:$0xff]
      %v2485 = vld [vmem:[#allocation2 + $0x68] sm:$0xff]
      %v2486 = vld [vmem:[#allocation2 + $0x70] sm:$0xff]
      %v2487 = vld [vmem:[#allocation2 + $0x78] sm:$0xff]
      %v2488 = vld [vmem:[#allocation2 + $0x80] sm:$0xff]
      %v2489 = vld [vmem:[#allocation2 + $0x88] sm:$0xff]
      %v2490 = vld [vmem:[#allocation2 + $0x90] sm:$0xff]
      %v2491 = vld [vmem:[#allocation2 + $0x98] sm:$0xff]
      %v2492 = vld [vmem:[#allocation2 + $0xa0] sm:$0xff]
      %v2493 = vld [vmem:[#allocation2 + $0xa8] sm:$0xff]
      %v2494 = vld [vmem:[#allocation2 + $0xb0] sm:$0xff]
      %v2495 = vld [vmem:[#allocation2 + $0xb8] sm:$0xff]
      %v2496 = vld [vmem:[#allocation2 + $0xc0] sm:$0xff]
      %v2497 = vld [vmem:[#allocation2 + $0xc8] sm:$0xff]
      %v2498 = vld [vmem:[#allocation2 + $0xd0] sm:$0xff]
      %v2499 = vld [vmem:[#allocation2 + $0xd8] sm:$0xff]
      %v2500 = vld [vmem:[#allocation2 + $0xe0] sm:$0xff]
      %v2501 = vld [vmem:[#allocation2 + $0xe8] sm:$0xff]
      %v2502 = vld [vmem:[#allocation2 + $0xf0] sm:$0xff]
      %v2503 = vld [vmem:[#allocation2 + $0xf8] sm:$0xff]
      %v2504 = vld [vmem:[#allocation2 + $0x100] sm:$0xff]
      %v2505 = vld [vmem:[#allocation2 + $0x108] sm:$0xff]
      %v2506 = vld [vmem:[#allocation2 + $0x110] sm:$0xff]
      %v2507 = vld [vmem:[#allocation2 + $0x118] sm:$0xff]
      %v2508 = vld [vmem:[#allocation2 + $0x120] sm:$0xff]
      %v2509 = vld [vmem:[#allocation2 + $0x128] sm:$0xff]
      %v2510 = vld [vmem:[#allocation2 + $0x130] sm:$0xff]
      %v2511 = vld [vmem:[#allocation2 + $0x138] sm:$0xff]
      %v2512 = vld [vmem:[#allocation2 + $0x140] sm:$0xff]
      %v2513 = vld [vmem:[#allocation2 + $0x148] sm:$0xff]
      %v2514 = vld [vmem:[#allocation2 + $0x150] sm:$0xff]
      %v2515 = vld [vmem:[#allocation2 + $0x158] sm:$0xff]
      %v2516 = vld [vmem:[#allocation2 + $0x160] sm:$0xff]
      %v2517 = vld [vmem:[#allocation2 + $0x168] sm:$0xff]
      %v2518 = vld [vmem:[#allocation2 + $0x170] sm:$0xff]
      %v2519 = vld [vmem:[#allocation2 + $0x178] sm:$0xff]
      %v2520 = vadd.f32 %v2472, %v2234
      %v2521 = vadd.f32 %v2473, %v2239
      %v2522 = vadd.f32 %v2474, %v2244
      %v2523 = vadd.f32 %v2475, %v2249
      %v2524 = vadd.f32 %v2476, %v2254
      %v2525 = vadd.f32 %v2477, %v2259
      %v2526 = vadd.f32 %v2478, %v2264
      %v2527 = vadd.f32 %v2479, %v2269
      %v2528 = vadd.f32 %v2480, %v2274
      %v2529 = vadd.f32 %v2481, %v2279
      %v2530 = vadd.f32 %v2482, %v2284
      %v2531 = vadd.f32 %v2483, %v2289
      %v2532 = vadd.f32 %v2484, %v2294
      %v2533 = vadd.f32 %v2485, %v2299
      %v2534 = vadd.f32 %v2486, %v2304
      %v2535 = vadd.f32 %v2487, %v2309
      %v2536 = vadd.f32 %v2488, %v2314
      %v2537 = vadd.f32 %v2489, %v2319
      %v2538 = vadd.f32 %v2490, %v2324
      %v2539 = vadd.f32 %v2491, %v2329
      %v2540 = vadd.f32 %v2492, %v2334
      %v2541 = vadd.f32 %v2493, %v2339
      %v2542 = vadd.f32 %v2494, %v2344
      %v2543 = vadd.f32 %v2495, %v2349
      %v2544 = vadd.f32 %v2496, %v2354
      %v2545 = vadd.f32 %v2497, %v2359
      %v2546 = vadd.f32 %v2498, %v2364
      %v2547 = vadd.f32 %v2499, %v2369
      %v2548 = vadd.f32 %v2500, %v2374
      %v2549 = vadd.f32 %v2501, %v2379
      %v2550 = vadd.f32 %v2502, %v2384
      %v2551 = vadd.f32 %v2503, %v2389
      %v2552 = vadd.f32 %v2504, %v2394
      %v2553 = vadd.f32 %v2505, %v2399
      %v2554 = vadd.f32 %v2506, %v2404
      %v2555 = vadd.f32 %v2507, %v2409
      %v2556 = vadd.f32 %v2508, %v2414
      %v2557 = vadd.f32 %v2509, %v2419
      %v2558 = vadd.f32 %v2510, %v2424
      %v2559 = vadd.f32 %v2511, %v2429
      %v2560 = vadd.f32 %v2512, %v2434
      %v2561 = vadd.f32 %v2513, %v2439
      %v2562 = vadd.f32 %v2514, %v2444
      %v2563 = vadd.f32 %v2515, %v2449
      %v2564 = vadd.f32 %v2516, %v2454
      %v2565 = vadd.f32 %v2517, %v2459
      %v2566 = vadd.f32 %v2518, %v2464
      %v2567 = vadd.f32 %v2519, %v2469
      %2568 = vst.msk [vmem:[#allocation2] sm:$0xff] %vm802, %v2520
      %2569 = vst.msk [vmem:[#allocation2 + $0x8] sm:$0xff] %vm802, %v2521
      %2570 = vst.msk [vmem:[#allocation2 + $0x10] sm:$0xff] %vm802, %v2522
      %2571 = vst.msk [vmem:[#allocation2 + $0x18] sm:$0xff] %vm802, %v2523
      %2572 = vst.msk [vmem:[#allocation2 + $0x20] sm:$0xff] %vm802, %v2524
      %2573 = vst.msk [vmem:[#allocation2 + $0x28] sm:$0xff] %vm802, %v2525
      %2574 = vst.msk [vmem:[#allocation2 + $0x30] sm:$0xff] %vm802, %v2526
      %2575 = vst.msk [vmem:[#allocation2 + $0x38] sm:$0xff] %vm802, %v2527
      %2576 = vst.msk [vmem:[#allocation2 + $0x40] sm:$0xff] %vm802, %v2528
      %2577 = vst.msk [vmem:[#allocation2 + $0x48] sm:$0xff] %vm802, %v2529
      %2578 = vst.msk [vmem:[#allocation2 + $0x50] sm:$0xff] %vm802, %v2530
      %2579 = vst.msk [vmem:[#allocation2 + $0x58] sm:$0xff] %vm802, %v2531
      %2580 = vst.msk [vmem:[#allocation2 + $0x60] sm:$0xff] %vm802, %v2532
      %2581 = vst.msk [vmem:[#allocation2 + $0x68] sm:$0xff] %vm802, %v2533
      %2582 = vst.msk [vmem:[#allocation2 + $0x70] sm:$0xff] %vm802, %v2534
      %2583 = vst.msk [vmem:[#allocation2 + $0x78] sm:$0xff] %vm802, %v2535
      %2584 = vst.msk [vmem:[#allocation2 + $0x80] sm:$0xff] %vm802, %v2536
      %2585 = vst.msk [vmem:[#allocation2 + $0x88] sm:$0xff] %vm802, %v2537
      %2586 = vst.msk [vmem:[#allocation2 + $0x90] sm:$0xff] %vm802, %v2538
      %2587 = vst.msk [vmem:[#allocation2 + $0x98] sm:$0xff] %vm802, %v2539
      %2588 = vst.msk [vmem:[#allocation2 + $0xa0] sm:$0xff] %vm802, %v2540
      %2589 = vst.msk [vmem:[#allocation2 + $0xa8] sm:$0xff] %vm802, %v2541
      %2590 = vst.msk [vmem:[#allocation2 + $0xb0] sm:$0xff] %vm802, %v2542
      %2591 = vst.msk [vmem:[#allocation2 + $0xb8] sm:$0xff] %vm802, %v2543
      %2592 = vst.msk [vmem:[#allocation2 + $0xc0] sm:$0xff] %vm802, %v2544
      %2593 = vst.msk [vmem:[#allocation2 + $0xc8] sm:$0xff] %vm802, %v2545
      %2594 = vst.msk [vmem:[#allocation2 + $0xd0] sm:$0xff] %vm802, %v2546
      %2595 = vst.msk [vmem:[#allocation2 + $0xd8] sm:$0xff] %vm802, %v2547
      %2596 = vst.msk [vmem:[#allocation2 + $0xe0] sm:$0xff] %vm802, %v2548
      %2597 = vst.msk [vmem:[#allocation2 + $0xe8] sm:$0xff] %vm802, %v2549
      %2598 = vst.msk [vmem:[#allocation2 + $0xf0] sm:$0xff] %vm802, %v2550
      %2599 = vst.msk [vmem:[#allocation2 + $0xf8] sm:$0xff] %vm802, %v2551
      %2600 = vst.msk [vmem:[#allocation2 + $0x100] sm:$0xff] %vm802, %v2552
      %2601 = vst.msk [vmem:[#allocation2 + $0x108] sm:$0xff] %vm802, %v2553
      %2602 = vst.msk [vmem:[#allocation2 + $0x110] sm:$0xff] %vm802, %v2554
      %2603 = vst.msk [vmem:[#allocation2 + $0x118] sm:$0xff] %vm802, %v2555
      %2604 = vst.msk [vmem:[#allocation2 + $0x120] sm:$0xff] %vm802, %v2556
      %2605 = vst.msk [vmem:[#allocation2 + $0x128] sm:$0xff] %vm802, %v2557
      %2606 = vst.msk [vmem:[#allocation2 + $0x130] sm:$0xff] %vm802, %v2558
      %2607 = vst.msk [vmem:[#allocation2 + $0x138] sm:$0xff] %vm802, %v2559
      %2608 = vst.msk [vmem:[#allocation2 + $0x140] sm:$0xff] %vm802, %v2560
      %2609 = vst.msk [vmem:[#allocation2 + $0x148] sm:$0xff] %vm802, %v2561
      %2610 = vst.msk [vmem:[#allocation2 + $0x150] sm:$0xff] %vm802, %v2562
      %2611 = vst.msk [vmem:[#allocation2 + $0x158] sm:$0xff] %vm802, %v2563
      %2612 = vst.msk [vmem:[#allocation2 + $0x160] sm:$0xff] %vm802, %v2564
      %2613 = vst.msk [vmem:[#allocation2 + $0x168] sm:$0xff] %vm802, %v2565
      %2614 = vst.msk [vmem:[#allocation2 + $0x170] sm:$0xff] %vm802, %v2566
      %2615 = vst.msk [vmem:[#allocation2 + $0x178] sm:$0xff] %vm802, %v2567
      %s2616 = scalar_lea.vmem %s2, 16
      %v2617 = vld [vmem:[%s2616] sm:$0xf]
      %v2619 = vsel %vm493, %v2617, 0
      %2621 = vmatprep.subr.mxu0 0.0
      %2622 = vmatpush1.msra.mxu0 0.0
      %2623 = vmatprep.subr.mxu0 0.0
      %2624 = vmatpush1.msra.mxu0 0.0
      %2625 = vmatprep.subr.mxu0 0.0
      %2626 = vmatpush1.msra.mxu0 0.0
      %2627 = vmatprep.subr.mxu0 0.0
      %2628 = vmatpush1.msra.mxu0 0.0
      %2629 = vmatprep.subr.mxu0 0.0
      %2630 = vmatpush1.msra.mxu0 0.0
      %2631 = vmatprep.subr.mxu0 0.0
      %2632 = vmatpush1.msra.mxu0 0.0
      %2633 = vmatprep.subr.mxu0 0.0
      %2634 = vmatpush1.msra.mxu0 0.0
      %2635 = vmatprep.subr.mxu0 0.0
      %2636 = vmatpush1.msra.mxu0 0.0
      %2637 = vmatprep.subr.mxu0 0.0
      %2638 = vmatpush1.msra.mxu0 0.0
      %2639 = vmatprep.subr.mxu0 0.0
      %2640 = vmatpush1.msra.mxu0 0.0
      %2641 = vmatprep.subr.mxu0 0.0
      %2642 = vmatpush1.msra.mxu0 0.0
      %2643 = vmatprep.subr.mxu0 0.0
      %2644 = vmatpush1.msra.mxu0 0.0
      %2645 = vmatprep.subr.mxu0 0.0
      %2646 = vmatpush1.msra.mxu0 0.0
      %2647 = vmatprep.subr.mxu0 0.0
      %2648 = vmatpush1.msra.mxu0 0.0
      %2649 = vmatprep.subr.mxu0 0.0
      %2650 = vmatpush1.msra.mxu0 0.0
      %2651 = vmatprep.subr.mxu0 0.0
      %2652 = vmatpush1.msra.mxu0 %v2619
      %2653 = vmatprep.subr.mxu0 0.0
      %2654 = vmatpush2.msra.mxu0 0.0
      %2655 = vmatprep.subr.mxu0 0.0
      %2656 = vmatpush2.msra.mxu0 0.0
      %2657 = vmatprep.subr.mxu0 0.0
      %2658 = vmatpush2.msra.mxu0 0.0
      %2659 = vmatprep.subr.mxu0 0.0
      %2660 = vmatpush2.msra.mxu0 0.0
      %2661 = vmatprep.subr.mxu0 0.0
      %2662 = vmatpush2.msra.mxu0 0.0
      %2663 = vmatprep.subr.mxu0 0.0
      %2664 = vmatpush2.msra.mxu0 0.0
      %2665 = vmatprep.subr.mxu0 0.0
      %2666 = vmatpush2.msra.mxu0 0.0
      %2667 = vmatprep.subr.mxu0 0.0
      %2668 = vmatpush2.msra.mxu0 0.0
      %2669 = vmatprep.subr.mxu0 0.0
      %2670 = vmatpush2.msra.mxu0 0.0
      %2671 = vmatprep.subr.mxu0 0.0
      %2672 = vmatpush2.msra.mxu0 0.0
      %2673 = vmatprep.subr.mxu0 0.0
      %2674 = vmatpush2.msra.mxu0 0.0
      %2675 = vmatprep.subr.mxu0 0.0
      %2676 = vmatpush2.msra.mxu0 0.0
      %2677 = vmatprep.subr.mxu0 0.0
      %2678 = vmatpush2.msra.mxu0 0.0
      %2679 = vmatprep.subr.mxu0 0.0
      %2680 = vmatpush2.msra.mxu0 0.0
      %2681 = vmatprep.subr.mxu0 0.0
      %2682 = vmatpush2.msra.mxu0 0.0
      %2683 = vmatprep.subr.mxu0 0.0
      %2684 = vmatpush2.msra.mxu0 0.0
      %2685 = vmatprep.mubr.f32.mxu0 0.0
      %2686 = vmatmul.mubr.f32.gmra.mxu0 %v2030
      %v2687 = vpop.f32.mrf.mxu0
      %v2688 = vadd.f32 0.0, %v2687
      %v2689 = vpop.f32.mrf.mxu0
      %2690 = vmatprep.mubr.f32.mxu0 0.0
      %2691 = vmatmul.mubr.f32.gmra.mxu0 %v2033
      %v2692 = vpop.f32.mrf.mxu0
      %v2693 = vadd.f32 0.0, %v2692
      %v2694 = vpop.f32.mrf.mxu0
      %2695 = vmatprep.mubr.f32.mxu0 0.0
      %2696 = vmatmul.mubr.f32.gmra.mxu0 %v2036
      %v2697 = vpop.f32.mrf.mxu0
      %v2698 = vadd.f32 0.0, %v2697
      %v2699 = vpop.f32.mrf.mxu0
      %2700 = vmatprep.mubr.f32.mxu0 0.0
      %2701 = vmatmul.mubr.f32.gmra.mxu0 %v2039
      %v2702 = vpop.f32.mrf.mxu0
      %v2703 = vadd.f32 0.0, %v2702
      %v2704 = vpop.f32.mrf.mxu0
      %2705 = vmatprep.mubr.f32.mxu0 0.0
      %2706 = vmatmul.mubr.f32.gmra.mxu0 %v2042
      %v2707 = vpop.f32.mrf.mxu0
      %v2708 = vadd.f32 0.0, %v2707
      %v2709 = vpop.f32.mrf.mxu0
      %2710 = vmatprep.mubr.f32.mxu0 0.0
      %2711 = vmatmul.mubr.f32.gmra.mxu0 %v2045
      %v2712 = vpop.f32.mrf.mxu0
      %v2713 = vadd.f32 0.0, %v2712
      %v2714 = vpop.f32.mrf.mxu0
      %2715 = vmatprep.mubr.f32.mxu0 0.0
      %2716 = vmatmul.mubr.f32.gmra.mxu0 %v2048
      %v2717 = vpop.f32.mrf.mxu0
      %v2718 = vadd.f32 0.0, %v2717
      %v2719 = vpop.f32.mrf.mxu0
      %2720 = vmatprep.mubr.f32.mxu0 0.0
      %2721 = vmatmul.mubr.f32.gmra.mxu0 %v2051
      %v2722 = vpop.f32.mrf.mxu0
      %v2723 = vadd.f32 0.0, %v2722
      %v2724 = vpop.f32.mrf.mxu0
      %2725 = vmatprep.mubr.f32.mxu0 0.0
      %2726 = vmatmul.mubr.f32.gmra.mxu0 %v2054
      %v2727 = vpop.f32.mrf.mxu0
      %v2728 = vadd.f32 0.0, %v2727
      %v2729 = vpop.f32.mrf.mxu0
      %2730 = vmatprep.mubr.f32.mxu0 0.0
      %2731 = vmatmul.mubr.f32.gmra.mxu0 %v2057
      %v2732 = vpop.f32.mrf.mxu0
      %v2733 = vadd.f32 0.0, %v2732
      %v2734 = vpop.f32.mrf.mxu0
      %2735 = vmatprep.mubr.f32.mxu0 0.0
      %2736 = vmatmul.mubr.f32.gmra.mxu0 %v2060
      %v2737 = vpop.f32.mrf.mxu0
      %v2738 = vadd.f32 0.0, %v2737
      %v2739 = vpop.f32.mrf.mxu0
      %2740 = vmatprep.mubr.f32.mxu0 0.0
      %2741 = vmatmul.mubr.f32.gmra.mxu0 %v2063
      %v2742 = vpop.f32.mrf.mxu0
      %v2743 = vadd.f32 0.0, %v2742
      %v2744 = vpop.f32.mrf.mxu0
      %2745 = vmatprep.mubr.f32.mxu0 0.0
      %2746 = vmatmul.mubr.f32.gmra.mxu0 %v2066
      %v2747 = vpop.f32.mrf.mxu0
      %v2748 = vadd.f32 0.0, %v2747
      %v2749 = vpop.f32.mrf.mxu0
      %2750 = vmatprep.mubr.f32.mxu0 0.0
      %2751 = vmatmul.mubr.f32.gmra.mxu0 %v2069
      %v2752 = vpop.f32.mrf.mxu0
      %v2753 = vadd.f32 0.0, %v2752
      %v2754 = vpop.f32.mrf.mxu0
      %2755 = vmatprep.mubr.f32.mxu0 0.0
      %2756 = vmatmul.mubr.f32.gmra.mxu0 %v2072
      %v2757 = vpop.f32.mrf.mxu0
      %v2758 = vadd.f32 0.0, %v2757
      %v2759 = vpop.f32.mrf.mxu0
      %2760 = vmatprep.mubr.f32.mxu0 0.0
      %2761 = vmatmul.mubr.f32.gmra.mxu0 %v2075
      %v2762 = vpop.f32.mrf.mxu0
      %v2763 = vadd.f32 0.0, %v2762
      %v2764 = vpop.f32.mrf.mxu0
      %2765 = vmatprep.mubr.f32.mxu0 0.0
      %2766 = vmatmul.mubr.f32.gmra.mxu0 %v2078
      %v2767 = vpop.f32.mrf.mxu0
      %v2768 = vadd.f32 0.0, %v2767
      %v2769 = vpop.f32.mrf.mxu0
      %2770 = vmatprep.mubr.f32.mxu0 0.0
      %2771 = vmatmul.mubr.f32.gmra.mxu0 %v2081
      %v2772 = vpop.f32.mrf.mxu0
      %v2773 = vadd.f32 0.0, %v2772
      %v2774 = vpop.f32.mrf.mxu0
      %2775 = vmatprep.mubr.f32.mxu0 0.0
      %2776 = vmatmul.mubr.f32.gmra.mxu0 %v2084
      %v2777 = vpop.f32.mrf.mxu0
      %v2778 = vadd.f32 0.0, %v2777
      %v2779 = vpop.f32.mrf.mxu0
      %2780 = vmatprep.mubr.f32.mxu0 0.0
      %2781 = vmatmul.mubr.f32.gmra.mxu0 %v2087
      %v2782 = vpop.f32.mrf.mxu0
      %v2783 = vadd.f32 0.0, %v2782
      %v2784 = vpop.f32.mrf.mxu0
      %2785 = vmatprep.mubr.f32.mxu0 0.0
      %2786 = vmatmul.mubr.f32.gmra.mxu0 %v2090
      %v2787 = vpop.f32.mrf.mxu0
      %v2788 = vadd.f32 0.0, %v2787
      %v2789 = vpop.f32.mrf.mxu0
      %2790 = vmatprep.mubr.f32.mxu0 0.0
      %2791 = vmatmul.mubr.f32.gmra.mxu0 %v2093
      %v2792 = vpop.f32.mrf.mxu0
      %v2793 = vadd.f32 0.0, %v2792
      %v2794 = vpop.f32.mrf.mxu0
      %2795 = vmatprep.mubr.f32.mxu0 0.0
      %2796 = vmatmul.mubr.f32.gmra.mxu0 %v2096
      %v2797 = vpop.f32.mrf.mxu0
      %v2798 = vadd.f32 0.0, %v2797
      %v2799 = vpop.f32.mrf.mxu0
      %2800 = vmatprep.mubr.f32.mxu0 0.0
      %2801 = vmatmul.mubr.f32.gmra.mxu0 %v2099
      %v2802 = vpop.f32.mrf.mxu0
      %v2803 = vadd.f32 0.0, %v2802
      %v2804 = vpop.f32.mrf.mxu0
      %2805 = vmatprep.mubr.f32.mxu0 0.0
      %2806 = vmatmul.mubr.f32.gmra.mxu0 %v2102
      %v2807 = vpop.f32.mrf.mxu0
      %v2808 = vadd.f32 0.0, %v2807
      %v2809 = vpop.f32.mrf.mxu0
      %2810 = vmatprep.mubr.f32.mxu0 0.0
      %2811 = vmatmul.mubr.f32.gmra.mxu0 %v2105
      %v2812 = vpop.f32.mrf.mxu0
      %v2813 = vadd.f32 0.0, %v2812
      %v2814 = vpop.f32.mrf.mxu0
      %2815 = vmatprep.mubr.f32.mxu0 0.0
      %2816 = vmatmul.mubr.f32.gmra.mxu0 %v2108
      %v2817 = vpop.f32.mrf.mxu0
      %v2818 = vadd.f32 0.0, %v2817
      %v2819 = vpop.f32.mrf.mxu0
      %2820 = vmatprep.mubr.f32.mxu0 0.0
      %2821 = vmatmul.mubr.f32.gmra.mxu0 %v2111
      %v2822 = vpop.f32.mrf.mxu0
      %v2823 = vadd.f32 0.0, %v2822
      %v2824 = vpop.f32.mrf.mxu0
      %2825 = vmatprep.mubr.f32.mxu0 0.0
      %2826 = vmatmul.mubr.f32.gmra.mxu0 %v2114
      %v2827 = vpop.f32.mrf.mxu0
      %v2828 = vadd.f32 0.0, %v2827
      %v2829 = vpop.f32.mrf.mxu0
      %2830 = vmatprep.mubr.f32.mxu0 0.0
      %2831 = vmatmul.mubr.f32.gmra.mxu0 %v2117
      %v2832 = vpop.f32.mrf.mxu0
      %v2833 = vadd.f32 0.0, %v2832
      %v2834 = vpop.f32.mrf.mxu0
      %2835 = vmatprep.mubr.f32.mxu0 0.0
      %2836 = vmatmul.mubr.f32.gmra.mxu0 %v2120
      %v2837 = vpop.f32.mrf.mxu0
      %v2838 = vadd.f32 0.0, %v2837
      %v2839 = vpop.f32.mrf.mxu0
      %2840 = vmatprep.mubr.f32.mxu0 0.0
      %2841 = vmatmul.mubr.f32.gmra.mxu0 %v2123
      %v2842 = vpop.f32.mrf.mxu0
      %v2843 = vadd.f32 0.0, %v2842
      %v2844 = vpop.f32.mrf.mxu0
      %2845 = vmatprep.mubr.f32.mxu0 0.0
      %2846 = vmatmul.mubr.f32.gmra.mxu0 %v2126
      %v2847 = vpop.f32.mrf.mxu0
      %v2848 = vadd.f32 0.0, %v2847
      %v2849 = vpop.f32.mrf.mxu0
      %2850 = vmatprep.mubr.f32.mxu0 0.0
      %2851 = vmatmul.mubr.f32.gmra.mxu0 %v2129
      %v2852 = vpop.f32.mrf.mxu0
      %v2853 = vadd.f32 0.0, %v2852
      %v2854 = vpop.f32.mrf.mxu0
      %2855 = vmatprep.mubr.f32.mxu0 0.0
      %2856 = vmatmul.mubr.f32.gmra.mxu0 %v2132
      %v2857 = vpop.f32.mrf.mxu0
      %v2858 = vadd.f32 0.0, %v2857
      %v2859 = vpop.f32.mrf.mxu0
      %2860 = vmatprep.mubr.f32.mxu0 0.0
      %2861 = vmatmul.mubr.f32.gmra.mxu0 %v2135
      %v2862 = vpop.f32.mrf.mxu0
      %v2863 = vadd.f32 0.0, %v2862
      %v2864 = vpop.f32.mrf.mxu0
      %2865 = vmatprep.mubr.f32.mxu0 0.0
      %2866 = vmatmul.mubr.f32.gmra.mxu0 %v2138
      %v2867 = vpop.f32.mrf.mxu0
      %v2868 = vadd.f32 0.0, %v2867
      %v2869 = vpop.f32.mrf.mxu0
      %2870 = vmatprep.mubr.f32.mxu0 0.0
      %2871 = vmatmul.mubr.f32.gmra.mxu0 %v2141
      %v2872 = vpop.f32.mrf.mxu0
      %v2873 = vadd.f32 0.0, %v2872
      %v2874 = vpop.f32.mrf.mxu0
      %2875 = vmatprep.mubr.f32.mxu0 0.0
      %2876 = vmatmul.mubr.f32.gmra.mxu0 %v2144
      %v2877 = vpop.f32.mrf.mxu0
      %v2878 = vadd.f32 0.0, %v2877
      %v2879 = vpop.f32.mrf.mxu0
      %2880 = vmatprep.mubr.f32.mxu0 0.0
      %2881 = vmatmul.mubr.f32.gmra.mxu0 %v2147
      %v2882 = vpop.f32.mrf.mxu0
      %v2883 = vadd.f32 0.0, %v2882
      %v2884 = vpop.f32.mrf.mxu0
      %2885 = vmatprep.mubr.f32.mxu0 0.0
      %2886 = vmatmul.mubr.f32.gmra.mxu0 %v2150
      %v2887 = vpop.f32.mrf.mxu0
      %v2888 = vadd.f32 0.0, %v2887
      %v2889 = vpop.f32.mrf.mxu0
      %2890 = vmatprep.mubr.f32.mxu0 0.0
      %2891 = vmatmul.mubr.f32.gmra.mxu0 %v2153
      %v2892 = vpop.f32.mrf.mxu0
      %v2893 = vadd.f32 0.0, %v2892
      %v2894 = vpop.f32.mrf.mxu0
      %2895 = vmatprep.mubr.f32.mxu0 0.0
      %2896 = vmatmul.mubr.f32.gmra.mxu0 %v2156
      %v2897 = vpop.f32.mrf.mxu0
      %v2898 = vadd.f32 0.0, %v2897
      %v2899 = vpop.f32.mrf.mxu0
      %2900 = vmatprep.mubr.f32.mxu0 0.0
      %2901 = vmatmul.mubr.f32.gmra.mxu0 %v2159
      %v2902 = vpop.f32.mrf.mxu0
      %v2903 = vadd.f32 0.0, %v2902
      %v2904 = vpop.f32.mrf.mxu0
      %2905 = vmatprep.mubr.f32.mxu0 0.0
      %2906 = vmatmul.mubr.f32.gmra.mxu0 %v2162
      %v2907 = vpop.f32.mrf.mxu0
      %v2908 = vadd.f32 0.0, %v2907
      %v2909 = vpop.f32.mrf.mxu0
      %2910 = vdwg.mxu0
      %v2911 = vld [vmem:[#allocation2] sm:$0xff]
      %v2912 = vld [vmem:[#allocation2 + $0x8] sm:$0xff]
      %v2913 = vld [vmem:[#allocation2 + $0x10] sm:$0xff]
      %v2914 = vld [vmem:[#allocation2 + $0x18] sm:$0xff]
      %v2915 = vld [vmem:[#allocation2 + $0x20] sm:$0xff]
      %v2916 = vld [vmem:[#allocation2 + $0x28] sm:$0xff]
      %v2917 = vld [vmem:[#allocation2 + $0x30] sm:$0xff]
      %v2918 = vld [vmem:[#allocation2 + $0x38] sm:$0xff]
      %v2919 = vld [vmem:[#allocation2 + $0x40] sm:$0xff]
      %v2920 = vld [vmem:[#allocation2 + $0x48] sm:$0xff]
      %v2921 = vld [vmem:[#allocation2 + $0x50] sm:$0xff]
      %v2922 = vld [vmem:[#allocation2 + $0x58] sm:$0xff]
      %v2923 = vld [vmem:[#allocation2 + $0x60] sm:$0xff]
      %v2924 = vld [vmem:[#allocation2 + $0x68] sm:$0xff]
      %v2925 = vld [vmem:[#allocation2 + $0x70] sm:$0xff]
      %v2926 = vld [vmem:[#allocation2 + $0x78] sm:$0xff]
      %v2927 = vld [vmem:[#allocation2 + $0x80] sm:$0xff]
      %v2928 = vld [vmem:[#allocation2 + $0x88] sm:$0xff]
      %v2929 = vld [vmem:[#allocation2 + $0x90] sm:$0xff]
      %v2930 = vld [vmem:[#allocation2 + $0x98] sm:$0xff]
      %v2931 = vld [vmem:[#allocation2 + $0xa0] sm:$0xff]
      %v2932 = vld [vmem:[#allocation2 + $0xa8] sm:$0xff]
      %v2933 = vld [vmem:[#allocation2 + $0xb0] sm:$0xff]
      %v2934 = vld [vmem:[#allocation2 + $0xb8] sm:$0xff]
      %v2935 = vld [vmem:[#allocation2 + $0xc0] sm:$0xff]
      %v2936 = vld [vmem:[#allocation2 + $0xc8] sm:$0xff]
      %v2937 = vld [vmem:[#allocation2 + $0xd0] sm:$0xff]
      %v2938 = vld [vmem:[#allocation2 + $0xd8] sm:$0xff]
      %v2939 = vld [vmem:[#allocation2 + $0xe0] sm:$0xff]
      %v2940 = vld [vmem:[#allocation2 + $0xe8] sm:$0xff]
      %v2941 = vld [vmem:[#allocation2 + $0xf0] sm:$0xff]
      %v2942 = vld [vmem:[#allocation2 + $0xf8] sm:$0xff]
      %v2943 = vld [vmem:[#allocation2 + $0x100] sm:$0xff]
      %v2944 = vld [vmem:[#allocation2 + $0x108] sm:$0xff]
      %v2945 = vld [vmem:[#allocation2 + $0x110] sm:$0xff]
      %v2946 = vld [vmem:[#allocation2 + $0x118] sm:$0xff]
      %v2947 = vld [vmem:[#allocation2 + $0x120] sm:$0xff]
      %v2948 = vld [vmem:[#allocation2 + $0x128] sm:$0xff]
      %v2949 = vld [vmem:[#allocation2 + $0x130] sm:$0xff]
      %v2950 = vld [vmem:[#allocation2 + $0x138] sm:$0xff]
      %v2951 = vld [vmem:[#allocation2 + $0x140] sm:$0xff]
      %v2952 = vld [vmem:[#allocation2 + $0x148] sm:$0xff]
      %v2953 = vld [vmem:[#allocation2 + $0x150] sm:$0xff]
      %v2954 = vld [vmem:[#allocation2 + $0x158] sm:$0xff]
      %v2955 = vld [vmem:[#allocation2 + $0x160] sm:$0xff]
      %v2956 = vadd.f32 %v2911, %v2688
      %v2957 = vadd.f32 %v2912, %v2693
      %v2958 = vadd.f32 %v2913, %v2698
      %v2959 = vadd.f32 %v2914, %v2703
      %v2960 = vadd.f32 %v2915, %v2708
      %v2961 = vadd.f32 %v2916, %v2713
      %v2962 = vadd.f32 %v2917, %v2718
      %v2963 = vadd.f32 %v2918, %v2723
      %v2964 = vadd.f32 %v2919, %v2728
      %v2965 = vadd.f32 %v2920, %v2733
      %v2966 = vadd.f32 %v2921, %v2738
      %v2967 = vadd.f32 %v2922, %v2743
      %v2968 = vadd.f32 %v2923, %v2748
      %v2969 = vadd.f32 %v2924, %v2753
      %v2970 = vadd.f32 %v2925, %v2758
      %v2971 = vadd.f32 %v2926, %v2763
      %v2972 = vadd.f32 %v2927, %v2768
      %v2973 = vadd.f32 %v2928, %v2773
      %v2974 = vadd.f32 %v2929, %v2778
      %v2975 = vadd.f32 %v2930, %v2783
      %v2976 = vadd.f32 %v2931, %v2788
      %v2977 = vadd.f32 %v2932, %v2793
      %v2978 = vadd.f32 %v2933, %v2798
      %v2979 = vadd.f32 %v2934, %v2803
      %v2980 = vadd.f32 %v2935, %v2808
      %v2981 = vadd.f32 %v2936, %v2813
      %v2982 = vadd.f32 %v2937, %v2818
      %v2983 = vadd.f32 %v2938, %v2823
      %v2984 = vadd.f32 %v2939, %v2828
      %v2985 = vadd.f32 %v2940, %v2833
      %v2986 = vadd.f32 %v2941, %v2838
      %v2987 = vadd.f32 %v2942, %v2843
      %v2988 = vadd.f32 %v2943, %v2848
      %v2989 = vadd.f32 %v2944, %v2853
      %v2990 = vadd.f32 %v2945, %v2858
      %v2991 = vadd.f32 %v2946, %v2863
      %v2992 = vadd.f32 %v2947, %v2868
      %v2993 = vadd.f32 %v2948, %v2873
      %v2994 = vadd.f32 %v2949, %v2878
      %v2995 = vadd.f32 %v2950, %v2883
      %v2996 = vadd.f32 %v2951, %v2888
      %v2997 = vadd.f32 %v2952, %v2893
      %v2998 = vadd.f32 %v2953, %v2898
      %v2999 = vadd.f32 %v2954, %v2903
      %v3000 = vadd.f32 %v2955, %v2908
      %3001 = vst.msk [vmem:[#allocation2] sm:$0xff] %vm802, %v2956
      %3002 = vst.msk [vmem:[#allocation2 + $0x8] sm:$0xff] %vm802, %v2957
      %3003 = vst.msk [vmem:[#allocation2 + $0x10] sm:$0xff] %vm802, %v2958
      %3004 = vst.msk [vmem:[#allocation2 + $0x18] sm:$0xff] %vm802, %v2959
      %3005 = vst.msk [vmem:[#allocation2 + $0x20] sm:$0xff] %vm802, %v2960
      %3006 = vst.msk [vmem:[#allocation2 + $0x28] sm:$0xff] %vm802, %v2961
      %3007 = vst.msk [vmem:[#allocation2 + $0x30] sm:$0xff] %vm802, %v2962
      %3008 = vst.msk [vmem:[#allocation2 + $0x38] sm:$0xff] %vm802, %v2963
      %3009 = vst.msk [vmem:[#allocation2 + $0x40] sm:$0xff] %vm802, %v2964
      %3010 = vst.msk [vmem:[#allocation2 + $0x48] sm:$0xff] %vm802, %v2965
      %3011 = vst.msk [vmem:[#allocation2 + $0x50] sm:$0xff] %vm802, %v2966
      %3012 = vst.msk [vmem:[#allocation2 + $0x58] sm:$0xff] %vm802, %v2967
      %3013 = vst.msk [vmem:[#allocation2 + $0x60] sm:$0xff] %vm802, %v2968
      %3014 = vst.msk [vmem:[#allocation2 + $0x68] sm:$0xff] %vm802, %v2969
      %3015 = vst.msk [vmem:[#allocation2 + $0x70] sm:$0xff] %vm802, %v2970
      %3016 = vst.msk [vmem:[#allocation2 + $0x78] sm:$0xff] %vm802, %v2971
      %3017 = vst.msk [vmem:[#allocation2 + $0x80] sm:$0xff] %vm802, %v2972
      %3018 = vst.msk [vmem:[#allocation2 + $0x88] sm:$0xff] %vm802, %v2973
      %3019 = vst.msk [vmem:[#allocation2 + $0x90] sm:$0xff] %vm802, %v2974
      %3020 = vst.msk [vmem:[#allocation2 + $0x98] sm:$0xff] %vm802, %v2975
      %3021 = vst.msk [vmem:[#allocation2 + $0xa0] sm:$0xff] %vm802, %v2976
      %3022 = vst.msk [vmem:[#allocation2 + $0xa8] sm:$0xff] %vm802, %v2977
      %3023 = vst.msk [vmem:[#allocation2 + $0xb0] sm:$0xff] %vm802, %v2978
      %3024 = vst.msk [vmem:[#allocation2 + $0xb8] sm:$0xff] %vm802, %v2979
      %3025 = vst.msk [vmem:[#allocation2 + $0xc0] sm:$0xff] %vm802, %v2980
      %3026 = vst.msk [vmem:[#allocation2 + $0xc8] sm:$0xff] %vm802, %v2981
      %3027 = vst.msk [vmem:[#allocation2 + $0xd0] sm:$0xff] %vm802, %v2982
      %3028 = vst.msk [vmem:[#allocation2 + $0xd8] sm:$0xff] %vm802, %v2983
      %3029 = vst.msk [vmem:[#allocation2 + $0xe0] sm:$0xff] %vm802, %v2984
      %3030 = vst.msk [vmem:[#allocation2 + $0xe8] sm:$0xff] %vm802, %v2985
      %3031 = vst.msk [vmem:[#allocation2 + $0xf0] sm:$0xff] %vm802, %v2986
      %3032 = vst.msk [vmem:[#allocation2 + $0xf8] sm:$0xff] %vm802, %v2987
      %3033 = vst.msk [vmem:[#allocation2 + $0x100] sm:$0xff] %vm802, %v2988
      %3034 = vst.msk [vmem:[#allocation2 + $0x108] sm:$0xff] %vm802, %v2989
      %3035 = vst.msk [vmem:[#allocation2 + $0x110] sm:$0xff] %vm802, %v2990
      %3036 = vst.msk [vmem:[#allocation2 + $0x118] sm:$0xff] %vm802, %v2991
      %3037 = vst.msk [vmem:[#allocation2 + $0x120] sm:$0xff] %vm802, %v2992
      %3038 = vst.msk [vmem:[#allocation2 + $0x128] sm:$0xff] %vm802, %v2993
      %3039 = vst.msk [vmem:[#allocation2 + $0x130] sm:$0xff] %vm802, %v2994
      %3040 = vst.msk [vmem:[#allocation2 + $0x138] sm:$0xff] %vm802, %v2995
      %3041 = vst.msk [vmem:[#allocation2 + $0x140] sm:$0xff] %vm802, %v2996
      %3042 = vst.msk [vmem:[#allocation2 + $0x148] sm:$0xff] %vm802, %v2997
      %3043 = vst.msk [vmem:[#allocation2 + $0x150] sm:$0xff] %vm802, %v2998
      %3044 = vst.msk [vmem:[#allocation2 + $0x158] sm:$0xff] %vm802, %v2999
      %3045 = vst.msk [vmem:[#allocation2 + $0x160] sm:$0xff] %vm802, %v3000
      %v3047 = vsel %vm348, %v2016, 0
      %v3050 = vsel %vm348, %v2015, 0
      %v3053 = vsel %vm348, %v2014, 0
      %3055 = vmatprep.subr.mxu0 0.0
      %3056 = vmatpush1.msra.mxu0 0.0
      %3057 = vmatprep.subr.mxu0 0.0
      %3058 = vmatpush1.msra.mxu0 0.0
      %3059 = vmatprep.subr.mxu0 0.0
      %3060 = vmatpush1.msra.mxu0 0.0
      %3061 = vmatprep.subr.mxu0 0.0
      %3062 = vmatpush1.msra.mxu0 0.0
      %3063 = vmatprep.subr.mxu0 0.0
      %3064 = vmatpush1.msra.mxu0 0.0
      %3065 = vmatprep.subr.mxu0 0.0
      %3066 = vmatpush1.msra.mxu0 0.0
      %3067 = vmatprep.subr.mxu0 0.0
      %3068 = vmatpush1.msra.mxu0 0.0
      %3069 = vmatprep.subr.mxu0 0.0
      %3070 = vmatpush1.msra.mxu0 0.0
      %3071 = vmatprep.subr.mxu0 0.0
      %3072 = vmatpush1.msra.mxu0 0.0
      %3073 = vmatprep.subr.mxu0 0.0
      %3074 = vmatpush1.msra.mxu0 0.0
      %3075 = vmatprep.subr.mxu0 0.0
      %3076 = vmatpush1.msra.mxu0 0.0
      %3077 = vmatprep.subr.mxu0 0.0
      %3078 = vmatpush1.msra.mxu0 0.0
      %3079 = vmatprep.subr.mxu0 0.0
      %3080 = vmatpush1.msra.mxu0 0.0
      %3081 = vmatprep.subr.mxu0 0.0
      %3082 = vmatpush1.msra.mxu0 0.0
      %3083 = vmatprep.subr.mxu0 0.0
      %3084 = vmatpush1.msra.mxu0 0.0
      %3085 = vmatprep.subr.mxu0 0.0
      %3086 = vmatpush1.msra.mxu0 %v2619
      %3087 = vmatprep.subr.mxu0 0.0
      %3088 = vmatpush2.msra.mxu0 0.0
      %3089 = vmatprep.subr.mxu0 0.0
      %3090 = vmatpush2.msra.mxu0 0.0
      %3091 = vmatprep.subr.mxu0 0.0
      %3092 = vmatpush2.msra.mxu0 0.0
      %3093 = vmatprep.subr.mxu0 0.0
      %3094 = vmatpush2.msra.mxu0 0.0
      %3095 = vmatprep.subr.mxu0 0.0
      %3096 = vmatpush2.msra.mxu0 0.0
      %3097 = vmatprep.subr.mxu0 0.0
      %3098 = vmatpush2.msra.mxu0 0.0
      %3099 = vmatprep.subr.mxu0 0.0
      %3100 = vmatpush2.msra.mxu0 0.0
      %3101 = vmatprep.subr.mxu0 0.0
      %3102 = vmatpush2.msra.mxu0 0.0
      %3103 = vmatprep.subr.mxu0 0.0
      %3104 = vmatpush2.msra.mxu0 0.0
      %3105 = vmatprep.subr.mxu0 0.0
      %3106 = vmatpush2.msra.mxu0 0.0
      %3107 = vmatprep.subr.mxu0 0.0
      %3108 = vmatpush2.msra.mxu0 0.0
      %3109 = vmatprep.subr.mxu0 0.0
      %3110 = vmatpush2.msra.mxu0 0.0
      %3111 = vmatprep.subr.mxu0 0.0
      %3112 = vmatpush2.msra.mxu0 0.0
      %3113 = vmatprep.subr.mxu0 0.0
      %3114 = vmatpush2.msra.mxu0 0.0
      %3115 = vmatprep.subr.mxu0 0.0
      %3116 = vmatpush2.msra.mxu0 0.0
      %3117 = vmatprep.subr.mxu0 0.0
      %3118 = vmatpush2.msra.mxu0 0.0
      %3119 = vmatprep.mubr.f32.mxu0 0.0
      %3120 = vmatmul.mubr.f32.gmra.mxu0 %v3047
      %v3121 = vpop.f32.mrf.mxu0
      %v3122 = vadd.f32 0.0, %v3121
      %v3123 = vpop.f32.mrf.mxu0
      %3124 = vmatprep.mubr.f32.mxu0 0.0
      %3125 = vmatmul.mubr.f32.gmra.mxu0 %v3050
      %v3126 = vpop.f32.mrf.mxu0
      %v3127 = vadd.f32 0.0, %v3126
      %v3128 = vpop.f32.mrf.mxu0
      %3129 = vmatprep.mubr.f32.mxu0 0.0
      %3130 = vmatmul.mubr.f32.gmra.mxu0 %v3053
      %v3131 = vpop.f32.mrf.mxu0
      %v3132 = vadd.f32 0.0, %v3131
      %v3133 = vpop.f32.mrf.mxu0
      %3134 = vdwg.mxu0
      %v3135 = vld [vmem:[#allocation2 + $0x168] sm:$0xff]
      %v3136 = vld [vmem:[#allocation2 + $0x170] sm:$0xff]
      %v3137 = vld [vmem:[#allocation2 + $0x178] sm:$0xff]
      %v3138 = vadd.f32 %v3135, %v3122
      %v3139 = vadd.f32 %v3136, %v3127
      %v3140 = vadd.f32 %v3137, %v3132
      %3141 = vst.msk [vmem:[#allocation2 + $0x168] sm:$0xff] %vm802, %v3138
      %3142 = vst.msk [vmem:[#allocation2 + $0x170] sm:$0xff] %vm802, %v3139
      %3143 = vst.msk [vmem:[#allocation2 + $0x178] sm:$0xff] %vm802, %v3140
      %s3144 = scalar_lea.vmem %s2, 28
      %v3145 = vld [vmem:[%s3144] sm:$0xf]
      %v3147 = vsel %vm493, %v3145, 0
      %3149 = vmatprep.subr.mxu0 0.0
      %3150 = vmatpush1.msra.mxu0 0.0
      %3151 = vmatprep.subr.mxu0 0.0
      %3152 = vmatpush1.msra.mxu0 0.0
      %3153 = vmatprep.subr.mxu0 0.0
      %3154 = vmatpush1.msra.mxu0 0.0
      %3155 = vmatprep.subr.mxu0 0.0
      %3156 = vmatpush1.msra.mxu0 0.0
      %3157 = vmatprep.subr.mxu0 0.0
      %3158 = vmatpush1.msra.mxu0 0.0
      %3159 = vmatprep.subr.mxu0 0.0
      %3160 = vmatpush1.msra.mxu0 0.0
      %3161 = vmatprep.subr.mxu0 0.0
      %3162 = vmatpush1.msra.mxu0 0.0
      %3163 = vmatprep.subr.mxu0 0.0
      %3164 = vmatpush1.msra.mxu0 0.0
      %3165 = vmatprep.subr.mxu0 0.0
      %3166 = vmatpush1.msra.mxu0 0.0
      %3167 = vmatprep.subr.mxu0 0.0
      %3168 = vmatpush1.msra.mxu0 0.0
      %3169 = vmatprep.subr.mxu0 0.0
      %3170 = vmatpush1.msra.mxu0 0.0
      %3171 = vmatprep.subr.mxu0 0.0
      %3172 = vmatpush1.msra.mxu0 0.0
      %3173 = vmatprep.subr.mxu0 0.0
      %3174 = vmatpush1.msra.mxu0 0.0
      %3175 = vmatprep.subr.mxu0 0.0
      %3176 = vmatpush1.msra.mxu0 0.0
      %3177 = vmatprep.subr.mxu0 0.0
      %3178 = vmatpush1.msra.mxu0 0.0
      %3179 = vmatprep.subr.mxu0 0.0
      %3180 = vmatpush1.msra.mxu0 %v3147
      %3181 = vmatprep.subr.mxu0 0.0
      %3182 = vmatpush2.msra.mxu0 0.0
      %3183 = vmatprep.subr.mxu0 0.0
      %3184 = vmatpush2.msra.mxu0 0.0
      %3185 = vmatprep.subr.mxu0 0.0
      %3186 = vmatpush2.msra.mxu0 0.0
      %3187 = vmatprep.subr.mxu0 0.0
      %3188 = vmatpush2.msra.mxu0 0.0
      %3189 = vmatprep.subr.mxu0 0.0
      %3190 = vmatpush2.msra.mxu0 0.0
      %3191 = vmatprep.subr.mxu0 0.0
      %3192 = vmatpush2.msra.mxu0 0.0
      %3193 = vmatprep.subr.mxu0 0.0
      %3194 = vmatpush2.msra.mxu0 0.0
      %3195 = vmatprep.subr.mxu0 0.0
      %3196 = vmatpush2.msra.mxu0 0.0
      %3197 = vmatprep.subr.mxu0 0.0
      %3198 = vmatpush2.msra.mxu0 0.0
      %3199 = vmatprep.subr.mxu0 0.0
      %3200 = vmatpush2.msra.mxu0 0.0
      %3201 = vmatprep.subr.mxu0 0.0
      %3202 = vmatpush2.msra.mxu0 0.0
      %3203 = vmatprep.subr.mxu0 0.0
      %3204 = vmatpush2.msra.mxu0 0.0
      %3205 = vmatprep.subr.mxu0 0.0
      %3206 = vmatpush2.msra.mxu0 0.0
      %3207 = vmatprep.subr.mxu0 0.0
      %3208 = vmatpush2.msra.mxu0 0.0
      %3209 = vmatprep.subr.mxu0 0.0
      %3210 = vmatpush2.msra.mxu0 0.0
      %3211 = vmatprep.subr.mxu0 0.0
      %3212 = vmatpush2.msra.mxu0 0.0
      %3213 = vmatprep.mubr.f32.mxu0 0.0
      %3214 = vmatmul.mubr.f32.gmra.mxu0 %v2039
      %v3215 = vpop.f32.mrf.mxu0
      %v3216 = vadd.f32 0.0, %v3215
      %v3217 = vpop.f32.mrf.mxu0
      %3218 = vmatprep.mubr.f32.mxu0 0.0
      %3219 = vmatmul.mubr.f32.gmra.mxu0 %v2042
      %v3220 = vpop.f32.mrf.mxu0
      %v3221 = vadd.f32 0.0, %v3220
      %v3222 = vpop.f32.mrf.mxu0
      %3223 = vmatprep.mubr.f32.mxu0 0.0
      %3224 = vmatmul.mubr.f32.gmra.mxu0 %v2045
      %v3225 = vpop.f32.mrf.mxu0
      %v3226 = vadd.f32 0.0, %v3225
      %v3227 = vpop.f32.mrf.mxu0
      %3228 = vmatprep.mubr.f32.mxu0 0.0
      %3229 = vmatmul.mubr.f32.gmra.mxu0 %v2048
      %v3230 = vpop.f32.mrf.mxu0
      %v3231 = vadd.f32 0.0, %v3230
      %v3232 = vpop.f32.mrf.mxu0
      %3233 = vmatprep.mubr.f32.mxu0 0.0
      %3234 = vmatmul.mubr.f32.gmra.mxu0 %v2051
      %v3235 = vpop.f32.mrf.mxu0
      %v3236 = vadd.f32 0.0, %v3235
      %v3237 = vpop.f32.mrf.mxu0
      %3238 = vmatprep.mubr.f32.mxu0 0.0
      %3239 = vmatmul.mubr.f32.gmra.mxu0 %v2054
      %v3240 = vpop.f32.mrf.mxu0
      %v3241 = vadd.f32 0.0, %v3240
      %v3242 = vpop.f32.mrf.mxu0
      %3243 = vmatprep.mubr.f32.mxu0 0.0
      %3244 = vmatmul.mubr.f32.gmra.mxu0 %v2057
      %v3245 = vpop.f32.mrf.mxu0
      %v3246 = vadd.f32 0.0, %v3245
      %v3247 = vpop.f32.mrf.mxu0
      %3248 = vmatprep.mubr.f32.mxu0 0.0
      %3249 = vmatmul.mubr.f32.gmra.mxu0 %v2060
      %v3250 = vpop.f32.mrf.mxu0
      %v3251 = vadd.f32 0.0, %v3250
      %v3252 = vpop.f32.mrf.mxu0
      %3253 = vmatprep.mubr.f32.mxu0 0.0
      %3254 = vmatmul.mubr.f32.gmra.mxu0 %v2063
      %v3255 = vpop.f32.mrf.mxu0
      %v3256 = vadd.f32 0.0, %v3255
      %v3257 = vpop.f32.mrf.mxu0
      %3258 = vmatprep.mubr.f32.mxu0 0.0
      %3259 = vmatmul.mubr.f32.gmra.mxu0 %v2066
      %v3260 = vpop.f32.mrf.mxu0
      %v3261 = vadd.f32 0.0, %v3260
      %v3262 = vpop.f32.mrf.mxu0
      %3263 = vmatprep.mubr.f32.mxu0 0.0
      %3264 = vmatmul.mubr.f32.gmra.mxu0 %v2069
      %v3265 = vpop.f32.mrf.mxu0
      %v3266 = vadd.f32 0.0, %v3265
      %v3267 = vpop.f32.mrf.mxu0
      %3268 = vmatprep.mubr.f32.mxu0 0.0
      %3269 = vmatmul.mubr.f32.gmra.mxu0 %v2072
      %v3270 = vpop.f32.mrf.mxu0
      %v3271 = vadd.f32 0.0, %v3270
      %v3272 = vpop.f32.mrf.mxu0
      %3273 = vmatprep.mubr.f32.mxu0 0.0
      %3274 = vmatmul.mubr.f32.gmra.mxu0 %v2075
      %v3275 = vpop.f32.mrf.mxu0
      %v3276 = vadd.f32 0.0, %v3275
      %v3277 = vpop.f32.mrf.mxu0
      %3278 = vmatprep.mubr.f32.mxu0 0.0
      %3279 = vmatmul.mubr.f32.gmra.mxu0 %v2078
      %v3280 = vpop.f32.mrf.mxu0
      %v3281 = vadd.f32 0.0, %v3280
      %v3282 = vpop.f32.mrf.mxu0
      %3283 = vmatprep.mubr.f32.mxu0 0.0
      %3284 = vmatmul.mubr.f32.gmra.mxu0 %v2081
      %v3285 = vpop.f32.mrf.mxu0
      %v3286 = vadd.f32 0.0, %v3285
      %v3287 = vpop.f32.mrf.mxu0
      %3288 = vmatprep.mubr.f32.mxu0 0.0
      %3289 = vmatmul.mubr.f32.gmra.mxu0 %v2084
      %v3290 = vpop.f32.mrf.mxu0
      %v3291 = vadd.f32 0.0, %v3290
      %v3292 = vpop.f32.mrf.mxu0
      %3293 = vmatprep.mubr.f32.mxu0 0.0
      %3294 = vmatmul.mubr.f32.gmra.mxu0 %v2087
      %v3295 = vpop.f32.mrf.mxu0
      %v3296 = vadd.f32 0.0, %v3295
      %v3297 = vpop.f32.mrf.mxu0
      %3298 = vmatprep.mubr.f32.mxu0 0.0
      %3299 = vmatmul.mubr.f32.gmra.mxu0 %v2090
      %v3300 = vpop.f32.mrf.mxu0
      %v3301 = vadd.f32 0.0, %v3300
      %v3302 = vpop.f32.mrf.mxu0
      %3303 = vmatprep.mubr.f32.mxu0 0.0
      %3304 = vmatmul.mubr.f32.gmra.mxu0 %v2093
      %v3305 = vpop.f32.mrf.mxu0
      %v3306 = vadd.f32 0.0, %v3305
      %v3307 = vpop.f32.mrf.mxu0
      %3308 = vmatprep.mubr.f32.mxu0 0.0
      %3309 = vmatmul.mubr.f32.gmra.mxu0 %v2096
      %v3310 = vpop.f32.mrf.mxu0
      %v3311 = vadd.f32 0.0, %v3310
      %v3312 = vpop.f32.mrf.mxu0
      %3313 = vmatprep.mubr.f32.mxu0 0.0
      %3314 = vmatmul.mubr.f32.gmra.mxu0 %v2099
      %v3315 = vpop.f32.mrf.mxu0
      %v3316 = vadd.f32 0.0, %v3315
      %v3317 = vpop.f32.mrf.mxu0
      %3318 = vmatprep.mubr.f32.mxu0 0.0
      %3319 = vmatmul.mubr.f32.gmra.mxu0 %v2102
      %v3320 = vpop.f32.mrf.mxu0
      %v3321 = vadd.f32 0.0, %v3320
      %v3322 = vpop.f32.mrf.mxu0
      %3323 = vmatprep.mubr.f32.mxu0 0.0
      %3324 = vmatmul.mubr.f32.gmra.mxu0 %v2105
      %v3325 = vpop.f32.mrf.mxu0
      %v3326 = vadd.f32 0.0, %v3325
      %v3327 = vpop.f32.mrf.mxu0
      %3328 = vmatprep.mubr.f32.mxu0 0.0
      %3329 = vmatmul.mubr.f32.gmra.mxu0 %v2108
      %v3330 = vpop.f32.mrf.mxu0
      %v3331 = vadd.f32 0.0, %v3330
      %v3332 = vpop.f32.mrf.mxu0
      %3333 = vmatprep.mubr.f32.mxu0 0.0
      %3334 = vmatmul.mubr.f32.gmra.mxu0 %v2111
      %v3335 = vpop.f32.mrf.mxu0
      %v3336 = vadd.f32 0.0, %v3335
      %v3337 = vpop.f32.mrf.mxu0
      %3338 = vmatprep.mubr.f32.mxu0 0.0
      %3339 = vmatmul.mubr.f32.gmra.mxu0 %v2114
      %v3340 = vpop.f32.mrf.mxu0
      %v3341 = vadd.f32 0.0, %v3340
      %v3342 = vpop.f32.mrf.mxu0
      %3343 = vmatprep.mubr.f32.mxu0 0.0
      %3344 = vmatmul.mubr.f32.gmra.mxu0 %v2117
      %v3345 = vpop.f32.mrf.mxu0
      %v3346 = vadd.f32 0.0, %v3345
      %v3347 = vpop.f32.mrf.mxu0
      %3348 = vmatprep.mubr.f32.mxu0 0.0
      %3349 = vmatmul.mubr.f32.gmra.mxu0 %v2120
      %v3350 = vpop.f32.mrf.mxu0
      %v3351 = vadd.f32 0.0, %v3350
      %v3352 = vpop.f32.mrf.mxu0
      %3353 = vmatprep.mubr.f32.mxu0 0.0
      %3354 = vmatmul.mubr.f32.gmra.mxu0 %v2123
      %v3355 = vpop.f32.mrf.mxu0
      %v3356 = vadd.f32 0.0, %v3355
      %v3357 = vpop.f32.mrf.mxu0
      %3358 = vmatprep.mubr.f32.mxu0 0.0
      %3359 = vmatmul.mubr.f32.gmra.mxu0 %v2126
      %v3360 = vpop.f32.mrf.mxu0
      %v3361 = vadd.f32 0.0, %v3360
      %v3362 = vpop.f32.mrf.mxu0
      %3363 = vmatprep.mubr.f32.mxu0 0.0
      %3364 = vmatmul.mubr.f32.gmra.mxu0 %v2129
      %v3365 = vpop.f32.mrf.mxu0
      %v3366 = vadd.f32 0.0, %v3365
      %v3367 = vpop.f32.mrf.mxu0
      %3368 = vmatprep.mubr.f32.mxu0 0.0
      %3369 = vmatmul.mubr.f32.gmra.mxu0 %v2132
      %v3370 = vpop.f32.mrf.mxu0
      %v3371 = vadd.f32 0.0, %v3370
      %v3372 = vpop.f32.mrf.mxu0
      %3373 = vmatprep.mubr.f32.mxu0 0.0
      %3374 = vmatmul.mubr.f32.gmra.mxu0 %v2135
      %v3375 = vpop.f32.mrf.mxu0
      %v3376 = vadd.f32 0.0, %v3375
      %v3377 = vpop.f32.mrf.mxu0
      %3378 = vmatprep.mubr.f32.mxu0 0.0
      %3379 = vmatmul.mubr.f32.gmra.mxu0 %v2138
      %v3380 = vpop.f32.mrf.mxu0
      %v3381 = vadd.f32 0.0, %v3380
      %v3382 = vpop.f32.mrf.mxu0
      %3383 = vmatprep.mubr.f32.mxu0 0.0
      %3384 = vmatmul.mubr.f32.gmra.mxu0 %v2141
      %v3385 = vpop.f32.mrf.mxu0
      %v3386 = vadd.f32 0.0, %v3385
      %v3387 = vpop.f32.mrf.mxu0
      %3388 = vmatprep.mubr.f32.mxu0 0.0
      %3389 = vmatmul.mubr.f32.gmra.mxu0 %v2144
      %v3390 = vpop.f32.mrf.mxu0
      %v3391 = vadd.f32 0.0, %v3390
      %v3392 = vpop.f32.mrf.mxu0
      %3393 = vmatprep.mubr.f32.mxu0 0.0
      %3394 = vmatmul.mubr.f32.gmra.mxu0 %v2147
      %v3395 = vpop.f32.mrf.mxu0
      %v3396 = vadd.f32 0.0, %v3395
      %v3397 = vpop.f32.mrf.mxu0
      %3398 = vmatprep.mubr.f32.mxu0 0.0
      %3399 = vmatmul.mubr.f32.gmra.mxu0 %v2150
      %v3400 = vpop.f32.mrf.mxu0
      %v3401 = vadd.f32 0.0, %v3400
      %v3402 = vpop.f32.mrf.mxu0
      %3403 = vmatprep.mubr.f32.mxu0 0.0
      %3404 = vmatmul.mubr.f32.gmra.mxu0 %v2153
      %v3405 = vpop.f32.mrf.mxu0
      %v3406 = vadd.f32 0.0, %v3405
      %v3407 = vpop.f32.mrf.mxu0
      %3408 = vmatprep.mubr.f32.mxu0 0.0
      %3409 = vmatmul.mubr.f32.gmra.mxu0 %v2156
      %v3410 = vpop.f32.mrf.mxu0
      %v3411 = vadd.f32 0.0, %v3410
      %v3412 = vpop.f32.mrf.mxu0
      %3413 = vmatprep.mubr.f32.mxu0 0.0
      %3414 = vmatmul.mubr.f32.gmra.mxu0 %v2159
      %v3415 = vpop.f32.mrf.mxu0
      %v3416 = vadd.f32 0.0, %v3415
      %v3417 = vpop.f32.mrf.mxu0
      %3418 = vmatprep.mubr.f32.mxu0 0.0
      %3419 = vmatmul.mubr.f32.gmra.mxu0 %v2162
      %v3420 = vpop.f32.mrf.mxu0
      %v3421 = vadd.f32 0.0, %v3420
      %v3422 = vpop.f32.mrf.mxu0
      %3423 = vdwg.mxu0
      %v3424 = vld [vmem:[#allocation2] sm:$0xff]
      %v3425 = vld [vmem:[#allocation2 + $0x8] sm:$0xff]
      %v3426 = vld [vmem:[#allocation2 + $0x10] sm:$0xff]
      %v3427 = vld [vmem:[#allocation2 + $0x18] sm:$0xff]
      %v3428 = vld [vmem:[#allocation2 + $0x20] sm:$0xff]
      %v3429 = vld [vmem:[#allocation2 + $0x28] sm:$0xff]
      %v3430 = vld [vmem:[#allocation2 + $0x30] sm:$0xff]
      %v3431 = vld [vmem:[#allocation2 + $0x38] sm:$0xff]
      %v3432 = vld [vmem:[#allocation2 + $0x40] sm:$0xff]
      %v3433 = vld [vmem:[#allocation2 + $0x48] sm:$0xff]
      %v3434 = vld [vmem:[#allocation2 + $0x50] sm:$0xff]
      %v3435 = vld [vmem:[#allocation2 + $0x58] sm:$0xff]
      %v3436 = vld [vmem:[#allocation2 + $0x60] sm:$0xff]
      %v3437 = vld [vmem:[#allocation2 + $0x68] sm:$0xff]
      %v3438 = vld [vmem:[#allocation2 + $0x70] sm:$0xff]
      %v3439 = vld [vmem:[#allocation2 + $0x78] sm:$0xff]
      %v3440 = vld [vmem:[#allocation2 + $0x80] sm:$0xff]
      %v3441 = vld [vmem:[#allocation2 + $0x88] sm:$0xff]
      %v3442 = vld [vmem:[#allocation2 + $0x90] sm:$0xff]
      %v3443 = vld [vmem:[#allocation2 + $0x98] sm:$0xff]
      %v3444 = vld [vmem:[#allocation2 + $0xa0] sm:$0xff]
      %v3445 = vld [vmem:[#allocation2 + $0xa8] sm:$0xff]
      %v3446 = vld [vmem:[#allocation2 + $0xb0] sm:$0xff]
      %v3447 = vld [vmem:[#allocation2 + $0xb8] sm:$0xff]
      %v3448 = vld [vmem:[#allocation2 + $0xc0] sm:$0xff]
      %v3449 = vld [vmem:[#allocation2 + $0xc8] sm:$0xff]
      %v3450 = vld [vmem:[#allocation2 + $0xd0] sm:$0xff]
      %v3451 = vld [vmem:[#allocation2 + $0xd8] sm:$0xff]
      %v3452 = vld [vmem:[#allocation2 + $0xe0] sm:$0xff]
      %v3453 = vld [vmem:[#allocation2 + $0xe8] sm:$0xff]
      %v3454 = vld [vmem:[#allocation2 + $0xf0] sm:$0xff]
      %v3455 = vld [vmem:[#allocation2 + $0xf8] sm:$0xff]
      %v3456 = vld [vmem:[#allocation2 + $0x100] sm:$0xff]
      %v3457 = vld [vmem:[#allocation2 + $0x108] sm:$0xff]
      %v3458 = vld [vmem:[#allocation2 + $0x110] sm:$0xff]
      %v3459 = vld [vmem:[#allocation2 + $0x118] sm:$0xff]
      %v3460 = vld [vmem:[#allocation2 + $0x120] sm:$0xff]
      %v3461 = vld [vmem:[#allocation2 + $0x128] sm:$0xff]
      %v3462 = vld [vmem:[#allocation2 + $0x130] sm:$0xff]
      %v3463 = vld [vmem:[#allocation2 + $0x138] sm:$0xff]
      %v3464 = vld [vmem:[#allocation2 + $0x140] sm:$0xff]
      %v3465 = vld [vmem:[#allocation2 + $0x148] sm:$0xff]
      %v3466 = vadd.f32 %v3424, %v3216
      %v3467 = vadd.f32 %v3425, %v3221
      %v3468 = vadd.f32 %v3426, %v3226
      %v3469 = vadd.f32 %v3427, %v3231
      %v3470 = vadd.f32 %v3428, %v3236
      %v3471 = vadd.f32 %v3429, %v3241
      %v3472 = vadd.f32 %v3430, %v3246
      %v3473 = vadd.f32 %v3431, %v3251
      %v3474 = vadd.f32 %v3432, %v3256
      %v3475 = vadd.f32 %v3433, %v3261
      %v3476 = vadd.f32 %v3434, %v3266
      %v3477 = vadd.f32 %v3435, %v3271
      %v3478 = vadd.f32 %v3436, %v3276
      %v3479 = vadd.f32 %v3437, %v3281
      %v3480 = vadd.f32 %v3438, %v3286
      %v3481 = vadd.f32 %v3439, %v3291
      %v3482 = vadd.f32 %v3440, %v3296
      %v3483 = vadd.f32 %v3441, %v3301
      %v3484 = vadd.f32 %v3442, %v3306
      %v3485 = vadd.f32 %v3443, %v3311
      %v3486 = vadd.f32 %v3444, %v3316
      %v3487 = vadd.f32 %v3445, %v3321
      %v3488 = vadd.f32 %v3446, %v3326
      %v3489 = vadd.f32 %v3447, %v3331
      %v3490 = vadd.f32 %v3448, %v3336
      %v3491 = vadd.f32 %v3449, %v3341
      %v3492 = vadd.f32 %v3450, %v3346
      %v3493 = vadd.f32 %v3451, %v3351
      %v3494 = vadd.f32 %v3452, %v3356
      %v3495 = vadd.f32 %v3453, %v3361
      %v3496 = vadd.f32 %v3454, %v3366
      %v3497 = vadd.f32 %v3455, %v3371
      %v3498 = vadd.f32 %v3456, %v3376
      %v3499 = vadd.f32 %v3457, %v3381
      %v3500 = vadd.f32 %v3458, %v3386
      %v3501 = vadd.f32 %v3459, %v3391
      %v3502 = vadd.f32 %v3460, %v3396
      %v3503 = vadd.f32 %v3461, %v3401
      %v3504 = vadd.f32 %v3462, %v3406
      %v3505 = vadd.f32 %v3463, %v3411
      %v3506 = vadd.f32 %v3464, %v3416
      %v3507 = vadd.f32 %v3465, %v3421
      %3508 = vst.msk [vmem:[#allocation2] sm:$0xff] %vm802, %v3466
      %3509 = vst.msk [vmem:[#allocation2 + $0x8] sm:$0xff] %vm802, %v3467
      %3510 = vst.msk [vmem:[#allocation2 + $0x10] sm:$0xff] %vm802, %v3468
      %3511 = vst.msk [vmem:[#allocation2 + $0x18] sm:$0xff] %vm802, %v3469
      %3512 = vst.msk [vmem:[#allocation2 + $0x20] sm:$0xff] %vm802, %v3470
      %3513 = vst.msk [vmem:[#allocation2 + $0x28] sm:$0xff] %vm802, %v3471
      %3514 = vst.msk [vmem:[#allocation2 + $0x30] sm:$0xff] %vm802, %v3472
      %3515 = vst.msk [vmem:[#allocation2 + $0x38] sm:$0xff] %vm802, %v3473
      %3516 = vst.msk [vmem:[#allocation2 + $0x40] sm:$0xff] %vm802, %v3474
      %3517 = vst.msk [vmem:[#allocation2 + $0x48] sm:$0xff] %vm802, %v3475
      %3518 = vst.msk [vmem:[#allocation2 + $0x50] sm:$0xff] %vm802, %v3476
      %3519 = vst.msk [vmem:[#allocation2 + $0x58] sm:$0xff] %vm802, %v3477
      %3520 = vst.msk [vmem:[#allocation2 + $0x60] sm:$0xff] %vm802, %v3478
      %3521 = vst.msk [vmem:[#allocation2 + $0x68] sm:$0xff] %vm802, %v3479
      %3522 = vst.msk [vmem:[#allocation2 + $0x70] sm:$0xff] %vm802, %v3480
      %3523 = vst.msk [vmem:[#allocation2 + $0x78] sm:$0xff] %vm802, %v3481
      %3524 = vst.msk [vmem:[#allocation2 + $0x80] sm:$0xff] %vm802, %v3482
      %3525 = vst.msk [vmem:[#allocation2 + $0x88] sm:$0xff] %vm802, %v3483
      %3526 = vst.msk [vmem:[#allocation2 + $0x90] sm:$0xff] %vm802, %v3484
      %3527 = vst.msk [vmem:[#allocation2 + $0x98] sm:$0xff] %vm802, %v3485
      %3528 = vst.msk [vmem:[#allocation2 + $0xa0] sm:$0xff] %vm802, %v3486
      %3529 = vst.msk [vmem:[#allocation2 + $0xa8] sm:$0xff] %vm802, %v3487
      %3530 = vst.msk [vmem:[#allocation2 + $0xb0] sm:$0xff] %vm802, %v3488
      %3531 = vst.msk [vmem:[#allocation2 + $0xb8] sm:$0xff] %vm802, %v3489
      %3532 = vst.msk [vmem:[#allocation2 + $0xc0] sm:$0xff] %vm802, %v3490
      %3533 = vst.msk [vmem:[#allocation2 + $0xc8] sm:$0xff] %vm802, %v3491
      %3534 = vst.msk [vmem:[#allocation2 + $0xd0] sm:$0xff] %vm802, %v3492
      %3535 = vst.msk [vmem:[#allocation2 + $0xd8] sm:$0xff] %vm802, %v3493
      %3536 = vst.msk [vmem:[#allocation2 + $0xe0] sm:$0xff] %vm802, %v3494
      %3537 = vst.msk [vmem:[#allocation2 + $0xe8] sm:$0xff] %vm802, %v3495
      %3538 = vst.msk [vmem:[#allocation2 + $0xf0] sm:$0xff] %vm802, %v3496
      %3539 = vst.msk [vmem:[#allocation2 + $0xf8] sm:$0xff] %vm802, %v3497
      %3540 = vst.msk [vmem:[#allocation2 + $0x100] sm:$0xff] %vm802, %v3498
      %3541 = vst.msk [vmem:[#allocation2 + $0x108] sm:$0xff] %vm802, %v3499
      %3542 = vst.msk [vmem:[#allocation2 + $0x110] sm:$0xff] %vm802, %v3500
      %3543 = vst.msk [vmem:[#allocation2 + $0x118] sm:$0xff] %vm802, %v3501
      %3544 = vst.msk [vmem:[#allocation2 + $0x120] sm:$0xff] %vm802, %v3502
      %3545 = vst.msk [vmem:[#allocation2 + $0x128] sm:$0xff] %vm802, %v3503
      %3546 = vst.msk [vmem:[#allocation2 + $0x130] sm:$0xff] %vm802, %v3504
      %3547 = vst.msk [vmem:[#allocation2 + $0x138] sm:$0xff] %vm802, %v3505
      %3548 = vst.msk [vmem:[#allocation2 + $0x140] sm:$0xff] %vm802, %v3506
      %3549 = vst.msk [vmem:[#allocation2 + $0x148] sm:$0xff] %vm802, %v3507
      %v3551 = vsel %vm348, %v2013, 0
      %v3554 = vsel %vm348, %v2012, 0
      %v3557 = vsel %vm348, %v2017, 0
      %3559 = vmatprep.subr.mxu0 0.0
      %3560 = vmatpush1.msra.mxu0 0.0
      %3561 = vmatprep.subr.mxu0 0.0
      %3562 = vmatpush1.msra.mxu0 0.0
      %3563 = vmatprep.subr.mxu0 0.0
      %3564 = vmatpush1.msra.mxu0 0.0
      %3565 = vmatprep.subr.mxu0 0.0
      %3566 = vmatpush1.msra.mxu0 0.0
      %3567 = vmatprep.subr.mxu0 0.0
      %3568 = vmatpush1.msra.mxu0 0.0
      %3569 = vmatprep.subr.mxu0 0.0
      %3570 = vmatpush1.msra.mxu0 0.0
      %3571 = vmatprep.subr.mxu0 0.0
      %3572 = vmatpush1.msra.mxu0 0.0
      %3573 = vmatprep.subr.mxu0 0.0
      %3574 = vmatpush1.msra.mxu0 0.0
      %3575 = vmatprep.subr.mxu0 0.0
      %3576 = vmatpush1.msra.mxu0 0.0
      %3577 = vmatprep.subr.mxu0 0.0
      %3578 = vmatpush1.msra.mxu0 0.0
      %3579 = vmatprep.subr.mxu0 0.0
      %3580 = vmatpush1.msra.mxu0 0.0
      %3581 = vmatprep.subr.mxu0 0.0
      %3582 = vmatpush1.msra.mxu0 0.0
      %3583 = vmatprep.subr.mxu0 0.0
      %3584 = vmatpush1.msra.mxu0 0.0
      %3585 = vmatprep.subr.mxu0 0.0
      %3586 = vmatpush1.msra.mxu0 0.0
      %3587 = vmatprep.subr.mxu0 0.0
      %3588 = vmatpush1.msra.mxu0 0.0
      %3589 = vmatprep.subr.mxu0 0.0
      %3590 = vmatpush1.msra.mxu0 %v3147
      %3591 = vmatprep.subr.mxu0 0.0
      %3592 = vmatpush2.msra.mxu0 0.0
      %3593 = vmatprep.subr.mxu0 0.0
      %3594 = vmatpush2.msra.mxu0 0.0
      %3595 = vmatprep.subr.mxu0 0.0
      %3596 = vmatpush2.msra.mxu0 0.0
      %3597 = vmatprep.subr.mxu0 0.0
      %3598 = vmatpush2.msra.mxu0 0.0
      %3599 = vmatprep.subr.mxu0 0.0
      %3600 = vmatpush2.msra.mxu0 0.0
      %3601 = vmatprep.subr.mxu0 0.0
      %3602 = vmatpush2.msra.mxu0 0.0
      %3603 = vmatprep.subr.mxu0 0.0
      %3604 = vmatpush2.msra.mxu0 0.0
      %3605 = vmatprep.subr.mxu0 0.0
      %3606 = vmatpush2.msra.mxu0 0.0
      %3607 = vmatprep.subr.mxu0 0.0
      %3608 = vmatpush2.msra.mxu0 0.0
      %3609 = vmatprep.subr.mxu0 0.0
      %3610 = vmatpush2.msra.mxu0 0.0
      %3611 = vmatprep.subr.mxu0 0.0
      %3612 = vmatpush2.msra.mxu0 0.0
      %3613 = vmatprep.subr.mxu0 0.0
      %3614 = vmatpush2.msra.mxu0 0.0
      %3615 = vmatprep.subr.mxu0 0.0
      %3616 = vmatpush2.msra.mxu0 0.0
      %3617 = vmatprep.subr.mxu0 0.0
      %3618 = vmatpush2.msra.mxu0 0.0
      %3619 = vmatprep.subr.mxu0 0.0
      %3620 = vmatpush2.msra.mxu0 0.0
      %3621 = vmatprep.subr.mxu0 0.0
      %3622 = vmatpush2.msra.mxu0 0.0
      %3623 = vmatprep.mubr.f32.mxu0 0.0
      %3624 = vmatmul.mubr.f32.gmra.mxu0 %v3047
      %v3625 = vpop.f32.mrf.mxu0
      %v3626 = vadd.f32 0.0, %v3625
      %v3627 = vpop.f32.mrf.mxu0
      %3628 = vmatprep.mubr.f32.mxu0 0.0
      %3629 = vmatmul.mubr.f32.gmra.mxu0 %v3050
      %v3630 = vpop.f32.mrf.mxu0
      %v3631 = vadd.f32 0.0, %v3630
      %v3632 = vpop.f32.mrf.mxu0
      %3633 = vmatprep.mubr.f32.mxu0 0.0
      %3634 = vmatmul.mubr.f32.gmra.mxu0 %v3053
      %v3635 = vpop.f32.mrf.mxu0
      %v3636 = vadd.f32 0.0, %v3635
      %v3637 = vpop.f32.mrf.mxu0
      %3638 = vmatprep.mubr.f32.mxu0 0.0
      %3639 = vmatmul.mubr.f32.gmra.mxu0 %v3551
      %v3640 = vpop.f32.mrf.mxu0
      %v3641 = vadd.f32 0.0, %v3640
      %v3642 = vpop.f32.mrf.mxu0
      %3643 = vmatprep.mubr.f32.mxu0 0.0
      %3644 = vmatmul.mubr.f32.gmra.mxu0 %v3554
      %v3645 = vpop.f32.mrf.mxu0
      %v3646 = vadd.f32 0.0, %v3645
      %v3647 = vpop.f32.mrf.mxu0
      %3648 = vmatprep.mubr.f32.mxu0 0.0
      %3649 = vmatmul.mubr.f32.gmra.mxu0 %v3557
      %v3650 = vpop.f32.mrf.mxu0
      %v3651 = vadd.f32 0.0, %v3650
      %v3652 = vpop.f32.mrf.mxu0
      %3653 = vdwg.mxu0
      %v3654 = vld [vmem:[#allocation2 + $0x150] sm:$0xff]
      %v3655 = vld [vmem:[#allocation2 + $0x158] sm:$0xff]
      %v3656 = vld [vmem:[#allocation2 + $0x160] sm:$0xff]
      %v3657 = vld [vmem:[#allocation2 + $0x168] sm:$0xff]
      %v3658 = vld [vmem:[#allocation2 + $0x170] sm:$0xff]
      %v3659 = vld [vmem:[#allocation2 + $0x178] sm:$0xff]
      %v3660 = vadd.f32 %v3654, %v3626
      %v3661 = vadd.f32 %v3655, %v3631
      %v3662 = vadd.f32 %v3656, %v3636
      %v3663 = vadd.f32 %v3657, %v3641
      %v3664 = vadd.f32 %v3658, %v3646
      %v3665 = vadd.f32 %v3659, %v3651
      %3666 = vst.msk [vmem:[#allocation2 + $0x150] sm:$0xff] %vm802, %v3660
      %3667 = vst.msk [vmem:[#allocation2 + $0x158] sm:$0xff] %vm802, %v3661
      %3668 = vst.msk [vmem:[#allocation2 + $0x160] sm:$0xff] %vm802, %v3662
      %3669 = vst.msk [vmem:[#allocation2 + $0x168] sm:$0xff] %vm802, %v3663
      %3670 = vst.msk [vmem:[#allocation2 + $0x170] sm:$0xff] %vm802, %v3664
      %3671 = vst.msk [vmem:[#allocation2 + $0x178] sm:$0xff] %vm802, %v3665
      %v3672 = vrot.slane %v293, 2
      %v3673 = vrot.slane %v294, 2
      %v3674 = vrot.slane %v295, 2
      %v3675 = vrot.slane %v296, 2
      %v3676 = vrot.slane %v297, 2
      %v3677 = vrot.slane %v298, 2
      %v3678 = vrot.slane %v299, 2
      %v3679 = vrot.slane %v300, 2
      %v3680 = vrot.slane %v301, 2
      %v3681 = vrot.slane %v302, 2
      %v3682 = vrot.slane %v303, 2
      %v3683 = vrot.slane %v304, 2
      %v3684 = vrot.slane %v305, 2
      %v3685 = vrot.slane %v306, 2
      %v3686 = vrot.slane %v307, 2
      %v3687 = vrot.slane %v308, 2
      %v3688 = vrot.slane %v309, 2
      %v3689 = vrot.slane %v310, 2
      %v3690 = vrot.slane %v311, 2
      %v3691 = vrot.slane %v312, 2
      %v3692 = vrot.slane %v313, 2
      %v3693 = vrot.slane %v314, 2
      %v3694 = vrot.slane %v315, 2
      %v3695 = vrot.slane %v316, 2
      %v3696 = vrot.slane %v317, 2
      %v3697 = vrot.slane %v318, 2
      %v3698 = vrot.slane %v319, 2
      %v3699 = vrot.slane %v320, 2
      %v3700 = vrot.slane %v321, 2
      %v3701 = vrot.slane %v322, 2
      %v3702 = vrot.slane %v323, 2
      %v3703 = vrot.slane %v324, 2
      %v3704 = vrot.slane %v325, 2
      %v3705 = vrot.slane %v326, 2
      %v3706 = vrot.slane %v327, 2
      %v3707 = vrot.slane %v328, 2
      %v3708 = vrot.slane %v329, 2
      %v3709 = vrot.slane %v330, 2
      %v3710 = vrot.slane %v331, 2
      %v3711 = vrot.slane %v332, 2
      %v3712 = vrot.slane %v333, 2
      %v3713 = vrot.slane %v334, 2
      %v3714 = vrot.slane %v335, 2
      %v3715 = vrot.slane %v336, 2
      %v3716 = vrot.slane %v337, 2
      %v3717 = vrot.slane %v338, 2
      %v3718 = vrot.slane %v339, 2
      %v3719 = vrot.slane %v340, 2
      %vm3720 = vcmp.lt.s32.totalorder %v1956, 6
      %v3721 = vsel %vm3720, %v3718, %v3719
      %v3722 = vsel %vm3720, %v3717, %v3718
      %v3723 = vsel %vm3720, %v3716, %v3717
      %v3724 = vsel %vm3720, %v3715, %v3716
      %v3725 = vsel %vm3720, %v3714, %v3715
      %v3726 = vsel %vm3720, %v3713, %v3714
      %v3727 = vsel %vm3720, %v3712, %v3713
      %v3728 = vsel %vm3720, %v3711, %v3712
      %v3729 = vsel %vm3720, %v3710, %v3711
      %v3730 = vsel %vm3720, %v3709, %v3710
      %v3731 = vsel %vm3720, %v3708, %v3709
      %v3732 = vsel %vm3720, %v3707, %v3708
      %v3733 = vsel %vm3720, %v3706, %v3707
      %v3734 = vsel %vm3720, %v3705, %v3706
      %v3735 = vsel %vm3720, %v3704, %v3705
      %v3736 = vsel %vm3720, %v3703, %v3704
      %v3737 = vsel %vm3720, %v3702, %v3703
      %v3738 = vsel %vm3720, %v3701, %v3702
      %v3739 = vsel %vm3720, %v3700, %v3701
      %v3740 = vsel %vm3720, %v3699, %v3700
      %v3741 = vsel %vm3720, %v3698, %v3699
      %v3742 = vsel %vm3720, %v3697, %v3698
      %v3743 = vsel %vm3720, %v3696, %v3697
      %v3744 = vsel %vm3720, %v3695, %v3696
      %v3745 = vsel %vm3720, %v3694, %v3695
      %v3746 = vsel %vm3720, %v3693, %v3694
      %v3747 = vsel %vm3720, %v3692, %v3693
      %v3748 = vsel %vm3720, %v3691, %v3692
      %v3749 = vsel %vm3720, %v3690, %v3691
      %v3750 = vsel %vm3720, %v3689, %v3690
      %v3751 = vsel %vm3720, %v3688, %v3689
      %v3752 = vsel %vm3720, %v3687, %v3688
      %v3753 = vsel %vm3720, %v3686, %v3687
      %v3754 = vsel %vm3720, %v3685, %v3686
      %v3755 = vsel %vm3720, %v3684, %v3685
      %v3756 = vsel %vm3720, %v3683, %v3684
      %v3757 = vsel %vm3720, %v3682, %v3683
      %v3758 = vsel %vm3720, %v3681, %v3682
      %v3759 = vsel %vm3720, %v3680, %v3681
      %v3760 = vsel %vm3720, %v3679, %v3680
      %v3761 = vsel %vm3720, %v3678, %v3679
      %v3762 = vsel %vm3720, %v3677, %v3678
      %v3763 = vsel %vm3720, %v3676, %v3677
      %v3764 = vsel %vm3720, %v3675, %v3676
      %v3765 = vsel %vm3720, %v3674, %v3675
      %v3766 = vsel %vm3720, %v3673, %v3674
      %v3767 = vsel %vm3720, %v3672, %v3673
      %v3768 = vsel %vm3720, %v3719, %v3672
      %v3769 = vrot.slane %v341, 2
      %v3770 = vrot.slane %v342, 2
      %v3771 = vrot.slane %v343, 2
      %v3772 = vrot.slane %v344, 2
      %v3773 = vrot.slane %v345, 2
      %v3774 = vrot.slane %v346, 2
      %v3775 = vsel %vm3720, %v3773, %v3774
      %v3776 = vsel %vm3720, %v3772, %v3773
      %v3777 = vsel %vm3720, %v3771, %v3772
      %v3778 = vsel %vm3720, %v3770, %v3771
      %v3779 = vsel %vm3720, %v3769, %v3770
      %v3780 = vsel %vm3720, %v3774, %v3769
      %s3781 = scalar_lea.vmem %s2, 8
      %v3782 = vld [vmem:[%s3781] sm:$0xf]
      %v3784 = vsel %vm348, %v3767, 0
      %v3787 = vsel %vm348, %v3766, 0
      %v3790 = vsel %vm348, %v3765, 0
      %v3793 = vsel %vm348, %v3764, 0
      %v3796 = vsel %vm348, %v3763, 0
      %v3799 = vsel %vm348, %v3762, 0
      %v3802 = vsel %vm348, %v3761, 0
      %v3805 = vsel %vm348, %v3760, 0
      %v3808 = vsel %vm348, %v3759, 0
      %v3811 = vsel %vm348, %v3758, 0
      %v3814 = vsel %vm348, %v3757, 0
      %v3817 = vsel %vm348, %v3756, 0
      %v3820 = vsel %vm348, %v3755, 0
      %v3823 = vsel %vm348, %v3754, 0
      %v3826 = vsel %vm348, %v3753, 0
      %v3829 = vsel %vm348, %v3752, 0
      %v3832 = vsel %vm348, %v3751, 0
      %v3835 = vsel %vm348, %v3750, 0
      %v3838 = vsel %vm348, %v3749, 0
      %v3841 = vsel %vm348, %v3748, 0
      %v3844 = vsel %vm348, %v3747, 0
      %v3847 = vsel %vm348, %v3746, 0
      %v3850 = vsel %vm348, %v3745, 0
      %v3853 = vsel %vm348, %v3744, 0
      %v3856 = vsel %vm348, %v3743, 0
      %v3859 = vsel %vm348, %v3742, 0
      %v3862 = vsel %vm348, %v3741, 0
      %v3865 = vsel %vm348, %v3740, 0
      %v3868 = vsel %vm348, %v3739, 0
      %v3871 = vsel %vm348, %v3738, 0
      %v3874 = vsel %vm348, %v3737, 0
      %v3877 = vsel %vm348, %v3736, 0
      %v3880 = vsel %vm348, %v3735, 0
      %v3883 = vsel %vm348, %v3734, 0
      %v3886 = vsel %vm348, %v3733, 0
      %v3889 = vsel %vm348, %v3732, 0
      %v3892 = vsel %vm348, %v3731, 0
      %v3895 = vsel %vm348, %v3730, 0
      %v3898 = vsel %vm348, %v3729, 0
      %v3901 = vsel %vm348, %v3728, 0
      %v3904 = vsel %vm348, %v3727, 0
      %v3907 = vsel %vm348, %v3726, 0
      %v3910 = vsel %vm348, %v3725, 0
      %v3913 = vsel %vm348, %v3724, 0
      %v3916 = vsel %vm348, %v3723, 0
      %v3919 = vsel %vm348, %v3722, 0
      %v3922 = vsel %vm348, %v3721, 0
      %v3925 = vsel %vm348, %v3768, 0
      %v3928 = vsel %vm493, %v3782, 0
      %3930 = vmatprep.subr.mxu0 0.0
      %3931 = vmatpush1.msra.mxu0 0.0
      %3932 = vmatprep.subr.mxu0 0.0
      %3933 = vmatpush1.msra.mxu0 0.0
      %3934 = vmatprep.subr.mxu0 0.0
      %3935 = vmatpush1.msra.mxu0 0.0
      %3936 = vmatprep.subr.mxu0 0.0
      %3937 = vmatpush1.msra.mxu0 0.0
      %3938 = vmatprep.subr.mxu0 0.0
      %3939 = vmatpush1.msra.mxu0 0.0
      %3940 = vmatprep.subr.mxu0 0.0
      %3941 = vmatpush1.msra.mxu0 0.0
      %3942 = vmatprep.subr.mxu0 0.0
      %3943 = vmatpush1.msra.mxu0 0.0
      %3944 = vmatprep.subr.mxu0 0.0
      %3945 = vmatpush1.msra.mxu0 0.0
      %3946 = vmatprep.subr.mxu0 0.0
      %3947 = vmatpush1.msra.mxu0 0.0
      %3948 = vmatprep.subr.mxu0 0.0
      %3949 = vmatpush1.msra.mxu0 0.0
      %3950 = vmatprep.subr.mxu0 0.0
      %3951 = vmatpush1.msra.mxu0 0.0
      %3952 = vmatprep.subr.mxu0 0.0
      %3953 = vmatpush1.msra.mxu0 0.0
      %3954 = vmatprep.subr.mxu0 0.0
      %3955 = vmatpush1.msra.mxu0 0.0
      %3956 = vmatprep.subr.mxu0 0.0
      %3957 = vmatpush1.msra.mxu0 0.0
      %3958 = vmatprep.subr.mxu0 0.0
      %3959 = vmatpush1.msra.mxu0 0.0
      %3960 = vmatprep.subr.mxu0 0.0
      %3961 = vmatpush1.msra.mxu0 %v3928
      %3962 = vmatprep.subr.mxu0 0.0
      %3963 = vmatpush2.msra.mxu0 0.0
      %3964 = vmatprep.subr.mxu0 0.0
      %3965 = vmatpush2.msra.mxu0 0.0
      %3966 = vmatprep.subr.mxu0 0.0
      %3967 = vmatpush2.msra.mxu0 0.0
      %3968 = vmatprep.subr.mxu0 0.0
      %3969 = vmatpush2.msra.mxu0 0.0
      %3970 = vmatprep.subr.mxu0 0.0
      %3971 = vmatpush2.msra.mxu0 0.0
      %3972 = vmatprep.subr.mxu0 0.0
      %3973 = vmatpush2.msra.mxu0 0.0
      %3974 = vmatprep.subr.mxu0 0.0
      %3975 = vmatpush2.msra.mxu0 0.0
      %3976 = vmatprep.subr.mxu0 0.0
      %3977 = vmatpush2.msra.mxu0 0.0
      %3978 = vmatprep.subr.mxu0 0.0
      %3979 = vmatpush2.msra.mxu0 0.0
      %3980 = vmatprep.subr.mxu0 0.0
      %3981 = vmatpush2.msra.mxu0 0.0
      %3982 = vmatprep.subr.mxu0 0.0
      %3983 = vmatpush2.msra.mxu0 0.0
      %3984 = vmatprep.subr.mxu0 0.0
      %3985 = vmatpush2.msra.mxu0 0.0
      %3986 = vmatprep.subr.mxu0 0.0
      %3987 = vmatpush2.msra.mxu0 0.0
      %3988 = vmatprep.subr.mxu0 0.0
      %3989 = vmatpush2.msra.mxu0 0.0
      %3990 = vmatprep.subr.mxu0 0.0
      %3991 = vmatpush2.msra.mxu0 0.0
      %3992 = vmatprep.subr.mxu0 0.0
      %3993 = vmatpush2.msra.mxu0 0.0
      %3994 = vmatprep.mubr.f32.mxu0 0.0
      %3995 = vmatmul.mubr.f32.gmra.mxu0 %v3784
      %v3996 = vpop.f32.mrf.mxu0
      %v3997 = vadd.f32 0.0, %v3996
      %v3998 = vpop.f32.mrf.mxu0
      %3999 = vmatprep.mubr.f32.mxu0 0.0
      %4000 = vmatmul.mubr.f32.gmra.mxu0 %v3787
      %v4001 = vpop.f32.mrf.mxu0
      %v4002 = vadd.f32 0.0, %v4001
      %v4003 = vpop.f32.mrf.mxu0
      %4004 = vmatprep.mubr.f32.mxu0 0.0
      %4005 = vmatmul.mubr.f32.gmra.mxu0 %v3790
      %v4006 = vpop.f32.mrf.mxu0
      %v4007 = vadd.f32 0.0, %v4006
      %v4008 = vpop.f32.mrf.mxu0
      %4009 = vmatprep.mubr.f32.mxu0 0.0
      %4010 = vmatmul.mubr.f32.gmra.mxu0 %v3793
      %v4011 = vpop.f32.mrf.mxu0
      %v4012 = vadd.f32 0.0, %v4011
      %v4013 = vpop.f32.mrf.mxu0
      %4014 = vmatprep.mubr.f32.mxu0 0.0
      %4015 = vmatmul.mubr.f32.gmra.mxu0 %v3796
      %v4016 = vpop.f32.mrf.mxu0
      %v4017 = vadd.f32 0.0, %v4016
      %v4018 = vpop.f32.mrf.mxu0
      %4019 = vmatprep.mubr.f32.mxu0 0.0
      %4020 = vmatmul.mubr.f32.gmra.mxu0 %v3799
      %v4021 = vpop.f32.mrf.mxu0
      %v4022 = vadd.f32 0.0, %v4021
      %v4023 = vpop.f32.mrf.mxu0
      %4024 = vmatprep.mubr.f32.mxu0 0.0
      %4025 = vmatmul.mubr.f32.gmra.mxu0 %v3802
      %v4026 = vpop.f32.mrf.mxu0
      %v4027 = vadd.f32 0.0, %v4026
      %v4028 = vpop.f32.mrf.mxu0
      %4029 = vmatprep.mubr.f32.mxu0 0.0
      %4030 = vmatmul.mubr.f32.gmra.mxu0 %v3805
      %v4031 = vpop.f32.mrf.mxu0
      %v4032 = vadd.f32 0.0, %v4031
      %v4033 = vpop.f32.mrf.mxu0
      %4034 = vmatprep.mubr.f32.mxu0 0.0
      %4035 = vmatmul.mubr.f32.gmra.mxu0 %v3808
      %v4036 = vpop.f32.mrf.mxu0
      %v4037 = vadd.f32 0.0, %v4036
      %v4038 = vpop.f32.mrf.mxu0
      %4039 = vmatprep.mubr.f32.mxu0 0.0
      %4040 = vmatmul.mubr.f32.gmra.mxu0 %v3811
      %v4041 = vpop.f32.mrf.mxu0
      %v4042 = vadd.f32 0.0, %v4041
      %v4043 = vpop.f32.mrf.mxu0
      %4044 = vmatprep.mubr.f32.mxu0 0.0
      %4045 = vmatmul.mubr.f32.gmra.mxu0 %v3814
      %v4046 = vpop.f32.mrf.mxu0
      %v4047 = vadd.f32 0.0, %v4046
      %v4048 = vpop.f32.mrf.mxu0
      %4049 = vmatprep.mubr.f32.mxu0 0.0
      %4050 = vmatmul.mubr.f32.gmra.mxu0 %v3817
      %v4051 = vpop.f32.mrf.mxu0
      %v4052 = vadd.f32 0.0, %v4051
      %v4053 = vpop.f32.mrf.mxu0
      %4054 = vmatprep.mubr.f32.mxu0 0.0
      %4055 = vmatmul.mubr.f32.gmra.mxu0 %v3820
      %v4056 = vpop.f32.mrf.mxu0
      %v4057 = vadd.f32 0.0, %v4056
      %v4058 = vpop.f32.mrf.mxu0
      %4059 = vmatprep.mubr.f32.mxu0 0.0
      %4060 = vmatmul.mubr.f32.gmra.mxu0 %v3823
      %v4061 = vpop.f32.mrf.mxu0
      %v4062 = vadd.f32 0.0, %v4061
      %v4063 = vpop.f32.mrf.mxu0
      %4064 = vmatprep.mubr.f32.mxu0 0.0
      %4065 = vmatmul.mubr.f32.gmra.mxu0 %v3826
      %v4066 = vpop.f32.mrf.mxu0
      %v4067 = vadd.f32 0.0, %v4066
      %v4068 = vpop.f32.mrf.mxu0
      %4069 = vmatprep.mubr.f32.mxu0 0.0
      %4070 = vmatmul.mubr.f32.gmra.mxu0 %v3829
      %v4071 = vpop.f32.mrf.mxu0
      %v4072 = vadd.f32 0.0, %v4071
      %v4073 = vpop.f32.mrf.mxu0
      %4074 = vmatprep.mubr.f32.mxu0 0.0
      %4075 = vmatmul.mubr.f32.gmra.mxu0 %v3832
      %v4076 = vpop.f32.mrf.mxu0
      %v4077 = vadd.f32 0.0, %v4076
      %v4078 = vpop.f32.mrf.mxu0
      %4079 = vmatprep.mubr.f32.mxu0 0.0
      %4080 = vmatmul.mubr.f32.gmra.mxu0 %v3835
      %v4081 = vpop.f32.mrf.mxu0
      %v4082 = vadd.f32 0.0, %v4081
      %v4083 = vpop.f32.mrf.mxu0
      %4084 = vmatprep.mubr.f32.mxu0 0.0
      %4085 = vmatmul.mubr.f32.gmra.mxu0 %v3838
      %v4086 = vpop.f32.mrf.mxu0
      %v4087 = vadd.f32 0.0, %v4086
      %v4088 = vpop.f32.mrf.mxu0
      %4089 = vmatprep.mubr.f32.mxu0 0.0
      %4090 = vmatmul.mubr.f32.gmra.mxu0 %v3841
      %v4091 = vpop.f32.mrf.mxu0
      %v4092 = vadd.f32 0.0, %v4091
      %v4093 = vpop.f32.mrf.mxu0
      %4094 = vmatprep.mubr.f32.mxu0 0.0
      %4095 = vmatmul.mubr.f32.gmra.mxu0 %v3844
      %v4096 = vpop.f32.mrf.mxu0
      %v4097 = vadd.f32 0.0, %v4096
      %v4098 = vpop.f32.mrf.mxu0
      %4099 = vmatprep.mubr.f32.mxu0 0.0
      %4100 = vmatmul.mubr.f32.gmra.mxu0 %v3847
      %v4101 = vpop.f32.mrf.mxu0
      %v4102 = vadd.f32 0.0, %v4101
      %v4103 = vpop.f32.mrf.mxu0
      %4104 = vmatprep.mubr.f32.mxu0 0.0
      %4105 = vmatmul.mubr.f32.gmra.mxu0 %v3850
      %v4106 = vpop.f32.mrf.mxu0
      %v4107 = vadd.f32 0.0, %v4106
      %v4108 = vpop.f32.mrf.mxu0
      %4109 = vmatprep.mubr.f32.mxu0 0.0
      %4110 = vmatmul.mubr.f32.gmra.mxu0 %v3853
      %v4111 = vpop.f32.mrf.mxu0
      %v4112 = vadd.f32 0.0, %v4111
      %v4113 = vpop.f32.mrf.mxu0
      %4114 = vmatprep.mubr.f32.mxu0 0.0
      %4115 = vmatmul.mubr.f32.gmra.mxu0 %v3856
      %v4116 = vpop.f32.mrf.mxu0
      %v4117 = vadd.f32 0.0, %v4116
      %v4118 = vpop.f32.mrf.mxu0
      %4119 = vmatprep.mubr.f32.mxu0 0.0
      %4120 = vmatmul.mubr.f32.gmra.mxu0 %v3859
      %v4121 = vpop.f32.mrf.mxu0
      %v4122 = vadd.f32 0.0, %v4121
      %v4123 = vpop.f32.mrf.mxu0
      %4124 = vmatprep.mubr.f32.mxu0 0.0
      %4125 = vmatmul.mubr.f32.gmra.mxu0 %v3862
      %v4126 = vpop.f32.mrf.mxu0
      %v4127 = vadd.f32 0.0, %v4126
      %v4128 = vpop.f32.mrf.mxu0
      %4129 = vmatprep.mubr.f32.mxu0 0.0
      %4130 = vmatmul.mubr.f32.gmra.mxu0 %v3865
      %v4131 = vpop.f32.mrf.mxu0
      %v4132 = vadd.f32 0.0, %v4131
      %v4133 = vpop.f32.mrf.mxu0
      %4134 = vmatprep.mubr.f32.mxu0 0.0
      %4135 = vmatmul.mubr.f32.gmra.mxu0 %v3868
      %v4136 = vpop.f32.mrf.mxu0
      %v4137 = vadd.f32 0.0, %v4136
      %v4138 = vpop.f32.mrf.mxu0
      %4139 = vmatprep.mubr.f32.mxu0 0.0
      %4140 = vmatmul.mubr.f32.gmra.mxu0 %v3871
      %v4141 = vpop.f32.mrf.mxu0
      %v4142 = vadd.f32 0.0, %v4141
      %v4143 = vpop.f32.mrf.mxu0
      %4144 = vmatprep.mubr.f32.mxu0 0.0
      %4145 = vmatmul.mubr.f32.gmra.mxu0 %v3874
      %v4146 = vpop.f32.mrf.mxu0
      %v4147 = vadd.f32 0.0, %v4146
      %v4148 = vpop.f32.mrf.mxu0
      %4149 = vmatprep.mubr.f32.mxu0 0.0
      %4150 = vmatmul.mubr.f32.gmra.mxu0 %v3877
      %v4151 = vpop.f32.mrf.mxu0
      %v4152 = vadd.f32 0.0, %v4151
      %v4153 = vpop.f32.mrf.mxu0
      %4154 = vmatprep.mubr.f32.mxu0 0.0
      %4155 = vmatmul.mubr.f32.gmra.mxu0 %v3880
      %v4156 = vpop.f32.mrf.mxu0
      %v4157 = vadd.f32 0.0, %v4156
      %v4158 = vpop.f32.mrf.mxu0
      %4159 = vmatprep.mubr.f32.mxu0 0.0
      %4160 = vmatmul.mubr.f32.gmra.mxu0 %v3883
      %v4161 = vpop.f32.mrf.mxu0
      %v4162 = vadd.f32 0.0, %v4161
      %v4163 = vpop.f32.mrf.mxu0
      %4164 = vmatprep.mubr.f32.mxu0 0.0
      %4165 = vmatmul.mubr.f32.gmra.mxu0 %v3886
      %v4166 = vpop.f32.mrf.mxu0
      %v4167 = vadd.f32 0.0, %v4166
      %v4168 = vpop.f32.mrf.mxu0
      %4169 = vmatprep.mubr.f32.mxu0 0.0
      %4170 = vmatmul.mubr.f32.gmra.mxu0 %v3889
      %v4171 = vpop.f32.mrf.mxu0
      %v4172 = vadd.f32 0.0, %v4171
      %v4173 = vpop.f32.mrf.mxu0
      %4174 = vmatprep.mubr.f32.mxu0 0.0
      %4175 = vmatmul.mubr.f32.gmra.mxu0 %v3892
      %v4176 = vpop.f32.mrf.mxu0
      %v4177 = vadd.f32 0.0, %v4176
      %v4178 = vpop.f32.mrf.mxu0
      %4179 = vmatprep.mubr.f32.mxu0 0.0
      %4180 = vmatmul.mubr.f32.gmra.mxu0 %v3895
      %v4181 = vpop.f32.mrf.mxu0
      %v4182 = vadd.f32 0.0, %v4181
      %v4183 = vpop.f32.mrf.mxu0
      %4184 = vmatprep.mubr.f32.mxu0 0.0
      %4185 = vmatmul.mubr.f32.gmra.mxu0 %v3898
      %v4186 = vpop.f32.mrf.mxu0
      %v4187 = vadd.f32 0.0, %v4186
      %v4188 = vpop.f32.mrf.mxu0
      %4189 = vmatprep.mubr.f32.mxu0 0.0
      %4190 = vmatmul.mubr.f32.gmra.mxu0 %v3901
      %v4191 = vpop.f32.mrf.mxu0
      %v4192 = vadd.f32 0.0, %v4191
      %v4193 = vpop.f32.mrf.mxu0
      %4194 = vmatprep.mubr.f32.mxu0 0.0
      %4195 = vmatmul.mubr.f32.gmra.mxu0 %v3904
      %v4196 = vpop.f32.mrf.mxu0
      %v4197 = vadd.f32 0.0, %v4196
      %v4198 = vpop.f32.mrf.mxu0
      %4199 = vmatprep.mubr.f32.mxu0 0.0
      %4200 = vmatmul.mubr.f32.gmra.mxu0 %v3907
      %v4201 = vpop.f32.mrf.mxu0
      %v4202 = vadd.f32 0.0, %v4201
      %v4203 = vpop.f32.mrf.mxu0
      %4204 = vmatprep.mubr.f32.mxu0 0.0
      %4205 = vmatmul.mubr.f32.gmra.mxu0 %v3910
      %v4206 = vpop.f32.mrf.mxu0
      %v4207 = vadd.f32 0.0, %v4206
      %v4208 = vpop.f32.mrf.mxu0
      %4209 = vmatprep.mubr.f32.mxu0 0.0
      %4210 = vmatmul.mubr.f32.gmra.mxu0 %v3913
      %v4211 = vpop.f32.mrf.mxu0
      %v4212 = vadd.f32 0.0, %v4211
      %v4213 = vpop.f32.mrf.mxu0
      %4214 = vmatprep.mubr.f32.mxu0 0.0
      %4215 = vmatmul.mubr.f32.gmra.mxu0 %v3916
      %v4216 = vpop.f32.mrf.mxu0
      %v4217 = vadd.f32 0.0, %v4216
      %v4218 = vpop.f32.mrf.mxu0
      %4219 = vmatprep.mubr.f32.mxu0 0.0
      %4220 = vmatmul.mubr.f32.gmra.mxu0 %v3919
      %v4221 = vpop.f32.mrf.mxu0
      %v4222 = vadd.f32 0.0, %v4221
      %v4223 = vpop.f32.mrf.mxu0
      %4224 = vmatprep.mubr.f32.mxu0 0.0
      %4225 = vmatmul.mubr.f32.gmra.mxu0 %v3922
      %v4226 = vpop.f32.mrf.mxu0
      %v4227 = vadd.f32 0.0, %v4226
      %v4228 = vpop.f32.mrf.mxu0
      %4229 = vmatprep.mubr.f32.mxu0 0.0
      %4230 = vmatmul.mubr.f32.gmra.mxu0 %v3925
      %v4231 = vpop.f32.mrf.mxu0
      %v4232 = vadd.f32 0.0, %v4231
      %v4233 = vpop.f32.mrf.mxu0
      %4234 = vdwg.mxu0
      %v4235 = vld [vmem:[#allocation2] sm:$0xff]
      %v4236 = vld [vmem:[#allocation2 + $0x8] sm:$0xff]
      %v4237 = vld [vmem:[#allocation2 + $0x10] sm:$0xff]
      %v4238 = vld [vmem:[#allocation2 + $0x18] sm:$0xff]
      %v4239 = vld [vmem:[#allocation2 + $0x20] sm:$0xff]
      %v4240 = vld [vmem:[#allocation2 + $0x28] sm:$0xff]
      %v4241 = vld [vmem:[#allocation2 + $0x30] sm:$0xff]
      %v4242 = vld [vmem:[#allocation2 + $0x38] sm:$0xff]
      %v4243 = vld [vmem:[#allocation2 + $0x40] sm:$0xff]
      %v4244 = vld [vmem:[#allocation2 + $0x48] sm:$0xff]
      %v4245 = vld [vmem:[#allocation2 + $0x50] sm:$0xff]
      %v4246 = vld [vmem:[#allocation2 + $0x58] sm:$0xff]
      %v4247 = vld [vmem:[#allocation2 + $0x60] sm:$0xff]
      %v4248 = vld [vmem:[#allocation2 + $0x68] sm:$0xff]
      %v4249 = vld [vmem:[#allocation2 + $0x70] sm:$0xff]
      %v4250 = vld [vmem:[#allocation2 + $0x78] sm:$0xff]
      %v4251 = vld [vmem:[#allocation2 + $0x80] sm:$0xff]
      %v4252 = vld [vmem:[#allocation2 + $0x88] sm:$0xff]
      %v4253 = vld [vmem:[#allocation2 + $0x90] sm:$0xff]
      %v4254 = vld [vmem:[#allocation2 + $0x98] sm:$0xff]
      %v4255 = vld [vmem:[#allocation2 + $0xa0] sm:$0xff]
      %v4256 = vld [vmem:[#allocation2 + $0xa8] sm:$0xff]
      %v4257 = vld [vmem:[#allocation2 + $0xb0] sm:$0xff]
      %v4258 = vld [vmem:[#allocation2 + $0xb8] sm:$0xff]
      %v4259 = vld [vmem:[#allocation2 + $0xc0] sm:$0xff]
      %v4260 = vld [vmem:[#allocation2 + $0xc8] sm:$0xff]
      %v4261 = vld [vmem:[#allocation2 + $0xd0] sm:$0xff]
      %v4262 = vld [vmem:[#allocation2 + $0xd8] sm:$0xff]
      %v4263 = vld [vmem:[#allocation2 + $0xe0] sm:$0xff]
      %v4264 = vld [vmem:[#allocation2 + $0xe8] sm:$0xff]
      %v4265 = vld [vmem:[#allocation2 + $0xf0] sm:$0xff]
      %v4266 = vld [vmem:[#allocation2 + $0xf8] sm:$0xff]
      %v4267 = vld [vmem:[#allocation2 + $0x100] sm:$0xff]
      %v4268 = vld [vmem:[#allocation2 + $0x108] sm:$0xff]
      %v4269 = vld [vmem:[#allocation2 + $0x110] sm:$0xff]
      %v4270 = vld [vmem:[#allocation2 + $0x118] sm:$0xff]
      %v4271 = vld [vmem:[#allocation2 + $0x120] sm:$0xff]
      %v4272 = vld [vmem:[#allocation2 + $0x128] sm:$0xff]
      %v4273 = vld [vmem:[#allocation2 + $0x130] sm:$0xff]
      %v4274 = vld [vmem:[#allocation2 + $0x138] sm:$0xff]
      %v4275 = vld [vmem:[#allocation2 + $0x140] sm:$0xff]
      %v4276 = vld [vmem:[#allocation2 + $0x148] sm:$0xff]
      %v4277 = vld [vmem:[#allocation2 + $0x150] sm:$0xff]
      %v4278 = vld [vmem:[#allocation2 + $0x158] sm:$0xff]
      %v4279 = vld [vmem:[#allocation2 + $0x160] sm:$0xff]
      %v4280 = vld [vmem:[#allocation2 + $0x168] sm:$0xff]
      %v4281 = vld [vmem:[#allocation2 + $0x170] sm:$0xff]
      %v4282 = vld [vmem:[#allocation2 + $0x178] sm:$0xff]
      %v4283 = vadd.f32 %v4235, %v3997
      %v4284 = vadd.f32 %v4236, %v4002
      %v4285 = vadd.f32 %v4237, %v4007
      %v4286 = vadd.f32 %v4238, %v4012
      %v4287 = vadd.f32 %v4239, %v4017
      %v4288 = vadd.f32 %v4240, %v4022
      %v4289 = vadd.f32 %v4241, %v4027
      %v4290 = vadd.f32 %v4242, %v4032
      %v4291 = vadd.f32 %v4243, %v4037
      %v4292 = vadd.f32 %v4244, %v4042
      %v4293 = vadd.f32 %v4245, %v4047
      %v4294 = vadd.f32 %v4246, %v4052
      %v4295 = vadd.f32 %v4247, %v4057
      %v4296 = vadd.f32 %v4248, %v4062
      %v4297 = vadd.f32 %v4249, %v4067
      %v4298 = vadd.f32 %v4250, %v4072
      %v4299 = vadd.f32 %v4251, %v4077
      %v4300 = vadd.f32 %v4252, %v4082
      %v4301 = vadd.f32 %v4253, %v4087
      %v4302 = vadd.f32 %v4254, %v4092
      %v4303 = vadd.f32 %v4255, %v4097
      %v4304 = vadd.f32 %v4256, %v4102
      %v4305 = vadd.f32 %v4257, %v4107
      %v4306 = vadd.f32 %v4258, %v4112
      %v4307 = vadd.f32 %v4259, %v4117
      %v4308 = vadd.f32 %v4260, %v4122
      %v4309 = vadd.f32 %v4261, %v4127
      %v4310 = vadd.f32 %v4262, %v4132
      %v4311 = vadd.f32 %v4263, %v4137
      %v4312 = vadd.f32 %v4264, %v4142
      %v4313 = vadd.f32 %v4265, %v4147
      %v4314 = vadd.f32 %v4266, %v4152
      %v4315 = vadd.f32 %v4267, %v4157
      %v4316 = vadd.f32 %v4268, %v4162
      %v4317 = vadd.f32 %v4269, %v4167
      %v4318 = vadd.f32 %v4270, %v4172
      %v4319 = vadd.f32 %v4271, %v4177
      %v4320 = vadd.f32 %v4272, %v4182
      %v4321 = vadd.f32 %v4273, %v4187
      %v4322 = vadd.f32 %v4274, %v4192
      %v4323 = vadd.f32 %v4275, %v4197
      %v4324 = vadd.f32 %v4276, %v4202
      %v4325 = vadd.f32 %v4277, %v4207
      %v4326 = vadd.f32 %v4278, %v4212
      %v4327 = vadd.f32 %v4279, %v4217
      %v4328 = vadd.f32 %v4280, %v4222
      %v4329 = vadd.f32 %v4281, %v4227
      %v4330 = vadd.f32 %v4282, %v4232
      %4331 = vst.msk [vmem:[#allocation2] sm:$0xff] %vm802, %v4283
      %4332 = vst.msk [vmem:[#allocation2 + $0x8] sm:$0xff] %vm802, %v4284
      %4333 = vst.msk [vmem:[#allocation2 + $0x10] sm:$0xff] %vm802, %v4285
      %4334 = vst.msk [vmem:[#allocation2 + $0x18] sm:$0xff] %vm802, %v4286
      %4335 = vst.msk [vmem:[#allocation2 + $0x20] sm:$0xff] %vm802, %v4287
      %4336 = vst.msk [vmem:[#allocation2 + $0x28] sm:$0xff] %vm802, %v4288
      %4337 = vst.msk [vmem:[#allocation2 + $0x30] sm:$0xff] %vm802, %v4289
      %4338 = vst.msk [vmem:[#allocation2 + $0x38] sm:$0xff] %vm802, %v4290
      %4339 = vst.msk [vmem:[#allocation2 + $0x40] sm:$0xff] %vm802, %v4291
      %4340 = vst.msk [vmem:[#allocation2 + $0x48] sm:$0xff] %vm802, %v4292
      %4341 = vst.msk [vmem:[#allocation2 + $0x50] sm:$0xff] %vm802, %v4293
      %4342 = vst.msk [vmem:[#allocation2 + $0x58] sm:$0xff] %vm802, %v4294
      %4343 = vst.msk [vmem:[#allocation2 + $0x60] sm:$0xff] %vm802, %v4295
      %4344 = vst.msk [vmem:[#allocation2 + $0x68] sm:$0xff] %vm802, %v4296
      %4345 = vst.msk [vmem:[#allocation2 + $0x70] sm:$0xff] %vm802, %v4297
      %4346 = vst.msk [vmem:[#allocation2 + $0x78] sm:$0xff] %vm802, %v4298
      %4347 = vst.msk [vmem:[#allocation2 + $0x80] sm:$0xff] %vm802, %v4299
      %4348 = vst.msk [vmem:[#allocation2 + $0x88] sm:$0xff] %vm802, %v4300
      %4349 = vst.msk [vmem:[#allocation2 + $0x90] sm:$0xff] %vm802, %v4301
      %4350 = vst.msk [vmem:[#allocation2 + $0x98] sm:$0xff] %vm802, %v4302
      %4351 = vst.msk [vmem:[#allocation2 + $0xa0] sm:$0xff] %vm802, %v4303
      %4352 = vst.msk [vmem:[#allocation2 + $0xa8] sm:$0xff] %vm802, %v4304
      %4353 = vst.msk [vmem:[#allocation2 + $0xb0] sm:$0xff] %vm802, %v4305
      %4354 = vst.msk [vmem:[#allocation2 + $0xb8] sm:$0xff] %vm802, %v4306
      %4355 = vst.msk [vmem:[#allocation2 + $0xc0] sm:$0xff] %vm802, %v4307
      %4356 = vst.msk [vmem:[#allocation2 + $0xc8] sm:$0xff] %vm802, %v4308
      %4357 = vst.msk [vmem:[#allocation2 + $0xd0] sm:$0xff] %vm802, %v4309
      %4358 = vst.msk [vmem:[#allocation2 + $0xd8] sm:$0xff] %vm802, %v4310
      %4359 = vst.msk [vmem:[#allocation2 + $0xe0] sm:$0xff] %vm802, %v4311
      %4360 = vst.msk [vmem:[#allocation2 + $0xe8] sm:$0xff] %vm802, %v4312
      %4361 = vst.msk [vmem:[#allocation2 + $0xf0] sm:$0xff] %vm802, %v4313
      %4362 = vst.msk [vmem:[#allocation2 + $0xf8] sm:$0xff] %vm802, %v4314
      %4363 = vst.msk [vmem:[#allocation2 + $0x100] sm:$0xff] %vm802, %v4315
      %4364 = vst.msk [vmem:[#allocation2 + $0x108] sm:$0xff] %vm802, %v4316
      %4365 = vst.msk [vmem:[#allocation2 + $0x110] sm:$0xff] %vm802, %v4317
      %4366 = vst.msk [vmem:[#allocation2 + $0x118] sm:$0xff] %vm802, %v4318
      %4367 = vst.msk [vmem:[#allocation2 + $0x120] sm:$0xff] %vm802, %v4319
      %4368 = vst.msk [vmem:[#allocation2 + $0x128] sm:$0xff] %vm802, %v4320
      %4369 = vst.msk [vmem:[#allocation2 + $0x130] sm:$0xff] %vm802, %v4321
      %4370 = vst.msk [vmem:[#allocation2 + $0x138] sm:$0xff] %vm802, %v4322
      %4371 = vst.msk [vmem:[#allocation2 + $0x140] sm:$0xff] %vm802, %v4323
      %4372 = vst.msk [vmem:[#allocation2 + $0x148] sm:$0xff] %vm802, %v4324
      %4373 = vst.msk [vmem:[#allocation2 + $0x150] sm:$0xff] %vm802, %v4325
      %4374 = vst.msk [vmem:[#allocation2 + $0x158] sm:$0xff] %vm802, %v4326
      %4375 = vst.msk [vmem:[#allocation2 + $0x160] sm:$0xff] %vm802, %v4327
      %4376 = vst.msk [vmem:[#allocation2 + $0x168] sm:$0xff] %vm802, %v4328
      %4377 = vst.msk [vmem:[#allocation2 + $0x170] sm:$0xff] %vm802, %v4329
      %4378 = vst.msk [vmem:[#allocation2 + $0x178] sm:$0xff] %vm802, %v4330
      %s4379 = scalar_lea.vmem %s2, 20
      %v4380 = vld [vmem:[%s4379] sm:$0xf]
      %v4382 = vsel %vm493, %v4380, 0
      %4384 = vmatprep.subr.mxu0 0.0
      %4385 = vmatpush1.msra.mxu0 0.0
      %4386 = vmatprep.subr.mxu0 0.0
      %4387 = vmatpush1.msra.mxu0 0.0
      %4388 = vmatprep.subr.mxu0 0.0
      %4389 = vmatpush1.msra.mxu0 0.0
      %4390 = vmatprep.subr.mxu0 0.0
      %4391 = vmatpush1.msra.mxu0 0.0
      %4392 = vmatprep.subr.mxu0 0.0
      %4393 = vmatpush1.msra.mxu0 0.0
      %4394 = vmatprep.subr.mxu0 0.0
      %4395 = vmatpush1.msra.mxu0 0.0
      %4396 = vmatprep.subr.mxu0 0.0
      %4397 = vmatpush1.msra.mxu0 0.0
      %4398 = vmatprep.subr.mxu0 0.0
      %4399 = vmatpush1.msra.mxu0 0.0
      %4400 = vmatprep.subr.mxu0 0.0
      %4401 = vmatpush1.msra.mxu0 0.0
      %4402 = vmatprep.subr.mxu0 0.0
      %4403 = vmatpush1.msra.mxu0 0.0
      %4404 = vmatprep.subr.mxu0 0.0
      %4405 = vmatpush1.msra.mxu0 0.0
      %4406 = vmatprep.subr.mxu0 0.0
      %4407 = vmatpush1.msra.mxu0 0.0
      %4408 = vmatprep.subr.mxu0 0.0
      %4409 = vmatpush1.msra.mxu0 0.0
      %4410 = vmatprep.subr.mxu0 0.0
      %4411 = vmatpush1.msra.mxu0 0.0
      %4412 = vmatprep.subr.mxu0 0.0
      %4413 = vmatpush1.msra.mxu0 0.0
      %4414 = vmatprep.subr.mxu0 0.0
      %4415 = vmatpush1.msra.mxu0 %v4382
      %4416 = vmatprep.subr.mxu0 0.0
      %4417 = vmatpush2.msra.mxu0 0.0
      %4418 = vmatprep.subr.mxu0 0.0
      %4419 = vmatpush2.msra.mxu0 0.0
      %4420 = vmatprep.subr.mxu0 0.0
      %4421 = vmatpush2.msra.mxu0 0.0
      %4422 = vmatprep.subr.mxu0 0.0
      %4423 = vmatpush2.msra.mxu0 0.0
      %4424 = vmatprep.subr.mxu0 0.0
      %4425 = vmatpush2.msra.mxu0 0.0
      %4426 = vmatprep.subr.mxu0 0.0
      %4427 = vmatpush2.msra.mxu0 0.0
      %4428 = vmatprep.subr.mxu0 0.0
      %4429 = vmatpush2.msra.mxu0 0.0
      %4430 = vmatprep.subr.mxu0 0.0
      %4431 = vmatpush2.msra.mxu0 0.0
      %4432 = vmatprep.subr.mxu0 0.0
      %4433 = vmatpush2.msra.mxu0 0.0
      %4434 = vmatprep.subr.mxu0 0.0
      %4435 = vmatpush2.msra.mxu0 0.0
      %4436 = vmatprep.subr.mxu0 0.0
      %4437 = vmatpush2.msra.mxu0 0.0
      %4438 = vmatprep.subr.mxu0 0.0
      %4439 = vmatpush2.msra.mxu0 0.0
      %4440 = vmatprep.subr.mxu0 0.0
      %4441 = vmatpush2.msra.mxu0 0.0
      %4442 = vmatprep.subr.mxu0 0.0
      %4443 = vmatpush2.msra.mxu0 0.0
      %4444 = vmatprep.subr.mxu0 0.0
      %4445 = vmatpush2.msra.mxu0 0.0
      %4446 = vmatprep.subr.mxu0 0.0
      %4447 = vmatpush2.msra.mxu0 0.0
      %4448 = vmatprep.mubr.f32.mxu0 0.0
      %4449 = vmatmul.mubr.f32.gmra.mxu0 %v3793
      %v4450 = vpop.f32.mrf.mxu0
      %v4451 = vadd.f32 0.0, %v4450
      %v4452 = vpop.f32.mrf.mxu0
      %4453 = vmatprep.mubr.f32.mxu0 0.0
      %4454 = vmatmul.mubr.f32.gmra.mxu0 %v3796
      %v4455 = vpop.f32.mrf.mxu0
      %v4456 = vadd.f32 0.0, %v4455
      %v4457 = vpop.f32.mrf.mxu0
      %4458 = vmatprep.mubr.f32.mxu0 0.0
      %4459 = vmatmul.mubr.f32.gmra.mxu0 %v3799
      %v4460 = vpop.f32.mrf.mxu0
      %v4461 = vadd.f32 0.0, %v4460
      %v4462 = vpop.f32.mrf.mxu0
      %4463 = vmatprep.mubr.f32.mxu0 0.0
      %4464 = vmatmul.mubr.f32.gmra.mxu0 %v3802
      %v4465 = vpop.f32.mrf.mxu0
      %v4466 = vadd.f32 0.0, %v4465
      %v4467 = vpop.f32.mrf.mxu0
      %4468 = vmatprep.mubr.f32.mxu0 0.0
      %4469 = vmatmul.mubr.f32.gmra.mxu0 %v3805
      %v4470 = vpop.f32.mrf.mxu0
      %v4471 = vadd.f32 0.0, %v4470
      %v4472 = vpop.f32.mrf.mxu0
      %4473 = vmatprep.mubr.f32.mxu0 0.0
      %4474 = vmatmul.mubr.f32.gmra.mxu0 %v3808
      %v4475 = vpop.f32.mrf.mxu0
      %v4476 = vadd.f32 0.0, %v4475
      %v4477 = vpop.f32.mrf.mxu0
      %4478 = vmatprep.mubr.f32.mxu0 0.0
      %4479 = vmatmul.mubr.f32.gmra.mxu0 %v3811
      %v4480 = vpop.f32.mrf.mxu0
      %v4481 = vadd.f32 0.0, %v4480
      %v4482 = vpop.f32.mrf.mxu0
      %4483 = vmatprep.mubr.f32.mxu0 0.0
      %4484 = vmatmul.mubr.f32.gmra.mxu0 %v3814
      %v4485 = vpop.f32.mrf.mxu0
      %v4486 = vadd.f32 0.0, %v4485
      %v4487 = vpop.f32.mrf.mxu0
      %4488 = vmatprep.mubr.f32.mxu0 0.0
      %4489 = vmatmul.mubr.f32.gmra.mxu0 %v3817
      %v4490 = vpop.f32.mrf.mxu0
      %v4491 = vadd.f32 0.0, %v4490
      %v4492 = vpop.f32.mrf.mxu0
      %4493 = vmatprep.mubr.f32.mxu0 0.0
      %4494 = vmatmul.mubr.f32.gmra.mxu0 %v3820
      %v4495 = vpop.f32.mrf.mxu0
      %v4496 = vadd.f32 0.0, %v4495
      %v4497 = vpop.f32.mrf.mxu0
      %4498 = vmatprep.mubr.f32.mxu0 0.0
      %4499 = vmatmul.mubr.f32.gmra.mxu0 %v3823
      %v4500 = vpop.f32.mrf.mxu0
      %v4501 = vadd.f32 0.0, %v4500
      %v4502 = vpop.f32.mrf.mxu0
      %4503 = vmatprep.mubr.f32.mxu0 0.0
      %4504 = vmatmul.mubr.f32.gmra.mxu0 %v3826
      %v4505 = vpop.f32.mrf.mxu0
      %v4506 = vadd.f32 0.0, %v4505
      %v4507 = vpop.f32.mrf.mxu0
      %4508 = vmatprep.mubr.f32.mxu0 0.0
      %4509 = vmatmul.mubr.f32.gmra.mxu0 %v3829
      %v4510 = vpop.f32.mrf.mxu0
      %v4511 = vadd.f32 0.0, %v4510
      %v4512 = vpop.f32.mrf.mxu0
      %4513 = vmatprep.mubr.f32.mxu0 0.0
      %4514 = vmatmul.mubr.f32.gmra.mxu0 %v3832
      %v4515 = vpop.f32.mrf.mxu0
      %v4516 = vadd.f32 0.0, %v4515
      %v4517 = vpop.f32.mrf.mxu0
      %4518 = vmatprep.mubr.f32.mxu0 0.0
      %4519 = vmatmul.mubr.f32.gmra.mxu0 %v3835
      %v4520 = vpop.f32.mrf.mxu0
      %v4521 = vadd.f32 0.0, %v4520
      %v4522 = vpop.f32.mrf.mxu0
      %4523 = vmatprep.mubr.f32.mxu0 0.0
      %4524 = vmatmul.mubr.f32.gmra.mxu0 %v3838
      %v4525 = vpop.f32.mrf.mxu0
      %v4526 = vadd.f32 0.0, %v4525
      %v4527 = vpop.f32.mrf.mxu0
      %4528 = vmatprep.mubr.f32.mxu0 0.0
      %4529 = vmatmul.mubr.f32.gmra.mxu0 %v3841
      %v4530 = vpop.f32.mrf.mxu0
      %v4531 = vadd.f32 0.0, %v4530
      %v4532 = vpop.f32.mrf.mxu0
      %4533 = vmatprep.mubr.f32.mxu0 0.0
      %4534 = vmatmul.mubr.f32.gmra.mxu0 %v3844
      %v4535 = vpop.f32.mrf.mxu0
      %v4536 = vadd.f32 0.0, %v4535
      %v4537 = vpop.f32.mrf.mxu0
      %4538 = vmatprep.mubr.f32.mxu0 0.0
      %4539 = vmatmul.mubr.f32.gmra.mxu0 %v3847
      %v4540 = vpop.f32.mrf.mxu0
      %v4541 = vadd.f32 0.0, %v4540
      %v4542 = vpop.f32.mrf.mxu0
      %4543 = vmatprep.mubr.f32.mxu0 0.0
      %4544 = vmatmul.mubr.f32.gmra.mxu0 %v3850
      %v4545 = vpop.f32.mrf.mxu0
      %v4546 = vadd.f32 0.0, %v4545
      %v4547 = vpop.f32.mrf.mxu0
      %4548 = vmatprep.mubr.f32.mxu0 0.0
      %4549 = vmatmul.mubr.f32.gmra.mxu0 %v3853
      %v4550 = vpop.f32.mrf.mxu0
      %v4551 = vadd.f32 0.0, %v4550
      %v4552 = vpop.f32.mrf.mxu0
      %4553 = vmatprep.mubr.f32.mxu0 0.0
      %4554 = vmatmul.mubr.f32.gmra.mxu0 %v3856
      %v4555 = vpop.f32.mrf.mxu0
      %v4556 = vadd.f32 0.0, %v4555
      %v4557 = vpop.f32.mrf.mxu0
      %4558 = vmatprep.mubr.f32.mxu0 0.0
      %4559 = vmatmul.mubr.f32.gmra.mxu0 %v3859
      %v4560 = vpop.f32.mrf.mxu0
      %v4561 = vadd.f32 0.0, %v4560
      %v4562 = vpop.f32.mrf.mxu0
      %4563 = vmatprep.mubr.f32.mxu0 0.0
      %4564 = vmatmul.mubr.f32.gmra.mxu0 %v3862
      %v4565 = vpop.f32.mrf.mxu0
      %v4566 = vadd.f32 0.0, %v4565
      %v4567 = vpop.f32.mrf.mxu0
      %4568 = vmatprep.mubr.f32.mxu0 0.0
      %4569 = vmatmul.mubr.f32.gmra.mxu0 %v3865
      %v4570 = vpop.f32.mrf.mxu0
      %v4571 = vadd.f32 0.0, %v4570
      %v4572 = vpop.f32.mrf.mxu0
      %4573 = vmatprep.mubr.f32.mxu0 0.0
      %4574 = vmatmul.mubr.f32.gmra.mxu0 %v3868
      %v4575 = vpop.f32.mrf.mxu0
      %v4576 = vadd.f32 0.0, %v4575
      %v4577 = vpop.f32.mrf.mxu0
      %4578 = vmatprep.mubr.f32.mxu0 0.0
      %4579 = vmatmul.mubr.f32.gmra.mxu0 %v3871
      %v4580 = vpop.f32.mrf.mxu0
      %v4581 = vadd.f32 0.0, %v4580
      %v4582 = vpop.f32.mrf.mxu0
      %4583 = vmatprep.mubr.f32.mxu0 0.0
      %4584 = vmatmul.mubr.f32.gmra.mxu0 %v3874
      %v4585 = vpop.f32.mrf.mxu0
      %v4586 = vadd.f32 0.0, %v4585
      %v4587 = vpop.f32.mrf.mxu0
      %4588 = vmatprep.mubr.f32.mxu0 0.0
      %4589 = vmatmul.mubr.f32.gmra.mxu0 %v3877
      %v4590 = vpop.f32.mrf.mxu0
      %v4591 = vadd.f32 0.0, %v4590
      %v4592 = vpop.f32.mrf.mxu0
      %4593 = vmatprep.mubr.f32.mxu0 0.0
      %4594 = vmatmul.mubr.f32.gmra.mxu0 %v3880
      %v4595 = vpop.f32.mrf.mxu0
      %v4596 = vadd.f32 0.0, %v4595
      %v4597 = vpop.f32.mrf.mxu0
      %4598 = vmatprep.mubr.f32.mxu0 0.0
      %4599 = vmatmul.mubr.f32.gmra.mxu0 %v3883
      %v4600 = vpop.f32.mrf.mxu0
      %v4601 = vadd.f32 0.0, %v4600
      %v4602 = vpop.f32.mrf.mxu0
      %4603 = vmatprep.mubr.f32.mxu0 0.0
      %4604 = vmatmul.mubr.f32.gmra.mxu0 %v3886
      %v4605 = vpop.f32.mrf.mxu0
      %v4606 = vadd.f32 0.0, %v4605
      %v4607 = vpop.f32.mrf.mxu0
      %4608 = vmatprep.mubr.f32.mxu0 0.0
      %4609 = vmatmul.mubr.f32.gmra.mxu0 %v3889
      %v4610 = vpop.f32.mrf.mxu0
      %v4611 = vadd.f32 0.0, %v4610
      %v4612 = vpop.f32.mrf.mxu0
      %4613 = vmatprep.mubr.f32.mxu0 0.0
      %4614 = vmatmul.mubr.f32.gmra.mxu0 %v3892
      %v4615 = vpop.f32.mrf.mxu0
      %v4616 = vadd.f32 0.0, %v4615
      %v4617 = vpop.f32.mrf.mxu0
      %4618 = vmatprep.mubr.f32.mxu0 0.0
      %4619 = vmatmul.mubr.f32.gmra.mxu0 %v3895
      %v4620 = vpop.f32.mrf.mxu0
      %v4621 = vadd.f32 0.0, %v4620
      %v4622 = vpop.f32.mrf.mxu0
      %4623 = vmatprep.mubr.f32.mxu0 0.0
      %4624 = vmatmul.mubr.f32.gmra.mxu0 %v3898
      %v4625 = vpop.f32.mrf.mxu0
      %v4626 = vadd.f32 0.0, %v4625
      %v4627 = vpop.f32.mrf.mxu0
      %4628 = vmatprep.mubr.f32.mxu0 0.0
      %4629 = vmatmul.mubr.f32.gmra.mxu0 %v3901
      %v4630 = vpop.f32.mrf.mxu0
      %v4631 = vadd.f32 0.0, %v4630
      %v4632 = vpop.f32.mrf.mxu0
      %4633 = vmatprep.mubr.f32.mxu0 0.0
      %4634 = vmatmul.mubr.f32.gmra.mxu0 %v3904
      %v4635 = vpop.f32.mrf.mxu0
      %v4636 = vadd.f32 0.0, %v4635
      %v4637 = vpop.f32.mrf.mxu0
      %4638 = vmatprep.mubr.f32.mxu0 0.0
      %4639 = vmatmul.mubr.f32.gmra.mxu0 %v3907
      %v4640 = vpop.f32.mrf.mxu0
      %v4641 = vadd.f32 0.0, %v4640
      %v4642 = vpop.f32.mrf.mxu0
      %4643 = vmatprep.mubr.f32.mxu0 0.0
      %4644 = vmatmul.mubr.f32.gmra.mxu0 %v3910
      %v4645 = vpop.f32.mrf.mxu0
      %v4646 = vadd.f32 0.0, %v4645
      %v4647 = vpop.f32.mrf.mxu0
      %4648 = vmatprep.mubr.f32.mxu0 0.0
      %4649 = vmatmul.mubr.f32.gmra.mxu0 %v3913
      %v4650 = vpop.f32.mrf.mxu0
      %v4651 = vadd.f32 0.0, %v4650
      %v4652 = vpop.f32.mrf.mxu0
      %4653 = vmatprep.mubr.f32.mxu0 0.0
      %4654 = vmatmul.mubr.f32.gmra.mxu0 %v3916
      %v4655 = vpop.f32.mrf.mxu0
      %v4656 = vadd.f32 0.0, %v4655
      %v4657 = vpop.f32.mrf.mxu0
      %4658 = vmatprep.mubr.f32.mxu0 0.0
      %4659 = vmatmul.mubr.f32.gmra.mxu0 %v3919
      %v4660 = vpop.f32.mrf.mxu0
      %v4661 = vadd.f32 0.0, %v4660
      %v4662 = vpop.f32.mrf.mxu0
      %4663 = vmatprep.mubr.f32.mxu0 0.0
      %4664 = vmatmul.mubr.f32.gmra.mxu0 %v3922
      %v4665 = vpop.f32.mrf.mxu0
      %v4666 = vadd.f32 0.0, %v4665
      %v4667 = vpop.f32.mrf.mxu0
      %4668 = vmatprep.mubr.f32.mxu0 0.0
      %4669 = vmatmul.mubr.f32.gmra.mxu0 %v3925
      %v4670 = vpop.f32.mrf.mxu0
      %v4671 = vadd.f32 0.0, %v4670
      %v4672 = vpop.f32.mrf.mxu0
      %4673 = vdwg.mxu0
      %v4674 = vld [vmem:[#allocation2] sm:$0xff]
      %v4675 = vld [vmem:[#allocation2 + $0x8] sm:$0xff]
      %v4676 = vld [vmem:[#allocation2 + $0x10] sm:$0xff]
      %v4677 = vld [vmem:[#allocation2 + $0x18] sm:$0xff]
      %v4678 = vld [vmem:[#allocation2 + $0x20] sm:$0xff]
      %v4679 = vld [vmem:[#allocation2 + $0x28] sm:$0xff]
      %v4680 = vld [vmem:[#allocation2 + $0x30] sm:$0xff]
      %v4681 = vld [vmem:[#allocation2 + $0x38] sm:$0xff]
      %v4682 = vld [vmem:[#allocation2 + $0x40] sm:$0xff]
      %v4683 = vld [vmem:[#allocation2 + $0x48] sm:$0xff]
      %v4684 = vld [vmem:[#allocation2 + $0x50] sm:$0xff]
      %v4685 = vld [vmem:[#allocation2 + $0x58] sm:$0xff]
      %v4686 = vld [vmem:[#allocation2 + $0x60] sm:$0xff]
      %v4687 = vld [vmem:[#allocation2 + $0x68] sm:$0xff]
      %v4688 = vld [vmem:[#allocation2 + $0x70] sm:$0xff]
      %v4689 = vld [vmem:[#allocation2 + $0x78] sm:$0xff]
      %v4690 = vld [vmem:[#allocation2 + $0x80] sm:$0xff]
      %v4691 = vld [vmem:[#allocation2 + $0x88] sm:$0xff]
      %v4692 = vld [vmem:[#allocation2 + $0x90] sm:$0xff]
      %v4693 = vld [vmem:[#allocation2 + $0x98] sm:$0xff]
      %v4694 = vld [vmem:[#allocation2 + $0xa0] sm:$0xff]
      %v4695 = vld [vmem:[#allocation2 + $0xa8] sm:$0xff]
      %v4696 = vld [vmem:[#allocation2 + $0xb0] sm:$0xff]
      %v4697 = vld [vmem:[#allocation2 + $0xb8] sm:$0xff]
      %v4698 = vld [vmem:[#allocation2 + $0xc0] sm:$0xff]
      %v4699 = vld [vmem:[#allocation2 + $0xc8] sm:$0xff]
      %v4700 = vld [vmem:[#allocation2 + $0xd0] sm:$0xff]
      %v4701 = vld [vmem:[#allocation2 + $0xd8] sm:$0xff]
      %v4702 = vld [vmem:[#allocation2 + $0xe0] sm:$0xff]
      %v4703 = vld [vmem:[#allocation2 + $0xe8] sm:$0xff]
      %v4704 = vld [vmem:[#allocation2 + $0xf0] sm:$0xff]
      %v4705 = vld [vmem:[#allocation2 + $0xf8] sm:$0xff]
      %v4706 = vld [vmem:[#allocation2 + $0x100] sm:$0xff]
      %v4707 = vld [vmem:[#allocation2 + $0x108] sm:$0xff]
      %v4708 = vld [vmem:[#allocation2 + $0x110] sm:$0xff]
      %v4709 = vld [vmem:[#allocation2 + $0x118] sm:$0xff]
      %v4710 = vld [vmem:[#allocation2 + $0x120] sm:$0xff]
      %v4711 = vld [vmem:[#allocation2 + $0x128] sm:$0xff]
      %v4712 = vld [vmem:[#allocation2 + $0x130] sm:$0xff]
      %v4713 = vld [vmem:[#allocation2 + $0x138] sm:$0xff]
      %v4714 = vld [vmem:[#allocation2 + $0x140] sm:$0xff]
      %v4715 = vld [vmem:[#allocation2 + $0x148] sm:$0xff]
      %v4716 = vld [vmem:[#allocation2 + $0x150] sm:$0xff]
      %v4717 = vld [vmem:[#allocation2 + $0x158] sm:$0xff]
      %v4718 = vld [vmem:[#allocation2 + $0x160] sm:$0xff]
      %v4719 = vadd.f32 %v4674, %v4451
      %v4720 = vadd.f32 %v4675, %v4456
      %v4721 = vadd.f32 %v4676, %v4461
      %v4722 = vadd.f32 %v4677, %v4466
      %v4723 = vadd.f32 %v4678, %v4471
      %v4724 = vadd.f32 %v4679, %v4476
      %v4725 = vadd.f32 %v4680, %v4481
      %v4726 = vadd.f32 %v4681, %v4486
      %v4727 = vadd.f32 %v4682, %v4491
      %v4728 = vadd.f32 %v4683, %v4496
      %v4729 = vadd.f32 %v4684, %v4501
      %v4730 = vadd.f32 %v4685, %v4506
      %v4731 = vadd.f32 %v4686, %v4511
      %v4732 = vadd.f32 %v4687, %v4516
      %v4733 = vadd.f32 %v4688, %v4521
      %v4734 = vadd.f32 %v4689, %v4526
      %v4735 = vadd.f32 %v4690, %v4531
      %v4736 = vadd.f32 %v4691, %v4536
      %v4737 = vadd.f32 %v4692, %v4541
      %v4738 = vadd.f32 %v4693, %v4546
      %v4739 = vadd.f32 %v4694, %v4551
      %v4740 = vadd.f32 %v4695, %v4556
      %v4741 = vadd.f32 %v4696, %v4561
      %v4742 = vadd.f32 %v4697, %v4566
      %v4743 = vadd.f32 %v4698, %v4571
      %v4744 = vadd.f32 %v4699, %v4576
      %v4745 = vadd.f32 %v4700, %v4581
      %v4746 = vadd.f32 %v4701, %v4586
      %v4747 = vadd.f32 %v4702, %v4591
      %v4748 = vadd.f32 %v4703, %v4596
      %v4749 = vadd.f32 %v4704, %v4601
      %v4750 = vadd.f32 %v4705, %v4606
      %v4751 = vadd.f32 %v4706, %v4611
      %v4752 = vadd.f32 %v4707, %v4616
      %v4753 = vadd.f32 %v4708, %v4621
      %v4754 = vadd.f32 %v4709, %v4626
      %v4755 = vadd.f32 %v4710, %v4631
      %v4756 = vadd.f32 %v4711, %v4636
      %v4757 = vadd.f32 %v4712, %v4641
      %v4758 = vadd.f32 %v4713, %v4646
      %v4759 = vadd.f32 %v4714, %v4651
      %v4760 = vadd.f32 %v4715, %v4656
      %v4761 = vadd.f32 %v4716, %v4661
      %v4762 = vadd.f32 %v4717, %v4666
      %v4763 = vadd.f32 %v4718, %v4671
      %4764 = vst.msk [vmem:[#allocation2] sm:$0xff] %vm802, %v4719
      %4765 = vst.msk [vmem:[#allocation2 + $0x8] sm:$0xff] %vm802, %v4720
      %4766 = vst.msk [vmem:[#allocation2 + $0x10] sm:$0xff] %vm802, %v4721
      %4767 = vst.msk [vmem:[#allocation2 + $0x18] sm:$0xff] %vm802, %v4722
      %4768 = vst.msk [vmem:[#allocation2 + $0x20] sm:$0xff] %vm802, %v4723
      %4769 = vst.msk [vmem:[#allocation2 + $0x28] sm:$0xff] %vm802, %v4724
      %4770 = vst.msk [vmem:[#allocation2 + $0x30] sm:$0xff] %vm802, %v4725
      %4771 = vst.msk [vmem:[#allocation2 + $0x38] sm:$0xff] %vm802, %v4726
      %4772 = vst.msk [vmem:[#allocation2 + $0x40] sm:$0xff] %vm802, %v4727
      %4773 = vst.msk [vmem:[#allocation2 + $0x48] sm:$0xff] %vm802, %v4728
      %4774 = vst.msk [vmem:[#allocation2 + $0x50] sm:$0xff] %vm802, %v4729
      %4775 = vst.msk [vmem:[#allocation2 + $0x58] sm:$0xff] %vm802, %v4730
      %4776 = vst.msk [vmem:[#allocation2 + $0x60] sm:$0xff] %vm802, %v4731
      %4777 = vst.msk [vmem:[#allocation2 + $0x68] sm:$0xff] %vm802, %v4732
      %4778 = vst.msk [vmem:[#allocation2 + $0x70] sm:$0xff] %vm802, %v4733
      %4779 = vst.msk [vmem:[#allocation2 + $0x78] sm:$0xff] %vm802, %v4734
      %4780 = vst.msk [vmem:[#allocation2 + $0x80] sm:$0xff] %vm802, %v4735
      %4781 = vst.msk [vmem:[#allocation2 + $0x88] sm:$0xff] %vm802, %v4736
      %4782 = vst.msk [vmem:[#allocation2 + $0x90] sm:$0xff] %vm802, %v4737
      %4783 = vst.msk [vmem:[#allocation2 + $0x98] sm:$0xff] %vm802, %v4738
      %4784 = vst.msk [vmem:[#allocation2 + $0xa0] sm:$0xff] %vm802, %v4739
      %4785 = vst.msk [vmem:[#allocation2 + $0xa8] sm:$0xff] %vm802, %v4740
      %4786 = vst.msk [vmem:[#allocation2 + $0xb0] sm:$0xff] %vm802, %v4741
      %4787 = vst.msk [vmem:[#allocation2 + $0xb8] sm:$0xff] %vm802, %v4742
      %4788 = vst.msk [vmem:[#allocation2 + $0xc0] sm:$0xff] %vm802, %v4743
      %4789 = vst.msk [vmem:[#allocation2 + $0xc8] sm:$0xff] %vm802, %v4744
      %4790 = vst.msk [vmem:[#allocation2 + $0xd0] sm:$0xff] %vm802, %v4745
      %4791 = vst.msk [vmem:[#allocation2 + $0xd8] sm:$0xff] %vm802, %v4746
      %4792 = vst.msk [vmem:[#allocation2 + $0xe0] sm:$0xff] %vm802, %v4747
      %4793 = vst.msk [vmem:[#allocation2 + $0xe8] sm:$0xff] %vm802, %v4748
      %4794 = vst.msk [vmem:[#allocation2 + $0xf0] sm:$0xff] %vm802, %v4749
      %4795 = vst.msk [vmem:[#allocation2 + $0xf8] sm:$0xff] %vm802, %v4750
      %4796 = vst.msk [vmem:[#allocation2 + $0x100] sm:$0xff] %vm802, %v4751
      %4797 = vst.msk [vmem:[#allocation2 + $0x108] sm:$0xff] %vm802, %v4752
      %4798 = vst.msk [vmem:[#allocation2 + $0x110] sm:$0xff] %vm802, %v4753
      %4799 = vst.msk [vmem:[#allocation2 + $0x118] sm:$0xff] %vm802, %v4754
      %4800 = vst.msk [vmem:[#allocation2 + $0x120] sm:$0xff] %vm802, %v4755
      %4801 = vst.msk [vmem:[#allocation2 + $0x128] sm:$0xff] %vm802, %v4756
      %4802 = vst.msk [vmem:[#allocation2 + $0x130] sm:$0xff] %vm802, %v4757
      %4803 = vst.msk [vmem:[#allocation2 + $0x138] sm:$0xff] %vm802, %v4758
      %4804 = vst.msk [vmem:[#allocation2 + $0x140] sm:$0xff] %vm802, %v4759
      %4805 = vst.msk [vmem:[#allocation2 + $0x148] sm:$0xff] %vm802, %v4760
      %4806 = vst.msk [vmem:[#allocation2 + $0x150] sm:$0xff] %vm802, %v4761
      %4807 = vst.msk [vmem:[#allocation2 + $0x158] sm:$0xff] %vm802, %v4762
      %4808 = vst.msk [vmem:[#allocation2 + $0x160] sm:$0xff] %vm802, %v4763
      %v4810 = vsel %vm348, %v3779, 0
      %v4813 = vsel %vm348, %v3778, 0
      %v4816 = vsel %vm348, %v3777, 0
      %4818 = vmatprep.subr.mxu0 0.0
      %4819 = vmatpush1.msra.mxu0 0.0
      %4820 = vmatprep.subr.mxu0 0.0
      %4821 = vmatpush1.msra.mxu0 0.0
      %4822 = vmatprep.subr.mxu0 0.0
      %4823 = vmatpush1.msra.mxu0 0.0
      %4824 = vmatprep.subr.mxu0 0.0
      %4825 = vmatpush1.msra.mxu0 0.0
      %4826 = vmatprep.subr.mxu0 0.0
      %4827 = vmatpush1.msra.mxu0 0.0
      %4828 = vmatprep.subr.mxu0 0.0
      %4829 = vmatpush1.msra.mxu0 0.0
      %4830 = vmatprep.subr.mxu0 0.0
      %4831 = vmatpush1.msra.mxu0 0.0
      %4832 = vmatprep.subr.mxu0 0.0
      %4833 = vmatpush1.msra.mxu0 0.0
      %4834 = vmatprep.subr.mxu0 0.0
      %4835 = vmatpush1.msra.mxu0 0.0
      %4836 = vmatprep.subr.mxu0 0.0
      %4837 = vmatpush1.msra.mxu0 0.0
      %4838 = vmatprep.subr.mxu0 0.0
      %4839 = vmatpush1.msra.mxu0 0.0
      %4840 = vmatprep.subr.mxu0 0.0
      %4841 = vmatpush1.msra.mxu0 0.0
      %4842 = vmatprep.subr.mxu0 0.0
      %4843 = vmatpush1.msra.mxu0 0.0
      %4844 = vmatprep.subr.mxu0 0.0
      %4845 = vmatpush1.msra.mxu0 0.0
      %4846 = vmatprep.subr.mxu0 0.0
      %4847 = vmatpush1.msra.mxu0 0.0
      %4848 = vmatprep.subr.mxu0 0.0
      %4849 = vmatpush1.msra.mxu0 %v4382
      %4850 = vmatprep.subr.mxu0 0.0
      %4851 = vmatpush2.msra.mxu0 0.0
      %4852 = vmatprep.subr.mxu0 0.0
      %4853 = vmatpush2.msra.mxu0 0.0
      %4854 = vmatprep.subr.mxu0 0.0
      %4855 = vmatpush2.msra.mxu0 0.0
      %4856 = vmatprep.subr.mxu0 0.0
      %4857 = vmatpush2.msra.mxu0 0.0
      %4858 = vmatprep.subr.mxu0 0.0
      %4859 = vmatpush2.msra.mxu0 0.0
      %4860 = vmatprep.subr.mxu0 0.0
      %4861 = vmatpush2.msra.mxu0 0.0
      %4862 = vmatprep.subr.mxu0 0.0
      %4863 = vmatpush2.msra.mxu0 0.0
      %4864 = vmatprep.subr.mxu0 0.0
      %4865 = vmatpush2.msra.mxu0 0.0
      %4866 = vmatprep.subr.mxu0 0.0
      %4867 = vmatpush2.msra.mxu0 0.0
      %4868 = vmatprep.subr.mxu0 0.0
      %4869 = vmatpush2.msra.mxu0 0.0
      %4870 = vmatprep.subr.mxu0 0.0
      %4871 = vmatpush2.msra.mxu0 0.0
      %4872 = vmatprep.subr.mxu0 0.0
      %4873 = vmatpush2.msra.mxu0 0.0
      %4874 = vmatprep.subr.mxu0 0.0
      %4875 = vmatpush2.msra.mxu0 0.0
      %4876 = vmatprep.subr.mxu0 0.0
      %4877 = vmatpush2.msra.mxu0 0.0
      %4878 = vmatprep.subr.mxu0 0.0
      %4879 = vmatpush2.msra.mxu0 0.0
      %4880 = vmatprep.subr.mxu0 0.0
      %4881 = vmatpush2.msra.mxu0 0.0
      %4882 = vmatprep.mubr.f32.mxu0 0.0
      %4883 = vmatmul.mubr.f32.gmra.mxu0 %v4810
      %v4884 = vpop.f32.mrf.mxu0
      %v4885 = vadd.f32 0.0, %v4884
      %v4886 = vpop.f32.mrf.mxu0
      %4887 = vmatprep.mubr.f32.mxu0 0.0
      %4888 = vmatmul.mubr.f32.gmra.mxu0 %v4813
      %v4889 = vpop.f32.mrf.mxu0
      %v4890 = vadd.f32 0.0, %v4889
      %v4891 = vpop.f32.mrf.mxu0
      %4892 = vmatprep.mubr.f32.mxu0 0.0
      %4893 = vmatmul.mubr.f32.gmra.mxu0 %v4816
      %v4894 = vpop.f32.mrf.mxu0
      %v4895 = vadd.f32 0.0, %v4894
      %v4896 = vpop.f32.mrf.mxu0
      %4897 = vdwg.mxu0
      %v4898 = vld [vmem:[#allocation2 + $0x168] sm:$0xff]
      %v4899 = vld [vmem:[#allocation2 + $0x170] sm:$0xff]
      %v4900 = vld [vmem:[#allocation2 + $0x178] sm:$0xff]
      %v4901 = vadd.f32 %v4898, %v4885
      %v4902 = vadd.f32 %v4899, %v4890
      %v4903 = vadd.f32 %v4900, %v4895
      %4904 = vst.msk [vmem:[#allocation2 + $0x168] sm:$0xff] %vm802, %v4901
      %4905 = vst.msk [vmem:[#allocation2 + $0x170] sm:$0xff] %vm802, %v4902
      %4906 = vst.msk [vmem:[#allocation2 + $0x178] sm:$0xff] %vm802, %v4903
      %s4907 = scalar_lea.vmem %s2, 32
      %v4908 = vld [vmem:[%s4907] sm:$0xf]
      %v4910 = vsel %vm493, %v4908, 0
      %4912 = vmatprep.subr.mxu0 0.0
      %4913 = vmatpush1.msra.mxu0 0.0
      %4914 = vmatprep.subr.mxu0 0.0
      %4915 = vmatpush1.msra.mxu0 0.0
      %4916 = vmatprep.subr.mxu0 0.0
      %4917 = vmatpush1.msra.mxu0 0.0
      %4918 = vmatprep.subr.mxu0 0.0
      %4919 = vmatpush1.msra.mxu0 0.0
      %4920 = vmatprep.subr.mxu0 0.0
      %4921 = vmatpush1.msra.mxu0 0.0
      %4922 = vmatprep.subr.mxu0 0.0
      %4923 = vmatpush1.msra.mxu0 0.0
      %4924 = vmatprep.subr.mxu0 0.0
      %4925 = vmatpush1.msra.mxu0 0.0
      %4926 = vmatprep.subr.mxu0 0.0
      %4927 = vmatpush1.msra.mxu0 0.0
      %4928 = vmatprep.subr.mxu0 0.0
      %4929 = vmatpush1.msra.mxu0 0.0
      %4930 = vmatprep.subr.mxu0 0.0
      %4931 = vmatpush1.msra.mxu0 0.0
      %4932 = vmatprep.subr.mxu0 0.0
      %4933 = vmatpush1.msra.mxu0 0.0
      %4934 = vmatprep.subr.mxu0 0.0
      %4935 = vmatpush1.msra.mxu0 0.0
      %4936 = vmatprep.subr.mxu0 0.0
      %4937 = vmatpush1.msra.mxu0 0.0
      %4938 = vmatprep.subr.mxu0 0.0
      %4939 = vmatpush1.msra.mxu0 0.0
      %4940 = vmatprep.subr.mxu0 0.0
      %4941 = vmatpush1.msra.mxu0 0.0
      %4942 = vmatprep.subr.mxu0 0.0
      %4943 = vmatpush1.msra.mxu0 %v4910
      %4944 = vmatprep.subr.mxu0 0.0
      %4945 = vmatpush2.msra.mxu0 0.0
      %4946 = vmatprep.subr.mxu0 0.0
      %4947 = vmatpush2.msra.mxu0 0.0
      %4948 = vmatprep.subr.mxu0 0.0
      %4949 = vmatpush2.msra.mxu0 0.0
      %4950 = vmatprep.subr.mxu0 0.0
      %4951 = vmatpush2.msra.mxu0 0.0
      %4952 = vmatprep.subr.mxu0 0.0
      %4953 = vmatpush2.msra.mxu0 0.0
      %4954 = vmatprep.subr.mxu0 0.0
      %4955 = vmatpush2.msra.mxu0 0.0
      %4956 = vmatprep.subr.mxu0 0.0
      %4957 = vmatpush2.msra.mxu0 0.0
      %4958 = vmatprep.subr.mxu0 0.0
      %4959 = vmatpush2.msra.mxu0 0.0
      %4960 = vmatprep.subr.mxu0 0.0
      %4961 = vmatpush2.msra.mxu0 0.0
      %4962 = vmatprep.subr.mxu0 0.0
      %4963 = vmatpush2.msra.mxu0 0.0
      %4964 = vmatprep.subr.mxu0 0.0
      %4965 = vmatpush2.msra.mxu0 0.0
      %4966 = vmatprep.subr.mxu0 0.0
      %4967 = vmatpush2.msra.mxu0 0.0
      %4968 = vmatprep.subr.mxu0 0.0
      %4969 = vmatpush2.msra.mxu0 0.0
      %4970 = vmatprep.subr.mxu0 0.0
      %4971 = vmatpush2.msra.mxu0 0.0
      %4972 = vmatprep.subr.mxu0 0.0
      %4973 = vmatpush2.msra.mxu0 0.0
      %4974 = vmatprep.subr.mxu0 0.0
      %4975 = vmatpush2.msra.mxu0 0.0
      %4976 = vmatprep.mubr.f32.mxu0 0.0
      %4977 = vmatmul.mubr.f32.gmra.mxu0 %v3802
      %v4978 = vpop.f32.mrf.mxu0
      %v4979 = vadd.f32 0.0, %v4978
      %v4980 = vpop.f32.mrf.mxu0
      %4981 = vmatprep.mubr.f32.mxu0 0.0
      %4982 = vmatmul.mubr.f32.gmra.mxu0 %v3805
      %v4983 = vpop.f32.mrf.mxu0
      %v4984 = vadd.f32 0.0, %v4983
      %v4985 = vpop.f32.mrf.mxu0
      %4986 = vmatprep.mubr.f32.mxu0 0.0
      %4987 = vmatmul.mubr.f32.gmra.mxu0 %v3808
      %v4988 = vpop.f32.mrf.mxu0
      %v4989 = vadd.f32 0.0, %v4988
      %v4990 = vpop.f32.mrf.mxu0
      %4991 = vmatprep.mubr.f32.mxu0 0.0
      %4992 = vmatmul.mubr.f32.gmra.mxu0 %v3811
      %v4993 = vpop.f32.mrf.mxu0
      %v4994 = vadd.f32 0.0, %v4993
      %v4995 = vpop.f32.mrf.mxu0
      %4996 = vmatprep.mubr.f32.mxu0 0.0
      %4997 = vmatmul.mubr.f32.gmra.mxu0 %v3814
      %v4998 = vpop.f32.mrf.mxu0
      %v4999 = vadd.f32 0.0, %v4998
      %v5000 = vpop.f32.mrf.mxu0
      %5001 = vmatprep.mubr.f32.mxu0 0.0
      %5002 = vmatmul.mubr.f32.gmra.mxu0 %v3817
      %v5003 = vpop.f32.mrf.mxu0
      %v5004 = vadd.f32 0.0, %v5003
      %v5005 = vpop.f32.mrf.mxu0
      %5006 = vmatprep.mubr.f32.mxu0 0.0
      %5007 = vmatmul.mubr.f32.gmra.mxu0 %v3820
      %v5008 = vpop.f32.mrf.mxu0
      %v5009 = vadd.f32 0.0, %v5008
      %v5010 = vpop.f32.mrf.mxu0
      %5011 = vmatprep.mubr.f32.mxu0 0.0
      %5012 = vmatmul.mubr.f32.gmra.mxu0 %v3823
      %v5013 = vpop.f32.mrf.mxu0
      %v5014 = vadd.f32 0.0, %v5013
      %v5015 = vpop.f32.mrf.mxu0
      %5016 = vmatprep.mubr.f32.mxu0 0.0
      %5017 = vmatmul.mubr.f32.gmra.mxu0 %v3826
      %v5018 = vpop.f32.mrf.mxu0
      %v5019 = vadd.f32 0.0, %v5018
      %v5020 = vpop.f32.mrf.mxu0
      %5021 = vmatprep.mubr.f32.mxu0 0.0
      %5022 = vmatmul.mubr.f32.gmra.mxu0 %v3829
      %v5023 = vpop.f32.mrf.mxu0
      %v5024 = vadd.f32 0.0, %v5023
      %v5025 = vpop.f32.mrf.mxu0
      %5026 = vmatprep.mubr.f32.mxu0 0.0
      %5027 = vmatmul.mubr.f32.gmra.mxu0 %v3832
      %v5028 = vpop.f32.mrf.mxu0
      %v5029 = vadd.f32 0.0, %v5028
      %v5030 = vpop.f32.mrf.mxu0
      %5031 = vmatprep.mubr.f32.mxu0 0.0
      %5032 = vmatmul.mubr.f32.gmra.mxu0 %v3835
      %v5033 = vpop.f32.mrf.mxu0
      %v5034 = vadd.f32 0.0, %v5033
      %v5035 = vpop.f32.mrf.mxu0
      %5036 = vmatprep.mubr.f32.mxu0 0.0
      %5037 = vmatmul.mubr.f32.gmra.mxu0 %v3838
      %v5038 = vpop.f32.mrf.mxu0
      %v5039 = vadd.f32 0.0, %v5038
      %v5040 = vpop.f32.mrf.mxu0
      %5041 = vmatprep.mubr.f32.mxu0 0.0
      %5042 = vmatmul.mubr.f32.gmra.mxu0 %v3841
      %v5043 = vpop.f32.mrf.mxu0
      %v5044 = vadd.f32 0.0, %v5043
      %v5045 = vpop.f32.mrf.mxu0
      %5046 = vmatprep.mubr.f32.mxu0 0.0
      %5047 = vmatmul.mubr.f32.gmra.mxu0 %v3844
      %v5048 = vpop.f32.mrf.mxu0
      %v5049 = vadd.f32 0.0, %v5048
      %v5050 = vpop.f32.mrf.mxu0
      %5051 = vmatprep.mubr.f32.mxu0 0.0
      %5052 = vmatmul.mubr.f32.gmra.mxu0 %v3847
      %v5053 = vpop.f32.mrf.mxu0
      %v5054 = vadd.f32 0.0, %v5053
      %v5055 = vpop.f32.mrf.mxu0
      %5056 = vmatprep.mubr.f32.mxu0 0.0
      %5057 = vmatmul.mubr.f32.gmra.mxu0 %v3850
      %v5058 = vpop.f32.mrf.mxu0
      %v5059 = vadd.f32 0.0, %v5058
      %v5060 = vpop.f32.mrf.mxu0
      %5061 = vmatprep.mubr.f32.mxu0 0.0
      %5062 = vmatmul.mubr.f32.gmra.mxu0 %v3853
      %v5063 = vpop.f32.mrf.mxu0
      %v5064 = vadd.f32 0.0, %v5063
      %v5065 = vpop.f32.mrf.mxu0
      %5066 = vmatprep.mubr.f32.mxu0 0.0
      %5067 = vmatmul.mubr.f32.gmra.mxu0 %v3856
      %v5068 = vpop.f32.mrf.mxu0
      %v5069 = vadd.f32 0.0, %v5068
      %v5070 = vpop.f32.mrf.mxu0
      %5071 = vmatprep.mubr.f32.mxu0 0.0
      %5072 = vmatmul.mubr.f32.gmra.mxu0 %v3859
      %v5073 = vpop.f32.mrf.mxu0
      %v5074 = vadd.f32 0.0, %v5073
      %v5075 = vpop.f32.mrf.mxu0
      %5076 = vmatprep.mubr.f32.mxu0 0.0
      %5077 = vmatmul.mubr.f32.gmra.mxu0 %v3862
      %v5078 = vpop.f32.mrf.mxu0
      %v5079 = vadd.f32 0.0, %v5078
      %v5080 = vpop.f32.mrf.mxu0
      %5081 = vmatprep.mubr.f32.mxu0 0.0
      %5082 = vmatmul.mubr.f32.gmra.mxu0 %v3865
      %v5083 = vpop.f32.mrf.mxu0
      %v5084 = vadd.f32 0.0, %v5083
      %v5085 = vpop.f32.mrf.mxu0
      %5086 = vmatprep.mubr.f32.mxu0 0.0
      %5087 = vmatmul.mubr.f32.gmra.mxu0 %v3868
      %v5088 = vpop.f32.mrf.mxu0
      %v5089 = vadd.f32 0.0, %v5088
      %v5090 = vpop.f32.mrf.mxu0
      %5091 = vmatprep.mubr.f32.mxu0 0.0
      %5092 = vmatmul.mubr.f32.gmra.mxu0 %v3871
      %v5093 = vpop.f32.mrf.mxu0
      %v5094 = vadd.f32 0.0, %v5093
      %v5095 = vpop.f32.mrf.mxu0
      %5096 = vmatprep.mubr.f32.mxu0 0.0
      %5097 = vmatmul.mubr.f32.gmra.mxu0 %v3874
      %v5098 = vpop.f32.mrf.mxu0
      %v5099 = vadd.f32 0.0, %v5098
      %v5100 = vpop.f32.mrf.mxu0
      %5101 = vmatprep.mubr.f32.mxu0 0.0
      %5102 = vmatmul.mubr.f32.gmra.mxu0 %v3877
      %v5103 = vpop.f32.mrf.mxu0
      %v5104 = vadd.f32 0.0, %v5103
      %v5105 = vpop.f32.mrf.mxu0
      %5106 = vmatprep.mubr.f32.mxu0 0.0
      %5107 = vmatmul.mubr.f32.gmra.mxu0 %v3880
      %v5108 = vpop.f32.mrf.mxu0
      %v5109 = vadd.f32 0.0, %v5108
      %v5110 = vpop.f32.mrf.mxu0
      %5111 = vmatprep.mubr.f32.mxu0 0.0
      %5112 = vmatmul.mubr.f32.gmra.mxu0 %v3883
      %v5113 = vpop.f32.mrf.mxu0
      %v5114 = vadd.f32 0.0, %v5113
      %v5115 = vpop.f32.mrf.mxu0
      %5116 = vmatprep.mubr.f32.mxu0 0.0
      %5117 = vmatmul.mubr.f32.gmra.mxu0 %v3886
      %v5118 = vpop.f32.mrf.mxu0
      %v5119 = vadd.f32 0.0, %v5118
      %v5120 = vpop.f32.mrf.mxu0
      %5121 = vmatprep.mubr.f32.mxu0 0.0
      %5122 = vmatmul.mubr.f32.gmra.mxu0 %v3889
      %v5123 = vpop.f32.mrf.mxu0
      %v5124 = vadd.f32 0.0, %v5123
      %v5125 = vpop.f32.mrf.mxu0
      %5126 = vmatprep.mubr.f32.mxu0 0.0
      %5127 = vmatmul.mubr.f32.gmra.mxu0 %v3892
      %v5128 = vpop.f32.mrf.mxu0
      %v5129 = vadd.f32 0.0, %v5128
      %v5130 = vpop.f32.mrf.mxu0
      %5131 = vmatprep.mubr.f32.mxu0 0.0
      %5132 = vmatmul.mubr.f32.gmra.mxu0 %v3895
      %v5133 = vpop.f32.mrf.mxu0
      %v5134 = vadd.f32 0.0, %v5133
      %v5135 = vpop.f32.mrf.mxu0
      %5136 = vmatprep.mubr.f32.mxu0 0.0
      %5137 = vmatmul.mubr.f32.gmra.mxu0 %v3898
      %v5138 = vpop.f32.mrf.mxu0
      %v5139 = vadd.f32 0.0, %v5138
      %v5140 = vpop.f32.mrf.mxu0
      %5141 = vmatprep.mubr.f32.mxu0 0.0
      %5142 = vmatmul.mubr.f32.gmra.mxu0 %v3901
      %v5143 = vpop.f32.mrf.mxu0
      %v5144 = vadd.f32 0.0, %v5143
      %v5145 = vpop.f32.mrf.mxu0
      %5146 = vmatprep.mubr.f32.mxu0 0.0
      %5147 = vmatmul.mubr.f32.gmra.mxu0 %v3904
      %v5148 = vpop.f32.mrf.mxu0
      %v5149 = vadd.f32 0.0, %v5148
      %v5150 = vpop.f32.mrf.mxu0
      %5151 = vmatprep.mubr.f32.mxu0 0.0
      %5152 = vmatmul.mubr.f32.gmra.mxu0 %v3907
      %v5153 = vpop.f32.mrf.mxu0
      %v5154 = vadd.f32 0.0, %v5153
      %v5155 = vpop.f32.mrf.mxu0
      %5156 = vmatprep.mubr.f32.mxu0 0.0
      %5157 = vmatmul.mubr.f32.gmra.mxu0 %v3910
      %v5158 = vpop.f32.mrf.mxu0
      %v5159 = vadd.f32 0.0, %v5158
      %v5160 = vpop.f32.mrf.mxu0
      %5161 = vmatprep.mubr.f32.mxu0 0.0
      %5162 = vmatmul.mubr.f32.gmra.mxu0 %v3913
      %v5163 = vpop.f32.mrf.mxu0
      %v5164 = vadd.f32 0.0, %v5163
      %v5165 = vpop.f32.mrf.mxu0
      %5166 = vmatprep.mubr.f32.mxu0 0.0
      %5167 = vmatmul.mubr.f32.gmra.mxu0 %v3916
      %v5168 = vpop.f32.mrf.mxu0
      %v5169 = vadd.f32 0.0, %v5168
      %v5170 = vpop.f32.mrf.mxu0
      %5171 = vmatprep.mubr.f32.mxu0 0.0
      %5172 = vmatmul.mubr.f32.gmra.mxu0 %v3919
      %v5173 = vpop.f32.mrf.mxu0
      %v5174 = vadd.f32 0.0, %v5173
      %v5175 = vpop.f32.mrf.mxu0
      %5176 = vmatprep.mubr.f32.mxu0 0.0
      %5177 = vmatmul.mubr.f32.gmra.mxu0 %v3922
      %v5178 = vpop.f32.mrf.mxu0
      %v5179 = vadd.f32 0.0, %v5178
      %v5180 = vpop.f32.mrf.mxu0
      %5181 = vmatprep.mubr.f32.mxu0 0.0
      %5182 = vmatmul.mubr.f32.gmra.mxu0 %v3925
      %v5183 = vpop.f32.mrf.mxu0
      %v5184 = vadd.f32 0.0, %v5183
      %v5185 = vpop.f32.mrf.mxu0
      %5186 = vdwg.mxu0
      %v5187 = vld [vmem:[#allocation2] sm:$0xff]
      %v5188 = vld [vmem:[#allocation2 + $0x8] sm:$0xff]
      %v5189 = vld [vmem:[#allocation2 + $0x10] sm:$0xff]
      %v5190 = vld [vmem:[#allocation2 + $0x18] sm:$0xff]
      %v5191 = vld [vmem:[#allocation2 + $0x20] sm:$0xff]
      %v5192 = vld [vmem:[#allocation2 + $0x28] sm:$0xff]
      %v5193 = vld [vmem:[#allocation2 + $0x30] sm:$0xff]
      %v5194 = vld [vmem:[#allocation2 + $0x38] sm:$0xff]
      %v5195 = vld [vmem:[#allocation2 + $0x40] sm:$0xff]
      %v5196 = vld [vmem:[#allocation2 + $0x48] sm:$0xff]
      %v5197 = vld [vmem:[#allocation2 + $0x50] sm:$0xff]
      %v5198 = vld [vmem:[#allocation2 + $0x58] sm:$0xff]
      %v5199 = vld [vmem:[#allocation2 + $0x60] sm:$0xff]
      %v5200 = vld [vmem:[#allocation2 + $0x68] sm:$0xff]
      %v5201 = vld [vmem:[#allocation2 + $0x70] sm:$0xff]
      %v5202 = vld [vmem:[#allocation2 + $0x78] sm:$0xff]
      %v5203 = vld [vmem:[#allocation2 + $0x80] sm:$0xff]
      %v5204 = vld [vmem:[#allocation2 + $0x88] sm:$0xff]
      %v5205 = vld [vmem:[#allocation2 + $0x90] sm:$0xff]
      %v5206 = vld [vmem:[#allocation2 + $0x98] sm:$0xff]
      %v5207 = vld [vmem:[#allocation2 + $0xa0] sm:$0xff]
      %v5208 = vld [vmem:[#allocation2 + $0xa8] sm:$0xff]
      %v5209 = vld [vmem:[#allocation2 + $0xb0] sm:$0xff]
      %v5210 = vld [vmem:[#allocation2 + $0xb8] sm:$0xff]
      %v5211 = vld [vmem:[#allocation2 + $0xc0] sm:$0xff]
      %v5212 = vld [vmem:[#allocation2 + $0xc8] sm:$0xff]
      %v5213 = vld [vmem:[#allocation2 + $0xd0] sm:$0xff]
      %v5214 = vld [vmem:[#allocation2 + $0xd8] sm:$0xff]
      %v5215 = vld [vmem:[#allocation2 + $0xe0] sm:$0xff]
      %v5216 = vld [vmem:[#allocation2 + $0xe8] sm:$0xff]
      %v5217 = vld [vmem:[#allocation2 + $0xf0] sm:$0xff]
      %v5218 = vld [vmem:[#allocation2 + $0xf8] sm:$0xff]
      %v5219 = vld [vmem:[#allocation2 + $0x100] sm:$0xff]
      %v5220 = vld [vmem:[#allocation2 + $0x108] sm:$0xff]
      %v5221 = vld [vmem:[#allocation2 + $0x110] sm:$0xff]
      %v5222 = vld [vmem:[#allocation2 + $0x118] sm:$0xff]
      %v5223 = vld [vmem:[#allocation2 + $0x120] sm:$0xff]
      %v5224 = vld [vmem:[#allocation2 + $0x128] sm:$0xff]
      %v5225 = vld [vmem:[#allocation2 + $0x130] sm:$0xff]
      %v5226 = vld [vmem:[#allocation2 + $0x138] sm:$0xff]
      %v5227 = vld [vmem:[#allocation2 + $0x140] sm:$0xff]
      %v5228 = vld [vmem:[#allocation2 + $0x148] sm:$0xff]
      %v5229 = vadd.f32 %v5187, %v4979
      %v5230 = vadd.f32 %v5188, %v4984
      %v5231 = vadd.f32 %v5189, %v4989
      %v5232 = vadd.f32 %v5190, %v4994
      %v5233 = vadd.f32 %v5191, %v4999
      %v5234 = vadd.f32 %v5192, %v5004
      %v5235 = vadd.f32 %v5193, %v5009
      %v5236 = vadd.f32 %v5194, %v5014
      %v5237 = vadd.f32 %v5195, %v5019
      %v5238 = vadd.f32 %v5196, %v5024
      %v5239 = vadd.f32 %v5197, %v5029
      %v5240 = vadd.f32 %v5198, %v5034
      %v5241 = vadd.f32 %v5199, %v5039
      %v5242 = vadd.f32 %v5200, %v5044
      %v5243 = vadd.f32 %v5201, %v5049
      %v5244 = vadd.f32 %v5202, %v5054
      %v5245 = vadd.f32 %v5203, %v5059
      %v5246 = vadd.f32 %v5204, %v5064
      %v5247 = vadd.f32 %v5205, %v5069
      %v5248 = vadd.f32 %v5206, %v5074
      %v5249 = vadd.f32 %v5207, %v5079
      %v5250 = vadd.f32 %v5208, %v5084
      %v5251 = vadd.f32 %v5209, %v5089
      %v5252 = vadd.f32 %v5210, %v5094
      %v5253 = vadd.f32 %v5211, %v5099
      %v5254 = vadd.f32 %v5212, %v5104
      %v5255 = vadd.f32 %v5213, %v5109
      %v5256 = vadd.f32 %v5214, %v5114
      %v5257 = vadd.f32 %v5215, %v5119
      %v5258 = vadd.f32 %v5216, %v5124
      %v5259 = vadd.f32 %v5217, %v5129
      %v5260 = vadd.f32 %v5218, %v5134
      %v5261 = vadd.f32 %v5219, %v5139
      %v5262 = vadd.f32 %v5220, %v5144
      %v5263 = vadd.f32 %v5221, %v5149
      %v5264 = vadd.f32 %v5222, %v5154
      %v5265 = vadd.f32 %v5223, %v5159
      %v5266 = vadd.f32 %v5224, %v5164
      %v5267 = vadd.f32 %v5225, %v5169
      %v5268 = vadd.f32 %v5226, %v5174
      %v5269 = vadd.f32 %v5227, %v5179
      %v5270 = vadd.f32 %v5228, %v5184
      %5271 = vst.msk [vmem:[#allocation2] sm:$0xff] %vm802, %v5229
      %5272 = vst.msk [vmem:[#allocation2 + $0x8] sm:$0xff] %vm802, %v5230
      %5273 = vst.msk [vmem:[#allocation2 + $0x10] sm:$0xff] %vm802, %v5231
      %5274 = vst.msk [vmem:[#allocation2 + $0x18] sm:$0xff] %vm802, %v5232
      %5275 = vst.msk [vmem:[#allocation2 + $0x20] sm:$0xff] %vm802, %v5233
      %5276 = vst.msk [vmem:[#allocation2 + $0x28] sm:$0xff] %vm802, %v5234
      %5277 = vst.msk [vmem:[#allocation2 + $0x30] sm:$0xff] %vm802, %v5235
      %5278 = vst.msk [vmem:[#allocation2 + $0x38] sm:$0xff] %vm802, %v5236
      %5279 = vst.msk [vmem:[#allocation2 + $0x40] sm:$0xff] %vm802, %v5237
      %5280 = vst.msk [vmem:[#allocation2 + $0x48] sm:$0xff] %vm802, %v5238
      %5281 = vst.msk [vmem:[#allocation2 + $0x50] sm:$0xff] %vm802, %v5239
      %5282 = vst.msk [vmem:[#allocation2 + $0x58] sm:$0xff] %vm802, %v5240
      %5283 = vst.msk [vmem:[#allocation2 + $0x60] sm:$0xff] %vm802, %v5241
      %5284 = vst.msk [vmem:[#allocation2 + $0x68] sm:$0xff] %vm802, %v5242
      %5285 = vst.msk [vmem:[#allocation2 + $0x70] sm:$0xff] %vm802, %v5243
      %5286 = vst.msk [vmem:[#allocation2 + $0x78] sm:$0xff] %vm802, %v5244
      %5287 = vst.msk [vmem:[#allocation2 + $0x80] sm:$0xff] %vm802, %v5245
      %5288 = vst.msk [vmem:[#allocation2 + $0x88] sm:$0xff] %vm802, %v5246
      %5289 = vst.msk [vmem:[#allocation2 + $0x90] sm:$0xff] %vm802, %v5247
      %5290 = vst.msk [vmem:[#allocation2 + $0x98] sm:$0xff] %vm802, %v5248
      %5291 = vst.msk [vmem:[#allocation2 + $0xa0] sm:$0xff] %vm802, %v5249
      %5292 = vst.msk [vmem:[#allocation2 + $0xa8] sm:$0xff] %vm802, %v5250
      %5293 = vst.msk [vmem:[#allocation2 + $0xb0] sm:$0xff] %vm802, %v5251
      %5294 = vst.msk [vmem:[#allocation2 + $0xb8] sm:$0xff] %vm802, %v5252
      %5295 = vst.msk [vmem:[#allocation2 + $0xc0] sm:$0xff] %vm802, %v5253
      %5296 = vst.msk [vmem:[#allocation2 + $0xc8] sm:$0xff] %vm802, %v5254
      %5297 = vst.msk [vmem:[#allocation2 + $0xd0] sm:$0xff] %vm802, %v5255
      %5298 = vst.msk [vmem:[#allocation2 + $0xd8] sm:$0xff] %vm802, %v5256
      %5299 = vst.msk [vmem:[#allocation2 + $0xe0] sm:$0xff] %vm802, %v5257
      %5300 = vst.msk [vmem:[#allocation2 + $0xe8] sm:$0xff] %vm802, %v5258
      %5301 = vst.msk [vmem:[#allocation2 + $0xf0] sm:$0xff] %vm802, %v5259
      %5302 = vst.msk [vmem:[#allocation2 + $0xf8] sm:$0xff] %vm802, %v5260
      %5303 = vst.msk [vmem:[#allocation2 + $0x100] sm:$0xff] %vm802, %v5261
      %5304 = vst.msk [vmem:[#allocation2 + $0x108] sm:$0xff] %vm802, %v5262
      %5305 = vst.msk [vmem:[#allocation2 + $0x110] sm:$0xff] %vm802, %v5263
      %5306 = vst.msk [vmem:[#allocation2 + $0x118] sm:$0xff] %vm802, %v5264
      %5307 = vst.msk [vmem:[#allocation2 + $0x120] sm:$0xff] %vm802, %v5265
      %5308 = vst.msk [vmem:[#allocation2 + $0x128] sm:$0xff] %vm802, %v5266
      %5309 = vst.msk [vmem:[#allocation2 + $0x130] sm:$0xff] %vm802, %v5267
      %5310 = vst.msk [vmem:[#allocation2 + $0x138] sm:$0xff] %vm802, %v5268
      %5311 = vst.msk [vmem:[#allocation2 + $0x140] sm:$0xff] %vm802, %v5269
      %5312 = vst.msk [vmem:[#allocation2 + $0x148] sm:$0xff] %vm802, %v5270
      %v5314 = vsel %vm348, %v3776, 0
      %v5317 = vsel %vm348, %v3775, 0
      %v5320 = vsel %vm348, %v3780, 0
      %5322 = vmatprep.subr.mxu0 0.0
      %5323 = vmatpush1.msra.mxu0 0.0
      %5324 = vmatprep.subr.mxu0 0.0
      %5325 = vmatpush1.msra.mxu0 0.0
      %5326 = vmatprep.subr.mxu0 0.0
      %5327 = vmatpush1.msra.mxu0 0.0
      %5328 = vmatprep.subr.mxu0 0.0
      %5329 = vmatpush1.msra.mxu0 0.0
      %5330 = vmatprep.subr.mxu0 0.0
      %5331 = vmatpush1.msra.mxu0 0.0
      %5332 = vmatprep.subr.mxu0 0.0
      %5333 = vmatpush1.msra.mxu0 0.0
      %5334 = vmatprep.subr.mxu0 0.0
      %5335 = vmatpush1.msra.mxu0 0.0
      %5336 = vmatprep.subr.mxu0 0.0
      %5337 = vmatpush1.msra.mxu0 0.0
      %5338 = vmatprep.subr.mxu0 0.0
      %5339 = vmatpush1.msra.mxu0 0.0
      %5340 = vmatprep.subr.mxu0 0.0
      %5341 = vmatpush1.msra.mxu0 0.0
      %5342 = vmatprep.subr.mxu0 0.0
      %5343 = vmatpush1.msra.mxu0 0.0
      %5344 = vmatprep.subr.mxu0 0.0
      %5345 = vmatpush1.msra.mxu0 0.0
      %5346 = vmatprep.subr.mxu0 0.0
      %5347 = vmatpush1.msra.mxu0 0.0
      %5348 = vmatprep.subr.mxu0 0.0
      %5349 = vmatpush1.msra.mxu0 0.0
      %5350 = vmatprep.subr.mxu0 0.0
      %5351 = vmatpush1.msra.mxu0 0.0
      %5352 = vmatprep.subr.mxu0 0.0
      %5353 = vmatpush1.msra.mxu0 %v4910
      %5354 = vmatprep.subr.mxu0 0.0
      %5355 = vmatpush2.msra.mxu0 0.0
      %5356 = vmatprep.subr.mxu0 0.0
      %5357 = vmatpush2.msra.mxu0 0.0
      %5358 = vmatprep.subr.mxu0 0.0
      %5359 = vmatpush2.msra.mxu0 0.0
      %5360 = vmatprep.subr.mxu0 0.0
      %5361 = vmatpush2.msra.mxu0 0.0
      %5362 = vmatprep.subr.mxu0 0.0
      %5363 = vmatpush2.msra.mxu0 0.0
      %5364 = vmatprep.subr.mxu0 0.0
      %5365 = vmatpush2.msra.mxu0 0.0
      %5366 = vmatprep.subr.mxu0 0.0
      %5367 = vmatpush2.msra.mxu0 0.0
      %5368 = vmatprep.subr.mxu0 0.0
      %5369 = vmatpush2.msra.mxu0 0.0
      %5370 = vmatprep.subr.mxu0 0.0
      %5371 = vmatpush2.msra.mxu0 0.0
      %5372 = vmatprep.subr.mxu0 0.0
      %5373 = vmatpush2.msra.mxu0 0.0
      %5374 = vmatprep.subr.mxu0 0.0
      %5375 = vmatpush2.msra.mxu0 0.0
      %5376 = vmatprep.subr.mxu0 0.0
      %5377 = vmatpush2.msra.mxu0 0.0
      %5378 = vmatprep.subr.mxu0 0.0
      %5379 = vmatpush2.msra.mxu0 0.0
      %5380 = vmatprep.subr.mxu0 0.0
      %5381 = vmatpush2.msra.mxu0 0.0
      %5382 = vmatprep.subr.mxu0 0.0
      %5383 = vmatpush2.msra.mxu0 0.0
      %5384 = vmatprep.subr.mxu0 0.0
      %5385 = vmatpush2.msra.mxu0 0.0
      %5386 = vmatprep.mubr.f32.mxu0 0.0
      %5387 = vmatmul.mubr.f32.gmra.mxu0 %v4810
      %v5388 = vpop.f32.mrf.mxu0
      %v5389 = vadd.f32 0.0, %v5388
      %v5390 = vpop.f32.mrf.mxu0
      %5391 = vmatprep.mubr.f32.mxu0 0.0
      %5392 = vmatmul.mubr.f32.gmra.mxu0 %v4813
      %v5393 = vpop.f32.mrf.mxu0
      %v5394 = vadd.f32 0.0, %v5393
      %v5395 = vpop.f32.mrf.mxu0
      %5396 = vmatprep.mubr.f32.mxu0 0.0
      %5397 = vmatmul.mubr.f32.gmra.mxu0 %v4816
      %v5398 = vpop.f32.mrf.mxu0
      %v5399 = vadd.f32 0.0, %v5398
      %v5400 = vpop.f32.mrf.mxu0
      %5401 = vmatprep.mubr.f32.mxu0 0.0
      %5402 = vmatmul.mubr.f32.gmra.mxu0 %v5314
      %v5403 = vpop.f32.mrf.mxu0
      %v5404 = vadd.f32 0.0, %v5403
      %v5405 = vpop.f32.mrf.mxu0
      %5406 = vmatprep.mubr.f32.mxu0 0.0
      %5407 = vmatmul.mubr.f32.gmra.mxu0 %v5317
      %v5408 = vpop.f32.mrf.mxu0
      %v5409 = vadd.f32 0.0, %v5408
      %v5410 = vpop.f32.mrf.mxu0
      %5411 = vmatprep.mubr.f32.mxu0 0.0
      %5412 = vmatmul.mubr.f32.gmra.mxu0 %v5320
      %v5413 = vpop.f32.mrf.mxu0
      %v5414 = vadd.f32 0.0, %v5413
      %v5415 = vpop.f32.mrf.mxu0
      %5416 = vdwg.mxu0
      %v5417 = vld [vmem:[#allocation2 + $0x150] sm:$0xff]
      %v5418 = vld [vmem:[#allocation2 + $0x158] sm:$0xff]
      %v5419 = vld [vmem:[#allocation2 + $0x160] sm:$0xff]
      %v5420 = vld [vmem:[#allocation2 + $0x168] sm:$0xff]
      %v5421 = vld [vmem:[#allocation2 + $0x170] sm:$0xff]
      %v5422 = vld [vmem:[#allocation2 + $0x178] sm:$0xff]
      %v5423 = vadd.f32 %v5417, %v5389
      %v5424 = vadd.f32 %v5418, %v5394
      %v5425 = vadd.f32 %v5419, %v5399
      %v5426 = vadd.f32 %v5420, %v5404
      %v5427 = vadd.f32 %v5421, %v5409
      %v5428 = vadd.f32 %v5422, %v5414
      %5429 = vst.msk [vmem:[#allocation2 + $0x150] sm:$0xff] %vm802, %v5423
      %5430 = vst.msk [vmem:[#allocation2 + $0x158] sm:$0xff] %vm802, %v5424
      %5431 = vst.msk [vmem:[#allocation2 + $0x160] sm:$0xff] %vm802, %v5425
      %5432 = vst.msk [vmem:[#allocation2 + $0x168] sm:$0xff] %vm802, %v5426
      %5433 = vst.msk [vmem:[#allocation2 + $0x170] sm:$0xff] %vm802, %v5427
      %5434 = vst.msk [vmem:[#allocation2 + $0x178] sm:$0xff] %vm802, %v5428
      %v5435 = vld [vmem:[#allocation2] sm:$0xff]
      %v5436 = vld [vmem:[#allocation2 + $0x8] sm:$0xff]
      %v5437 = vld [vmem:[#allocation2 + $0x18] sm:$0xff]
      %v5438 = vld [vmem:[#allocation2 + $0x20] sm:$0xff]
      %v5439 = vld [vmem:[#allocation2 + $0x30] sm:$0xff]
      %v5440 = vld [vmem:[#allocation2 + $0x38] sm:$0xff]
      %v5441 = vld [vmem:[#allocation2 + $0x48] sm:$0xff]
      %v5442 = vld [vmem:[#allocation2 + $0x50] sm:$0xff]
      %v5443 = vld [vmem:[#allocation2 + $0x60] sm:$0xff]
      %v5444 = vld [vmem:[#allocation2 + $0x68] sm:$0xff]
      %v5445 = vld [vmem:[#allocation2 + $0x78] sm:$0xff]
      %v5446 = vld [vmem:[#allocation2 + $0x80] sm:$0xff]
      %v5447 = vld [vmem:[#allocation2 + $0x90] sm:$0xff]
      %v5448 = vld [vmem:[#allocation2 + $0x98] sm:$0xff]
      %v5449 = vld [vmem:[#allocation2 + $0xa8] sm:$0xff]
      %v5450 = vld [vmem:[#allocation2 + $0xb0] sm:$0xff]
      %v5451 = vld [vmem:[#allocation2 + $0xc0] sm:$0xff]
      %v5452 = vld [vmem:[#allocation2 + $0xc8] sm:$0xff]
      %v5453 = vld [vmem:[#allocation2 + $0xd8] sm:$0xff]
      %v5454 = vld [vmem:[#allocation2 + $0xe0] sm:$0xff]
      %v5455 = vld [vmem:[#allocation2 + $0xf0] sm:$0xff]
      %v5456 = vld [vmem:[#allocation2 + $0xf8] sm:$0xff]
      %v5457 = vld [vmem:[#allocation2 + $0x108] sm:$0xff]
      %v5458 = vld [vmem:[#allocation2 + $0x110] sm:$0xff]
      %v5459 = vld [vmem:[#allocation2 + $0x120] sm:$0xff]
      %v5460 = vld [vmem:[#allocation2 + $0x128] sm:$0xff]
      %v5461 = vld [vmem:[#allocation2 + $0x138] sm:$0xff]
      %v5462 = vld [vmem:[#allocation2 + $0x140] sm:$0xff]
      %v5463 = vld [vmem:[#allocation2 + $0x150] sm:$0xff]
      %v5464 = vld [vmem:[#allocation2 + $0x158] sm:$0xff]
      %v5465 = vld [vmem:[#allocation2 + $0x168] sm:$0xff]
      %v5466 = vld [vmem:[#allocation2 + $0x170] sm:$0xff]
      %5467 = vst.msk [vmem:[%s291] sm:$0xff] %vm802, %v5435
      %5468 = vst.msk [vmem:[%s291 + $0x8] sm:$0xff] %vm802, %v5436
      %5469 = vst.msk [vmem:[%s291 + $0x10] sm:$0xff] %vm802, %v5437
      %5470 = vst.msk [vmem:[%s291 + $0x18] sm:$0xff] %vm802, %v5438
      %5471 = vst.msk [vmem:[%s291 + $0x20] sm:$0xff] %vm802, %v5439
      %5472 = vst.msk [vmem:[%s291 + $0x28] sm:$0xff] %vm802, %v5440
      %5473 = vst.msk [vmem:[%s291 + $0x30] sm:$0xff] %vm802, %v5441
      %5474 = vst.msk [vmem:[%s291 + $0x38] sm:$0xff] %vm802, %v5442
      %5475 = vst.msk [vmem:[%s291 + $0x40] sm:$0xff] %vm802, %v5443
      %5476 = vst.msk [vmem:[%s291 + $0x48] sm:$0xff] %vm802, %v5444
      %5477 = vst.msk [vmem:[%s291 + $0x50] sm:$0xff] %vm802, %v5445
      %5478 = vst.msk [vmem:[%s291 + $0x58] sm:$0xff] %vm802, %v5446
      %5479 = vst.msk [vmem:[%s291 + $0x60] sm:$0xff] %vm802, %v5447
      %5480 = vst.msk [vmem:[%s291 + $0x68] sm:$0xff] %vm802, %v5448
      %5481 = vst.msk [vmem:[%s291 + $0x70] sm:$0xff] %vm802, %v5449
      %5482 = vst.msk [vmem:[%s291 + $0x78] sm:$0xff] %vm802, %v5450
      %5483 = vst.msk [vmem:[%s291 + $0x80] sm:$0xff] %vm802, %v5451
      %5484 = vst.msk [vmem:[%s291 + $0x88] sm:$0xff] %vm802, %v5452
      %5485 = vst.msk [vmem:[%s291 + $0x90] sm:$0xff] %vm802, %v5453
      %5486 = vst.msk [vmem:[%s291 + $0x98] sm:$0xff] %vm802, %v5454
      %5487 = vst.msk [vmem:[%s291 + $0xa0] sm:$0xff] %vm802, %v5455
      %5488 = vst.msk [vmem:[%s291 + $0xa8] sm:$0xff] %vm802, %v5456
      %5489 = vst.msk [vmem:[%s291 + $0xb0] sm:$0xff] %vm802, %v5457
      %5490 = vst.msk [vmem:[%s291 + $0xb8] sm:$0xff] %vm802, %v5458
      %5491 = vst.msk [vmem:[%s291 + $0xc0] sm:$0xff] %vm802, %v5459
      %5492 = vst.msk [vmem:[%s291 + $0xc8] sm:$0xff] %vm802, %v5460
      %5493 = vst.msk [vmem:[%s291 + $0xd0] sm:$0xff] %vm802, %v5461
      %5494 = vst.msk [vmem:[%s291 + $0xd8] sm:$0xff] %vm802, %v5462
      %5495 = vst.msk [vmem:[%s291 + $0xe0] sm:$0xff] %vm802, %v5463
      %5496 = vst.msk [vmem:[%s291 + $0xe8] sm:$0xff] %vm802, %v5464
      %5497 = vst.msk [vmem:[%s291 + $0xf0] sm:$0xff] %vm802, %v5465
      %5498 = vst.msk [vmem:[%s291 + $0xf8] sm:$0xff] %vm802, %v5466
      %s5499 = smul.u32 16, %s19
      %p5500 = scmp.lt.s32.totalorder %s18, 1
      %s5501 = scalar_select %p5500, %s18, 1
      %p5502 = scmp.lt.s32.totalorder %s5499, 15
      %s5503 = scalar_select %p5502, %s5499, 15
      %s5504 = smul.addr %s5503, 2
      %s5505 = smul.addr %s5501, 32
      %s5506 = sadd.s32 %s5504, %s5505
      %s5507 = smul.addr %s5506, 8
      %s5508 = scalar_lea.vmem %s3, %s5507
      // Predicated region
      $region33: #{tpu_custom_call.1} parent=31 // pred_check
        %p5509 = pneg %p127
      $region34: #{tpu_custom_call.1} parent=31 // pred_check_branch
        %5511 = sbr.rel (%p5509) target = $region36
      $region35: #{tpu_custom_call.1} parent=31 // pred_region
        %s5512 = smul.u32 16, %s19
      $region36: #{tpu_custom_call.1} parent=31 // pred_fallthru
        _
    $region32: #{tpu_custom_call.1} parent=5 // pred_fallthru
      _
    %p5513 = scmp.le.s32.totalorder 2, %s9
    // Predicated region
    $region37: #{tpu_custom_call.1} parent=5 // pred_check
      %p5514 = pneg %p5513
    $region38: #{tpu_custom_call.1} parent=5 // pred_check_branch
      %5516 = sbr.rel (%p5514) target = $region40
    $region39: #{tpu_custom_call.1} parent=5 // pred_region
      %s5517 = ssub.s32 %s9, 2
      // Predicated region
      $region41: #{tpu_custom_call.1} parent=39 // pred_check
        %p5518 = pneg %p133
      $region42: #{tpu_custom_call.1} parent=39 // pred_check_branch
        %5520 = sbr.rel (%p5518) target = $region44
      $region43: #{tpu_custom_call.1} parent=39 // pred_region
        %s5521 = smul.u32 16, %s21
        %p5522 = scmp.lt.s32.totalorder %s20, 1
        %s5523 = scalar_select %p5522, %s20, 1
        %p5524 = scmp.lt.s32.totalorder %s5521, 15
        %s5525 = scalar_select %p5524, %s5521, 15
        %s5526 = smul.addr %s5525, 2
        %s5527 = smul.addr %s5523, 32
        %s5528 = sadd.s32 %s5526, %s5527
        %s5529 = smul.addr %s5528, 8
        %s5530 = scalar_lea.vmem %s3, %s5529
      $region44: #{tpu_custom_call.1} parent=39 // pred_fallthru
        _
    $region40: #{tpu_custom_call.1} parent=5 // pred_fallthru
      _
  $region6: #{tpu_custom_call.1} parent=0 // loop_footer
    %s13 = sadd.s32 1, %s9
  $region7: #{tpu_custom_call.1} parent=0 // loop_footer_branch
    %8 = sbr.rel target = $region3
  $region8: #{tpu_custom_call.1} parent=0 // loop_exit
    _

</llo_original>
